<compile_context>
chip_gen: v7x
topology: tpu7x:2x2x1
jax: 0.10.0
libtpu: 0.0.40
codegen_flags: <defaults>
</compile_context>

<pallas_src>
import functools
import math

import jax
import jax.numpy as jnp
from jax.experimental import pallas as pl
from jax.experimental.pallas import tpu as pltpu

# ----------------------------- model config (small) -----------------------------
INPUT_FEATS = 16     # D  (original: 263)
LATENT_DIM = 32      # E  (original: 256)
FF_SIZE = 64         # F  (original: 1024)
NUM_LAYERS = 2       #    (original: 8)
NUM_HEADS = 4
CLIP_DIM = 48        #    (original: 512)
GUIDE_SCALE = 1.0
MAX_LEN = 64         # positional-encoding table length (original: 5000)
LN_EPS = 1e-5

# MXU operand dtype: bf16 operands + f32 accumulation (set to jnp.float32 for exact
# f32 parity with the PyTorch reference).
MXU_DTYPE = jnp.bfloat16

_LANE = 128


def _round_up(x, m):
    return ((x + m - 1) // m) * m


# ----------------------------- in-kernel math helpers -----------------------------
def _gelu_tanh(x):
    # tanh-approx GELU (tanh -> EUP slot). PyTorch uses exact erf-GELU; deviation
    # is <~1e-3 and below the bf16-matmul noise floor (documented deviation).
    c = math.sqrt(2.0 / math.pi)
    return 0.5 * x * (1.0 + jnp.tanh(c * (x + 0.044715 * x * x * x)))


def _silu(x):
    return x * jax.nn.sigmoid(x)


def _layernorm(x, w, b):
    # x: (M, E) f32, w/b: (1, E)
    mu = jnp.mean(x, axis=-1, keepdims=True)
    xc = x - mu
    var = jnp.mean(xc * xc, axis=-1, keepdims=True)
    return xc * jax.lax.rsqrt(var + LN_EPS) * w + b


def _mm(x, w):
    # x: f32 activations (cast to MXU dtype), w: pre-cast MXU-dtype weight value.
    return jnp.dot(x.astype(MXU_DTYPE), w, preferred_element_type=jnp.float32)


# ----------------------------- fused forward kernel -----------------------------
def _mdm_fused_kernel(motion_ref, temb_ref, text_ref, pos_tok_ref, pos_mot_ref,
                      pose_w_ref, pose_b_ref,
                      tw1_ref, tb1_ref, tw2_ref, tb2_ref,
                      txt_w_ref, txt_b_ref,
                      fin_w_ref, fin_b_ref,
                      wq_ref, bq_ref, wk_ref, bk_ref, wv_ref, bv_ref,
                      out_w_ref, out_b_ref,
                      ln1_w_ref, ln1_b_ref,
                      ff1_w_ref, ff1_b_ref, ff2_w_ref, ff2_b_ref,
                      ln2_w_ref, ln2_b_ref,
                      o_ref, xbuf_ref,
                      *, batch, seq, num_layers, num_heads, guide_scale, cfg):
    B, T = batch, seq
    S = T + 1
    E = pose_w_ref.shape[1]
    hd = E // num_heads
    BB = 2 * B if cfg else B          # CFG-batched (uncond + text) or text only
    BBH = BB * num_heads

    # ---- poseEmbedding + positional encoding for motion rows (pe[1:T+1]) ----
    mot = _mm(motion_ref[...], pose_w_ref[...]) + pose_b_ref[...]   # (B*T, E)
    mot = mot.reshape(B, T, E) + pos_mot_ref[...][None, :, :]       # (B, T, E)

    # ---- TimestepEmbedder MLP: Linear -> SiLU -> Linear ----
    h = _silu(_mm(temb_ref[...], tw1_ref[...]) + tb1_ref[...])
    emb = _mm(h, tw2_ref[...]) + tb2_ref[...]                       # (B, E)

    # ---- embed_text; conditioning token carries pe[0] ----
    tok_pe = pos_tok_ref[...]                                       # (1, E)
    txt = _mm(text_ref[...], txt_w_ref[...]) + txt_b_ref[...]       # (B, E)
    emb_text = emb + txt + tok_pe

    # ---- build sequence in a VMEM scratch; cond token appended at the END so the
    #      output slice later is sublane-aligned (bidirectional attention => same) ----
    xbuf_ref[0:B, 0:T, :] = mot
    if cfg:
        # masked-text branch: zeros @ W + b == b (no matmul)
        emb_uncond = emb + txt_b_ref[...] + tok_pe
        xbuf_ref[B:BB, 0:T, :] = mot
        xbuf_ref[0:B, T:S, :] = emb_uncond[:, None, :]
        xbuf_ref[B:BB, T:S, :] = emb_text[:, None, :]
    else:
        xbuf_ref[0:B, T:S, :] = emb_text[:, None, :]

    x2 = xbuf_ref[...].reshape(BB * S, E)                           # (M, E)

    # ---- N x TransformerEncoderLayer (post-norm, eval: dropout = identity) ----
    def layer_body(l, x2):
        x2b = x2.astype(MXU_DTYPE)
        # 1/sqrt(hd) is folded into wq/bq at init time.
        q = jnp.dot(x2b, wq_ref[l], preferred_element_type=jnp.float32) + bq_ref[l]
        k = jnp.dot(x2b, wk_ref[l], preferred_element_type=jnp.float32) + bk_ref[l]
        v = jnp.dot(x2b, wv_ref[l], preferred_element_type=jnp.float32) + bv_ref[l]

        def split_heads(t):
            t = t.reshape(BB, S, num_heads, hd)
            return jnp.transpose(t, (0, 2, 1, 3)).reshape(BBH, S, hd).astype(MXU_DTYPE)

        qh, kh, vh = split_heads(q), split_heads(k), split_heads(v)
        s = jnp.einsum('bqd,bkd->bqk', qh, kh,
                       preferred_element_type=jnp.float32)          # (BBH, S, S)
        s_max = jnp.max(s, axis=-1, keepdims=True)
        e = jnp.exp(s - s_max)
        p = e * pl.reciprocal(jnp.sum(e, axis=-1, keepdims=True), approx=True)
        o = jnp.einsum('bqk,bkd->bqd', p.astype(MXU_DTYPE), vh,
                       preferred_element_type=jnp.float32)          # (BBH, S, hd)
        attn = jnp.transpose(o.reshape(BB, num_heads, S, hd), (0, 2, 1, 3))
        attn = attn.reshape(BB * S, E)

        attn = _mm(attn, out_w_ref[l]) + out_b_ref[l]
        x2 = _layernorm(x2 + attn, ln1_w_ref[l], ln1_b_ref[l])

        hf = _gelu_tanh(_mm(x2, ff1_w_ref[l]) + ff1_b_ref[l])       # (M, F)
        hf = _mm(hf, ff2_w_ref[l]) + ff2_b_ref[l]                   # (M, E)
        x2 = _layernorm(x2 + hf, ln2_w_ref[l], ln2_b_ref[l])
        return x2

    x2 = jax.lax.fori_loop(0, num_layers, layer_body, x2)

    # ---- drop conditioning token (aligned slice), CFG mix in latent space ----
    x3 = x2.reshape(BB, S, E)
    y = x3[:, 0:T, :]                                               # (BB, T, E)
    if cfg:
        # poseFinal is affine, so mixing before the projection is exactly equivalent
        # to output + scale * (output_text - output) after it.
        y = y[0:B] + guide_scale * (y[B:BB] - y[0:B])               # (B, T, E)
    out = _mm(y.reshape(B * T, E), fin_w_ref[...]) + fin_b_ref[...]  # (B*T, 128-pad)
    o_ref[...] = out                                                # lane-dense store


# ----------------------------- pallas_call wrapper -----------------------------
def mdm_forward(params, motion, timesteps, text_feat, guide_scale=GUIDE_SCALE):
    B, T, D = motion.shape
    S = T + 1
    assert S <= MAX_LEN
    gs = float(guide_scale)
    cfg = (gs != 1.0)                 # static: skip dead uncond branch at gs == 1.0
    BB = 2 * B if cfg else B
    pe = params["pe"]

    # Tiny data-dependent gather (pe[timesteps]) done in the wrapper.
    temb_in = pe[timesteps]                      # (B, E)
    pos_tok = pe[0:1]                            # (1, E) -> conditioning token pos
    pos_mot = pe[1:S]                            # (T, E) -> motion positions
    n_pad = params["poseFinal_w_pad"].shape[1]   # 128-padded output width

    args = (
        motion.reshape(B * T, D), temb_in, text_feat, pos_tok, pos_mot,
        params["poseEmb_w"], params["poseEmb_b"],
        params["time_w1"], params["time_b1"], params["time_w2"], params["time_b2"],
        params["text_w"], params["text_b"],
        params["poseFinal_w_pad"], params["poseFinal_b_pad"],
        params["L_wq"], params["L_bq"], params["L_wk"], params["L_bk"],
        params["L_wv"], params["L_bv"],
        params["L_out_w"], params["L_out_b"],
        params["L_ln1_w"], params["L_ln1_b"],
        params["L_ff1_w"], params["L_ff1_b"], params["L_ff2_w"], params["L_ff2_b"],
        params["L_ln2_w"], params["L_ln2_b"],
    )

    kernel = functools.partial(
        _mdm_fused_kernel, batch=B, seq=T, num_layers=NUM_LAYERS,
        num_heads=NUM_HEADS, guide_scale=gs, cfg=cfg)

    out2d = pl.pallas_call(
        kernel,
        out_shape=jax.ShapeDtypeStruct((B * T, n_pad), jnp.float32),
        in_specs=[pl.BlockSpec(memory_space=pltpu.MemorySpace.VMEM)] * len(args),
        out_specs=pl.BlockSpec(memory_space=pltpu.MemorySpace.VMEM),
        scratch_shapes=[pltpu.VMEM((BB, S, LATENT_DIM), jnp.float32)],
    )(*args)

    return out2d[:, :D].reshape(B, T, D)


# ----------------------------- parameter construction -----------------------------
def make_positional_encoding(max_len, d_model):
    position = jnp.arange(max_len, dtype=jnp.float32)[:, None]
    div_term = jnp.exp(jnp.arange(0, d_model, 2, dtype=jnp.float32)
                       * (-math.log(10000.0) / d_model))
    pe = jnp.zeros((max_len, d_model), dtype=jnp.float32)
    pe = pe.at[:, 0::2].set(jnp.sin(position * div_term))
    pe = pe.at[:, 1::2].set(jnp.cos(position * div_term))
    return pe


def init_params(key):
    keys = jax.random.split(key, 96)
    k_it = iter(keys)

    def w(shape, scale=0.05):
        return scale * jax.random.normal(next(k_it), shape, dtype=jnp.float32)

    E = LATENT_DIM
    attn_scale = 1.0 / math.sqrt(E // NUM_HEADS)

    # Weights stored transposed relative to nn.Linear, as (in, out), so kernels do
    # x @ W.  All matmul weights pre-cast to bf16 once (biases stay f32).
    p = {
        "poseEmb_w": w((INPUT_FEATS, E)).astype(MXU_DTYPE),
        "poseEmb_b": w((1, E)),
        "time_w1": w((E, E)).astype(MXU_DTYPE),
        "time_b1": w((1, E)),
        "time_w2": w((E, E)).astype(MXU_DTYPE),
        "time_b2": w((1, E)),
        "text_w": w((CLIP_DIM, E)).astype(MXU_DTYPE),
        "text_b": w((1, E)),
        "pe": make_positional_encoding(MAX_LEN, E),
    }

    # poseFinal padded to a lane-dense (multiple-of-128) output width; extra columns
    # are zero and sliced off in the wrapper.
    n_pad = _round_up(INPUT_FEATS, _LANE)
    fin_w = w((E, INPUT_FEATS))
    fin_b = w((1, INPUT_FEATS))
    p["poseFinal_w_pad"] = jnp.pad(
        fin_w, ((0, 0), (0, n_pad - INPUT_FEATS))).astype(MXU_DTYPE)
    p["poseFinal_b_pad"] = jnp.pad(fin_b, ((0, 0), (0, n_pad - INPUT_FEATS)))

    # Encoder-layer weights stacked along a leading layer axis (dynamic first-axis
    # indexing in the fori_loop layer loop).
    def stack(shape, scale=0.05):
        return jnp.stack([w(shape, scale) for _ in range(NUM_LAYERS)], axis=0)

    # Separate Q/K/V projections (lane-dense outputs); 1/sqrt(hd) folded into Q.
    p["L_wq"] = (stack((E, E)) * attn_scale).astype(MXU_DTYPE)
    p["L_bq"] = stack((1, E)) * attn_scale
    p["L_wk"] = stack((E, E)).astype(MXU_DTYPE)
    p["L_bk"] = stack((1, E))
    p["L_wv"] = stack((E, E)).astype(MXU_DTYPE)
    p["L_bv"] = stack((1, E))
    p["L_out_w"] = stack((E, E)).astype(MXU_DTYPE)
    p["L_out_b"] = stack((1, E))
    p["L_ln1_w"] = jnp.ones((NUM_LAYERS, 1, E), jnp.float32)
    p["L_ln1_b"] = jnp.zeros((NUM_LAYERS, 1, E), jnp.float32)
    p["L_ff1_w"] = stack((E, FF_SIZE)).astype(MXU_DTYPE)
    p["L_ff1_b"] = stack((1, FF_SIZE))
    p["L_ff2_w"] = stack((FF_SIZE, E)).astype(MXU_DTYPE)
    p["L_ff2_b"] = stack((1, E))
    p["L_ln2_w"] = jnp.ones((NUM_LAYERS, 1, E), jnp.float32)
    p["L_ln2_b"] = jnp.zeros((NUM_LAYERS, 1, E), jnp.float32)
    return p


# ----------------------------- main -----------------------------
if __name__ == "__main__":
    B, T = 2, 8
    key = jax.random.PRNGKey(0)
    k_param, k_motion, k_text = jax.random.split(key, 3)

    params = init_params(k_param)
    motion = jax.random.normal(k_motion, (B, T, INPUT_FEATS), dtype=jnp.float32)
    timesteps = jnp.array([3, 7], dtype=jnp.int32)
    text_feat = jax.random.normal(k_text, (B, CLIP_DIM), dtype=jnp.float32)

    # Default guide_scale == 1.0: uncond branch is dead compute and statically skipped.
    fwd = jax.jit(mdm_forward)
    out = jax.block_until_ready(fwd(params, motion, timesteps, text_feat))
    assert out.shape == (B, T, INPUT_FEATS)
    assert bool(jnp.all(jnp.isfinite(out)))

    # CFG path (guide_scale != 1.0): both branches batched through one encoder pass.
    fwd_cfg = jax.jit(functools.partial(mdm_forward, guide_scale=2.5))
    out_cfg = jax.block_until_ready(fwd_cfg(params, motion, timesteps, text_feat))
    assert out_cfg.shape == (B, T, INPUT_FEATS)
    assert bool(jnp.all(jnp.isfinite(out_cfg)))

    print("KERNEL_OK")
</pallas_src>

<mosaic_0001>
module attributes {stable_mosaic.version = 11 : i64} {
  func.func @_mdm_fused_kernel(%arg0: memref<16x16xf32, #tpu.memory_space<vmem>>, %arg1: memref<2x32xf32, #tpu.memory_space<vmem>>, %arg2: memref<2x48xf32, #tpu.memory_space<vmem>>, %arg3: memref<1x32xf32, #tpu.memory_space<vmem>>, %arg4: memref<8x32xf32, #tpu.memory_space<vmem>>, %arg5: memref<16x32xbf16, #tpu.memory_space<vmem>>, %arg6: memref<1x32xf32, #tpu.memory_space<vmem>>, %arg7: memref<32x32xbf16, #tpu.memory_space<vmem>>, %arg8: memref<1x32xf32, #tpu.memory_space<vmem>>, %arg9: memref<32x32xbf16, #tpu.memory_space<vmem>>, %arg10: memref<1x32xf32, #tpu.memory_space<vmem>>, %arg11: memref<48x32xbf16, #tpu.memory_space<vmem>>, %arg12: memref<1x32xf32, #tpu.memory_space<vmem>>, %arg13: memref<32x128xbf16, #tpu.memory_space<vmem>>, %arg14: memref<1x128xf32, #tpu.memory_space<vmem>>, %arg15: memref<2x32x32xbf16, #tpu.memory_space<vmem>>, %arg16: memref<2x1x32xf32, #tpu.memory_space<vmem>>, %arg17: memref<2x32x32xbf16, #tpu.memory_space<vmem>>, %arg18: memref<2x1x32xf32, #tpu.memory_space<vmem>>, %arg19: memref<2x32x32xbf16, #tpu.memory_space<vmem>>, %arg20: memref<2x1x32xf32, #tpu.memory_space<vmem>>, %arg21: memref<2x32x32xbf16, #tpu.memory_space<vmem>>, %arg22: memref<2x1x32xf32, #tpu.memory_space<vmem>>, %arg23: memref<2x1x32xf32, #tpu.memory_space<vmem>>, %arg24: memref<2x1x32xf32, #tpu.memory_space<vmem>>, %arg25: memref<2x32x64xbf16, #tpu.memory_space<vmem>>, %arg26: memref<2x1x64xf32, #tpu.memory_space<vmem>>, %arg27: memref<2x64x32xbf16, #tpu.memory_space<vmem>>, %arg28: memref<2x1x32xf32, #tpu.memory_space<vmem>>, %arg29: memref<2x1x32xf32, #tpu.memory_space<vmem>>, %arg30: memref<2x1x32xf32, #tpu.memory_space<vmem>>, %arg31: memref<16x128xf32, #tpu.memory_space<vmem>>, %arg32: memref<2x9x32xf32, #tpu.memory_space<vmem>>) attributes {dimension_semantics = [], scalar_prefetch = 0 : i64, scratch_operands = 1 : i64, tpu.core_type = #tpu.core_type<tc>} {
    %c0 = arith.constant 0 : index
    %c0_0 = arith.constant 0 : index
    %0 = vector.load %arg0[%c0, %c0_0] : memref<16x16xf32, #tpu.memory_space<vmem>>, vector<16x16xf32>
    %c0_1 = arith.constant 0 : index
    %c0_2 = arith.constant 0 : index
    %1 = vector.load %arg5[%c0_1, %c0_2] : memref<16x32xbf16, #tpu.memory_space<vmem>>, vector<16x32xbf16>
    %2 = arith.truncf %0 : vector<16x16xf32> to vector<16x16xbf16>
    %cst = arith.constant dense<0.000000e+00> : vector<16x32xf32>
    %3 = tpu.matmul %2, %1, %cst {dimension_numbers = #tpu.dot_dimension_numbers<[1], [0], [0], [1], [0, 0, 1, 1], [], []>} : vector<16x16xbf16>, vector<16x32xbf16>, vector<16x32xf32> -> vector<16x32xf32>
    %c0_3 = arith.constant 0 : index
    %c0_4 = arith.constant 0 : index
    %4 = vector.load %arg6[%c0_3, %c0_4] : memref<1x32xf32, #tpu.memory_space<vmem>>, vector<1x32xf32>
    %5 = vector.broadcast %4 : vector<1x32xf32> to vector<16x32xf32>
    %6 = arith.addf %3, %5 : vector<16x32xf32>
    %7 = vector.shape_cast %6 : vector<16x32xf32> to vector<2x8x32xf32>
    %c0_5 = arith.constant 0 : index
    %c0_6 = arith.constant 0 : index
    %8 = vector.load %arg4[%c0_5, %c0_6] : memref<8x32xf32, #tpu.memory_space<vmem>>, vector<8x32xf32>
    %9 = vector.shape_cast %8 : vector<8x32xf32> to vector<1x8x32xf32>
    %10 = vector.broadcast %9 : vector<1x8x32xf32> to vector<2x8x32xf32>
    %11 = arith.addf %7, %10 : vector<2x8x32xf32>
    %c0_7 = arith.constant 0 : index
    %c0_8 = arith.constant 0 : index
    %12 = vector.load %arg1[%c0_7, %c0_8] : memref<2x32xf32, #tpu.memory_space<vmem>>, vector<2x32xf32>
    %c0_9 = arith.constant 0 : index
    %c0_10 = arith.constant 0 : index
    %13 = vector.load %arg7[%c0_9, %c0_10] : memref<32x32xbf16, #tpu.memory_space<vmem>>, vector<32x32xbf16>
    %14 = arith.truncf %12 : vector<2x32xf32> to vector<2x32xbf16>
    %cst_11 = arith.constant dense<0.000000e+00> : vector<2x32xf32>
    %15 = tpu.matmul %14, %13, %cst_11 {dimension_numbers = #tpu.dot_dimension_numbers<[1], [0], [0], [1], [0, 0, 1, 1], [], []>} : vector<2x32xbf16>, vector<32x32xbf16>, vector<2x32xf32> -> vector<2x32xf32>
    %c0_12 = arith.constant 0 : index
    %c0_13 = arith.constant 0 : index
    %16 = vector.load %arg8[%c0_12, %c0_13] : memref<1x32xf32, #tpu.memory_space<vmem>>, vector<1x32xf32>
    %17 = vector.broadcast %16 : vector<1x32xf32> to vector<2x32xf32>
    %18 = arith.addf %15, %17 : vector<2x32xf32>
    %19 = arith.negf %18 : vector<2x32xf32>
    %20 = math.exp %19 : vector<2x32xf32>
    %cst_14 = arith.constant 1.000000e+00 : f32
    %21 = vector.broadcast %cst_14 : f32 to vector<2x32xf32>
    %22 = arith.addf %21, %20 : vector<2x32xf32>
    %23 = arith.divf %21, %22 : vector<2x32xf32>
    %24 = arith.mulf %18, %23 : vector<2x32xf32>
    %c0_15 = arith.constant 0 : index
    %c0_16 = arith.constant 0 : index
    %25 = vector.load %arg9[%c0_15, %c0_16] : memref<32x32xbf16, #tpu.memory_space<vmem>>, vector<32x32xbf16>
    %26 = arith.truncf %24 : vector<2x32xf32> to vector<2x32xbf16>
    %cst_17 = arith.constant dense<0.000000e+00> : vector<2x32xf32>
    %27 = tpu.matmul %26, %25, %cst_17 {dimension_numbers = #tpu.dot_dimension_numbers<[1], [0], [0], [1], [0, 0, 1, 1], [], []>} : vector<2x32xbf16>, vector<32x32xbf16>, vector<2x32xf32> -> vector<2x32xf32>
    %c0_18 = arith.constant 0 : index
    %c0_19 = arith.constant 0 : index
    %28 = vector.load %arg10[%c0_18, %c0_19] : memref<1x32xf32, #tpu.memory_space<vmem>>, vector<1x32xf32>
    %29 = vector.broadcast %28 : vector<1x32xf32> to vector<2x32xf32>
    %30 = arith.addf %27, %29 : vector<2x32xf32>
    %c0_20 = arith.constant 0 : index
    %c0_21 = arith.constant 0 : index
    %31 = vector.load %arg3[%c0_20, %c0_21] : memref<1x32xf32, #tpu.memory_space<vmem>>, vector<1x32xf32>
    %c0_22 = arith.constant 0 : index
    %c0_23 = arith.constant 0 : index
    %32 = vector.load %arg2[%c0_22, %c0_23] : memref<2x48xf32, #tpu.memory_space<vmem>>, vector<2x48xf32>
    %c0_24 = arith.constant 0 : index
    %c0_25 = arith.constant 0 : index
    %33 = vector.load %arg11[%c0_24, %c0_25] : memref<48x32xbf16, #tpu.memory_space<vmem>>, vector<48x32xbf16>
    %34 = arith.truncf %32 : vector<2x48xf32> to vector<2x48xbf16>
    %cst_26 = arith.constant dense<0.000000e+00> : vector<2x32xf32>
    %35 = tpu.matmul %34, %33, %cst_26 {dimension_numbers = #tpu.dot_dimension_numbers<[1], [0], [0], [1], [0, 0, 1, 1], [], []>} : vector<2x48xbf16>, vector<48x32xbf16>, vector<2x32xf32> -> vector<2x32xf32>
    %c0_27 = arith.constant 0 : index
    %c0_28 = arith.constant 0 : index
    %36 = vector.load %arg12[%c0_27, %c0_28] : memref<1x32xf32, #tpu.memory_space<vmem>>, vector<1x32xf32>
    %37 = vector.broadcast %36 : vector<1x32xf32> to vector<2x32xf32>
    %38 = arith.addf %35, %37 : vector<2x32xf32>
    %39 = arith.addf %30, %38 : vector<2x32xf32>
    %40 = vector.broadcast %31 : vector<1x32xf32> to vector<2x32xf32>
    %41 = arith.addf %39, %40 : vector<2x32xf32>
    %c0_29 = arith.constant 0 : index
    %c0_30 = arith.constant 0 : index
    %c0_31 = arith.constant 0 : index
    %42 = vector.load %arg32[%c0_29, %c0_30, %c0_31] : memref<2x9x32xf32, #tpu.memory_space<vmem>>, vector<2x8x32xf32>
    tpu.vector_store %arg32[%c0_29, %c0_30, %c0_31], %11 {strides = array<i32>} : memref<2x9x32xf32, #tpu.memory_space<vmem>>, vector<2x8x32xf32>,
    %43 = vector.shape_cast %41 : vector<2x32xf32> to vector<2x1x32xf32>
    %c0_32 = arith.constant 0 : index
    %c8 = arith.constant 8 : index
    %c0_33 = arith.constant 0 : index
    %44 = vector.load %arg32[%c0_32, %c8, %c0_33] : memref<2x9x32xf32, #tpu.memory_space<vmem>>, vector<2x1x32xf32>
    tpu.vector_store %arg32[%c0_32, %c8, %c0_33], %43 {strides = array<i32>} : memref<2x9x32xf32, #tpu.memory_space<vmem>>, vector<2x1x32xf32>,
    %c0_34 = arith.constant 0 : index
    %c0_35 = arith.constant 0 : index
    %c0_36 = arith.constant 0 : index
    %45 = vector.load %arg32[%c0_34, %c0_35, %c0_36] : memref<2x9x32xf32, #tpu.memory_space<vmem>>, vector<2x9x32xf32>
    %46 = vector.shape_cast %45 : vector<2x9x32xf32> to vector<18x32xf32>
    %c0_i32 = arith.constant 0 : i32
    %c2_i32 = arith.constant 2 : i32
    %47 = arith.addi %c0_i32, %c2_i32 : i32
    %c1_i32 = arith.constant 1 : i32
    %48 = scf.for %arg33 = %c0_i32 to %47 step %c1_i32 iter_args(%arg34 = %46) -> (vector<18x32xf32>)  : i32 {
      %59 = arith.truncf %arg34 : vector<18x32xf32> to vector<18x32xbf16>
      %60 = arith.index_cast %arg33 : i32 to index
      %c0_45 = arith.constant 0 : index
      %c0_46 = arith.constant 0 : index
      %61 = vector.load %arg15[%60, %c0_45, %c0_46] : memref<2x32x32xbf16, #tpu.memory_space<vmem>>, vector<1x32x32xbf16>
      %62 = vector.shape_cast %61 : vector<1x32x32xbf16> to vector<32x32xbf16>
      %cst_47 = arith.constant dense<0.000000e+00> : vector<18x32xf32>
      %63 = tpu.matmul %59, %62, %cst_47 {dimension_numbers = #tpu.dot_dimension_numbers<[1], [0], [0], [1], [0, 0, 1, 1], [], []>} : vector<18x32xbf16>, vector<32x32xbf16>, vector<18x32xf32> -> vector<18x32xf32>
      %64 = arith.index_cast %arg33 : i32 to index
      %c0_48 = arith.constant 0 : index
      %c0_49 = arith.constant 0 : index
      %65 = vector.load %arg16[%64, %c0_48, %c0_49] : memref<2x1x32xf32, #tpu.memory_space<vmem>>, vector<1x1x32xf32>
      %66 = vector.shape_cast %65 : vector<1x1x32xf32> to vector<1x32xf32>
      %67 = vector.broadcast %66 : vector<1x32xf32> to vector<18x32xf32>
      %68 = arith.addf %63, %67 : vector<18x32xf32>
      %69 = arith.index_cast %arg33 : i32 to index
      %c0_50 = arith.constant 0 : index
      %c0_51 = arith.constant 0 : index
      %70 = vector.load %arg17[%69, %c0_50, %c0_51] : memref<2x32x32xbf16, #tpu.memory_space<vmem>>, vector<1x32x32xbf16>
      %71 = vector.shape_cast %70 : vector<1x32x32xbf16> to vector<32x32xbf16>
      %cst_52 = arith.constant dense<0.000000e+00> : vector<18x32xf32>
      %72 = tpu.matmul %59, %71, %cst_52 {dimension_numbers = #tpu.dot_dimension_numbers<[1], [0], [0], [1], [0, 0, 1, 1], [], []>} : vector<18x32xbf16>, vector<32x32xbf16>, vector<18x32xf32> -> vector<18x32xf32>
      %73 = arith.index_cast %arg33 : i32 to index
      %c0_53 = arith.constant 0 : index
      %c0_54 = arith.constant 0 : index
      %74 = vector.load %arg18[%73, %c0_53, %c0_54] : memref<2x1x32xf32, #tpu.memory_space<vmem>>, vector<1x1x32xf32>
      %75 = vector.shape_cast %74 : vector<1x1x32xf32> to vector<1x32xf32>
      %76 = vector.broadcast %75 : vector<1x32xf32> to vector<18x32xf32>
      %77 = arith.addf %72, %76 : vector<18x32xf32>
      %78 = arith.index_cast %arg33 : i32 to index
      %c0_55 = arith.constant 0 : index
      %c0_56 = arith.constant 0 : index
      %79 = vector.load %arg19[%78, %c0_55, %c0_56] : memref<2x32x32xbf16, #tpu.memory_space<vmem>>, vector<1x32x32xbf16>
      %80 = vector.shape_cast %79 : vector<1x32x32xbf16> to vector<32x32xbf16>
      %cst_57 = arith.constant dense<0.000000e+00> : vector<18x32xf32>
      %81 = tpu.matmul %59, %80, %cst_57 {dimension_numbers = #tpu.dot_dimension_numbers<[1], [0], [0], [1], [0, 0, 1, 1], [], []>} : vector<18x32xbf16>, vector<32x32xbf16>, vector<18x32xf32> -> vector<18x32xf32>
      %82 = arith.index_cast %arg33 : i32 to index
      %c0_58 = arith.constant 0 : index
      %c0_59 = arith.constant 0 : index
      %83 = vector.load %arg20[%82, %c0_58, %c0_59] : memref<2x1x32xf32, #tpu.memory_space<vmem>>, vector<1x1x32xf32>
      %84 = vector.shape_cast %83 : vector<1x1x32xf32> to vector<1x32xf32>
      %85 = vector.broadcast %84 : vector<1x32xf32> to vector<18x32xf32>
      %86 = arith.addf %81, %85 : vector<18x32xf32>
      %87 = vector.shape_cast %68 : vector<18x32xf32> to vector<2x9x4x8xf32>
      %88 = tpu.transpose %87, [0, 2, 1, 3] : vector<2x9x4x8xf32> -> vector<2x4x9x8xf32>
      %89 = vector.shape_cast %88 : vector<2x4x9x8xf32> to vector<8x9x8xf32>
      %90 = arith.truncf %89 : vector<8x9x8xf32> to vector<8x9x8xbf16>
      %91 = vector.shape_cast %77 : vector<18x32xf32> to vector<2x9x4x8xf32>
      %92 = tpu.transpose %91, [0, 2, 1, 3] : vector<2x9x4x8xf32> -> vector<2x4x9x8xf32>
      %93 = vector.shape_cast %92 : vector<2x4x9x8xf32> to vector<8x9x8xf32>
      %94 = arith.truncf %93 : vector<8x9x8xf32> to vector<8x9x8xbf16>
      %95 = vector.shape_cast %86 : vector<18x32xf32> to vector<2x9x4x8xf32>
      %96 = tpu.transpose %95, [0, 2, 1, 3] : vector<2x9x4x8xf32> -> vector<2x4x9x8xf32>
      %97 = vector.shape_cast %96 : vector<2x4x9x8xf32> to vector<8x9x8xf32>
      %98 = arith.truncf %97 : vector<8x9x8xf32> to vector<8x9x8xbf16>
      "tpu.trace_start"() <{level = 10 : i32, message = "bqd,bkd->bqk"}> : () -> ()
      %cst_60 = arith.constant dense<0.000000e+00> : vector<8x9x9xf32>
      %99 = tpu.matmul %90, %94, %cst_60 {dimension_numbers = #tpu.dot_dimension_numbers<[2], [2], [1], [1], [0, 0, 0, 1, 1, 1], [0], [0]>} : vector<8x9x8xbf16>, vector<8x9x8xbf16>, vector<8x9x9xf32> -> vector<8x9x9xf32>
      "tpu.trace_stop"() : () -> ()
      %cst_61 = arith.constant dense<0xFF800000> : vector<8x9xf32>
      %100 = vector.multi_reduction <maximumf>, %99, %cst_61 [2] : vector<8x9x9xf32> to vector<8x9xf32>
      %101 = vector.shape_cast %100 : vector<8x9xf32> to vector<8x9x1xf32>
      %102 = vector.broadcast %101 : vector<8x9x1xf32> to vector<8x9x9xf32>
      %103 = arith.subf %99, %102 : vector<8x9x9xf32>
      %104 = math.exp %103 : vector<8x9x9xf32>
      %cst_62 = arith.constant dense<0.000000e+00> : vector<8x9xf32>
      %105 = vector.multi_reduction <add>, %104, %cst_62 [2] : vector<8x9x9xf32> to vector<8x9xf32>
      %106 = vector.shape_cast %105 : vector<8x9xf32> to vector<8x9x1xf32>
      %107 = tpu.reciprocal %106 {approx = true} : vector<8x9x1xf32> -> vector<8x9x1xf32>
      %108 = vector.broadcast %107 : vector<8x9x1xf32> to vector<8x9x9xf32>
      %109 = arith.mulf %104, %108 : vector<8x9x9xf32>
      %110 = arith.truncf %109 : vector<8x9x9xf32> to vector<8x9x9xbf16>
      "tpu.trace_start"() <{level = 10 : i32, message = "bqk,bkd->bqd"}> : () -> ()
      %cst_63 = arith.constant dense<0.000000e+00> : vector<8x9x8xf32>
      %111 = tpu.matmul %110, %98, %cst_63 {dimension_numbers = #tpu.dot_dimension_numbers<[2], [1], [1], [2], [0, 0, 0, 1, 1, 2], [0], [0]>} : vector<8x9x9xbf16>, vector<8x9x8xbf16>, vector<8x9x8xf32> -> vector<8x9x8xf32>
      "tpu.trace_stop"() : () -> ()
      %112 = vector.shape_cast %111 : vector<8x9x8xf32> to vector<2x4x9x8xf32>
      %113 = tpu.transpose %112, [0, 2, 1, 3] : vector<2x4x9x8xf32> -> vector<2x9x4x8xf32>
      %114 = vector.shape_cast %113 : vector<2x9x4x8xf32> to vector<18x32xf32>
      %115 = arith.index_cast %arg33 : i32 to index
      %c0_64 = arith.constant 0 : index
      %c0_65 = arith.constant 0 : index
      %116 = vector.load %arg21[%115, %c0_64, %c0_65] : memref<2x32x32xbf16, #tpu.memory_space<vmem>>, vector<1x32x32xbf16>
      %117 = vector.shape_cast %116 : vector<1x32x32xbf16> to vector<32x32xbf16>
      %118 = arith.truncf %114 : vector<18x32xf32> to vector<18x32xbf16>
      %cst_66 = arith.constant dense<0.000000e+00> : vector<18x32xf32>
      %119 = tpu.matmul %118, %117, %cst_66 {dimension_numbers = #tpu.dot_dimension_numbers<[1], [0], [0], [1], [0, 0, 1, 1], [], []>} : vector<18x32xbf16>, vector<32x32xbf16>, vector<18x32xf32> -> vector<18x32xf32>
      %120 = arith.index_cast %arg33 : i32 to index
      %c0_67 = arith.constant 0 : index
      %c0_68 = arith.constant 0 : index
      %121 = vector.load %arg22[%120, %c0_67, %c0_68] : memref<2x1x32xf32, #tpu.memory_space<vmem>>, vector<1x1x32xf32>
      %122 = vector.shape_cast %121 : vector<1x1x32xf32> to vector<1x32xf32>
      %123 = vector.broadcast %122 : vector<1x32xf32> to vector<18x32xf32>
      %124 = arith.addf %119, %123 : vector<18x32xf32>
      %125 = arith.addf %arg34, %124 : vector<18x32xf32>
      %126 = arith.index_cast %arg33 : i32 to index
      %c0_69 = arith.constant 0 : index
      %c0_70 = arith.constant 0 : index
      %127 = vector.load %arg23[%126, %c0_69, %c0_70] : memref<2x1x32xf32, #tpu.memory_space<vmem>>, vector<1x1x32xf32>
      %128 = vector.shape_cast %127 : vector<1x1x32xf32> to vector<1x32xf32>
      %129 = arith.index_cast %arg33 : i32 to index
      %c0_71 = arith.constant 0 : index
      %c0_72 = arith.constant 0 : index
      %130 = vector.load %arg24[%129, %c0_71, %c0_72] : memref<2x1x32xf32, #tpu.memory_space<vmem>>, vector<1x1x32xf32>
      %131 = vector.shape_cast %130 : vector<1x1x32xf32> to vector<1x32xf32>
      %cst_73 = arith.constant dense<0.000000e+00> : vector<18xf32>
      %132 = vector.multi_reduction <add>, %125, %cst_73 [1] : vector<18x32xf32> to vector<18xf32>
      %133 = vector.shape_cast %132 : vector<18xf32> to vector<18x1xf32>
      %cst_74 = arith.constant 3.200000e+01 : f32
      %134 = vector.broadcast %cst_74 : f32 to vector<18x1xf32>
      %135 = arith.divf %133, %134 : vector<18x1xf32>
      %136 = vector.broadcast %135 : vector<18x1xf32> to vector<18x32xf32>
      %137 = arith.subf %125, %136 : vector<18x32xf32>
      %138 = arith.mulf %137, %137 : vector<18x32xf32>
      %cst_75 = arith.constant dense<0.000000e+00> : vector<18xf32>
      %139 = vector.multi_reduction <add>, %138, %cst_75 [1] : vector<18x32xf32> to vector<18xf32>
      %140 = vector.shape_cast %139 : vector<18xf32> to vector<18x1xf32>
      %cst_76 = arith.constant 3.200000e+01 : f32
      %141 = vector.broadcast %cst_76 : f32 to vector<18x1xf32>
      %142 = arith.divf %140, %141 : vector<18x1xf32>
      %cst_77 = arith.constant 9.99999974E-6 : f32
      %143 = vector.broadcast %cst_77 : f32 to vector<18x1xf32>
      %144 = arith.addf %142, %143 : vector<18x1xf32>
      %145 = math.rsqrt %144 : vector<18x1xf32>
      %146 = vector.broadcast %145 : vector<18x1xf32> to vector<18x32xf32>
      %147 = arith.mulf %137, %146 : vector<18x32xf32>
      %148 = vector.broadcast %128 : vector<1x32xf32> to vector<18x32xf32>
      %149 = arith.mulf %147, %148 : vector<18x32xf32>
      %150 = vector.broadcast %131 : vector<1x32xf32> to vector<18x32xf32>
      %151 = arith.addf %149, %150 : vector<18x32xf32>
      %152 = arith.index_cast %arg33 : i32 to index
      %c0_78 = arith.constant 0 : index
      %c0_79 = arith.constant 0 : index
      %153 = vector.load %arg25[%152, %c0_78, %c0_79] : memref<2x32x64xbf16, #tpu.memory_space<vmem>>, vector<1x32x64xbf16>
      %154 = vector.shape_cast %153 : vector<1x32x64xbf16> to vector<32x64xbf16>
      %155 = arith.truncf %151 : vector<18x32xf32> to vector<18x32xbf16>
      %cst_80 = arith.constant dense<0.000000e+00> : vector<18x64xf32>
      %156 = tpu.matmul %155, %154, %cst_80 {dimension_numbers = #tpu.dot_dimension_numbers<[1], [0], [0], [1], [0, 0, 1, 1], [], []>} : vector<18x32xbf16>, vector<32x64xbf16>, vector<18x64xf32> -> vector<18x64xf32>
      %157 = arith.index_cast %arg33 : i32 to index
      %c0_81 = arith.constant 0 : index
      %c0_82 = arith.constant 0 : index
      %158 = vector.load %arg26[%157, %c0_81, %c0_82] : memref<2x1x64xf32, #tpu.memory_space<vmem>>, vector<1x1x64xf32>
      %159 = vector.shape_cast %158 : vector<1x1x64xf32> to vector<1x64xf32>
      %160 = vector.broadcast %159 : vector<1x64xf32> to vector<18x64xf32>
      %161 = arith.addf %156, %160 : vector<18x64xf32>
      %cst_83 = arith.constant 5.000000e-01 : f32
      %162 = vector.broadcast %cst_83 : f32 to vector<18x64xf32>
      %163 = arith.mulf %162, %161 : vector<18x64xf32>
      %cst_84 = arith.constant 4.471500e-02 : f32
      %164 = vector.broadcast %cst_84 : f32 to vector<18x64xf32>
      %165 = arith.mulf %164, %161 : vector<18x64xf32>
      %166 = arith.mulf %165, %161 : vector<18x64xf32>
      %167 = arith.mulf %166, %161 : vector<18x64xf32>
      %168 = arith.addf %161, %167 : vector<18x64xf32>
      %cst_85 = arith.constant 0.797884583 : f32
      %169 = vector.broadcast %cst_85 : f32 to vector<18x64xf32>
      %170 = arith.mulf %169, %168 : vector<18x64xf32>
      %171 = math.tanh %170 : vector<18x64xf32>
      %cst_86 = arith.constant 1.000000e+00 : f32
      %172 = vector.broadcast %cst_86 : f32 to vector<18x64xf32>
      %173 = arith.addf %172, %171 : vector<18x64xf32>
      %174 = arith.mulf %163, %173 : vector<18x64xf32>
      %175 = arith.index_cast %arg33 : i32 to index
      %c0_87 = arith.constant 0 : index
      %c0_88 = arith.constant 0 : index
      %176 = vector.load %arg27[%175, %c0_87, %c0_88] : memref<2x64x32xbf16, #tpu.memory_space<vmem>>, vector<1x64x32xbf16>
      %177 = vector.shape_cast %176 : vector<1x64x32xbf16> to vector<64x32xbf16>
      %178 = arith.truncf %174 : vector<18x64xf32> to vector<18x64xbf16>
      %cst_89 = arith.constant dense<0.000000e+00> : vector<18x32xf32>
      %179 = tpu.matmul %178, %177, %cst_89 {dimension_numbers = #tpu.dot_dimension_numbers<[1], [0], [0], [1], [0, 0, 1, 1], [], []>} : vector<18x64xbf16>, vector<64x32xbf16>, vector<18x32xf32> -> vector<18x32xf32>
      %180 = arith.index_cast %arg33 : i32 to index
      %c0_90 = arith.constant 0 : index
      %c0_91 = arith.constant 0 : index
      %181 = vector.load %arg28[%180, %c0_90, %c0_91] : memref<2x1x32xf32, #tpu.memory_space<vmem>>, vector<1x1x32xf32>
      %182 = vector.shape_cast %181 : vector<1x1x32xf32> to vector<1x32xf32>
      %183 = vector.broadcast %182 : vector<1x32xf32> to vector<18x32xf32>
      %184 = arith.addf %179, %183 : vector<18x32xf32>
      %185 = arith.addf %151, %184 : vector<18x32xf32>
      %186 = arith.index_cast %arg33 : i32 to index
      %c0_92 = arith.constant 0 : index
      %c0_93 = arith.constant 0 : index
      %187 = vector.load %arg29[%186, %c0_92, %c0_93] : memref<2x1x32xf32, #tpu.memory_space<vmem>>, vector<1x1x32xf32>
      %188 = vector.shape_cast %187 : vector<1x1x32xf32> to vector<1x32xf32>
      %189 = arith.index_cast %arg33 : i32 to index
      %c0_94 = arith.constant 0 : index
      %c0_95 = arith.constant 0 : index
      %190 = vector.load %arg30[%189, %c0_94, %c0_95] : memref<2x1x32xf32, #tpu.memory_space<vmem>>, vector<1x1x32xf32>
      %191 = vector.shape_cast %190 : vector<1x1x32xf32> to vector<1x32xf32>
      %cst_96 = arith.constant dense<0.000000e+00> : vector<18xf32>
      %192 = vector.multi_reduction <add>, %185, %cst_96 [1] : vector<18x32xf32> to vector<18xf32>
      %193 = vector.shape_cast %192 : vector<18xf32> to vector<18x1xf32>
      %cst_97 = arith.constant 3.200000e+01 : f32
      %194 = vector.broadcast %cst_97 : f32 to vector<18x1xf32>
      %195 = arith.divf %193, %194 : vector<18x1xf32>
      %196 = vector.broadcast %195 : vector<18x1xf32> to vector<18x32xf32>
      %197 = arith.subf %185, %196 : vector<18x32xf32>
      %198 = arith.mulf %197, %197 : vector<18x32xf32>
      %cst_98 = arith.constant dense<0.000000e+00> : vector<18xf32>
      %199 = vector.multi_reduction <add>, %198, %cst_98 [1] : vector<18x32xf32> to vector<18xf32>
      %200 = vector.shape_cast %199 : vector<18xf32> to vector<18x1xf32>
      %cst_99 = arith.constant 3.200000e+01 : f32
      %201 = vector.broadcast %cst_99 : f32 to vector<18x1xf32>
      %202 = arith.divf %200, %201 : vector<18x1xf32>
      %cst_100 = arith.constant 9.99999974E-6 : f32
      %203 = vector.broadcast %cst_100 : f32 to vector<18x1xf32>
      %204 = arith.addf %202, %203 : vector<18x1xf32>
      %205 = math.rsqrt %204 : vector<18x1xf32>
      %206 = vector.broadcast %205 : vector<18x1xf32> to vector<18x32xf32>
      %207 = arith.mulf %197, %206 : vector<18x32xf32>
      %208 = vector.broadcast %188 : vector<1x32xf32> to vector<18x32xf32>
      %209 = arith.mulf %207, %208 : vector<18x32xf32>
      %210 = vector.broadcast %191 : vector<1x32xf32> to vector<18x32xf32>
      %211 = arith.addf %209, %210 : vector<18x32xf32>
      scf.yield %211 : vector<18x32xf32>
    }
    %c2_i32_37 = arith.constant 2 : i32
    %49 = vector.shape_cast %48 : vector<18x32xf32> to vector<2x9x32xf32>
    %50 = vector.extract_strided_slice %49 {offsets = [0, 0, 0], sizes = [2, 8, 32], strides = [1, 1, 1]} : vector<2x9x32xf32> to vector<2x8x32xf32>
    %51 = vector.shape_cast %50 : vector<2x8x32xf32> to vector<16x32xf32>
    %c0_38 = arith.constant 0 : index
    %c0_39 = arith.constant 0 : index
    %52 = vector.load %arg13[%c0_38, %c0_39] : memref<32x128xbf16, #tpu.memory_space<vmem>>, vector<32x128xbf16>
    %53 = arith.truncf %51 : vector<16x32xf32> to vector<16x32xbf16>
    %cst_40 = arith.constant dense<0.000000e+00> : vector<16x128xf32>
    %54 = tpu.matmul %53, %52, %cst_40 {dimension_numbers = #tpu.dot_dimension_numbers<[1], [0], [0], [1], [0, 0, 1, 1], [], []>} : vector<16x32xbf16>, vector<32x128xbf16>, vector<16x128xf32> -> vector<16x128xf32>
    %c0_41 = arith.constant 0 : index
    %c0_42 = arith.constant 0 : index
    %55 = vector.load %arg14[%c0_41, %c0_42] : memref<1x128xf32, #tpu.memory_space<vmem>>, vector<1x128xf32>
    %56 = vector.broadcast %55 : vector<1x128xf32> to vector<16x128xf32>
    %57 = arith.addf %54, %56 : vector<16x128xf32>
    %c0_43 = arith.constant 0 : index
    %c0_44 = arith.constant 0 : index
    %58 = vector.load %arg31[%c0_43, %c0_44] : memref<16x128xf32, #tpu.memory_space<vmem>>, vector<16x128xf32>
    tpu.vector_store %arg31[%c0_43, %c0_44], %57 {strides = array<i32>} : memref<16x128xf32, #tpu.memory_space<vmem>>, vector<16x128xf32>,
    return
  }
}

</mosaic_0001>

<llo_original>
// kernel: mdm_forward.1
$region0: #{mdm_forward.1}
  #allocation0 [shape = 'u32[]', space=smem, size = 0x4, offset = 0x4, fixed_abs, tag = 'smem constant byte address 0x4 - core index']
  #allocation1 [shape = 'u32[144,128]{1,0:T(1,128)}', space=vmem, size = 0x12000, scoped, tag = 'internal scratch']
  #allocation2 [shape = 'f32[2,9,32]{2,1,0:T(8,128)}', space=vmem, size = 0x4000, scoped, tag = 'scratch operand']
  %s0 = inlined_call_operand.smem [shape: u32[32], index: -1, kind: input, shape index: {}]
  %s1 = sld [smem:[%s0]]
  %s2 = scalar_lea.smem %s0, 1
  %s3 = sld [smem:[%s2]]
  %s4 = scalar_lea.smem %s0, 2
  %s5 = sld [smem:[%s4]]
  %s6 = scalar_lea.smem %s0, 3
  %s7 = sld [smem:[%s6]]
  %s8 = scalar_lea.smem %s0, 4
  %s9 = sld [smem:[%s8]]
  %s10 = scalar_lea.smem %s0, 5
  %s11 = sld [smem:[%s10]]
  %s12 = scalar_lea.smem %s0, 6
  %s13 = sld [smem:[%s12]]
  %s14 = scalar_lea.smem %s0, 7
  %s15 = sld [smem:[%s14]]
  %s16 = scalar_lea.smem %s0, 8
  %s17 = sld [smem:[%s16]]
  %s18 = scalar_lea.smem %s0, 9
  %s19 = sld [smem:[%s18]]
  %s20 = scalar_lea.smem %s0, 10
  %s21 = sld [smem:[%s20]]
  %s22 = scalar_lea.smem %s0, 11
  %s23 = sld [smem:[%s22]]
  %s24 = scalar_lea.smem %s0, 12
  %s25 = sld [smem:[%s24]]
  %s26 = scalar_lea.smem %s0, 13
  %s27 = sld [smem:[%s26]]
  %s28 = scalar_lea.smem %s0, 14
  %s29 = sld [smem:[%s28]]
  %s30 = scalar_lea.smem %s0, 15
  %s31 = sld [smem:[%s30]]
  %s32 = scalar_lea.smem %s0, 16
  %s33 = sld [smem:[%s32]]
  %s34 = scalar_lea.smem %s0, 17
  %s35 = sld [smem:[%s34]]
  %s36 = scalar_lea.smem %s0, 18
  %s37 = sld [smem:[%s36]]
  %s38 = scalar_lea.smem %s0, 19
  %s39 = sld [smem:[%s38]]
  %s40 = scalar_lea.smem %s0, 20
  %s41 = sld [smem:[%s40]]
  %s42 = scalar_lea.smem %s0, 21
  %s43 = sld [smem:[%s42]]
  %s44 = scalar_lea.smem %s0, 22
  %s45 = sld [smem:[%s44]]
  %s46 = scalar_lea.smem %s0, 23
  %s47 = sld [smem:[%s46]]
  %s48 = scalar_lea.smem %s0, 24
  %s49 = sld [smem:[%s48]]
  %s50 = scalar_lea.smem %s0, 25
  %s51 = sld [smem:[%s50]]
  %s52 = scalar_lea.smem %s0, 26
  %s53 = sld [smem:[%s52]]
  %s54 = scalar_lea.smem %s0, 27
  %s55 = sld [smem:[%s54]]
  %s56 = scalar_lea.smem %s0, 28
  %s57 = sld [smem:[%s56]]
  %s58 = scalar_lea.smem %s0, 29
  %s59 = sld [smem:[%s58]]
  %s60 = scalar_lea.smem %s0, 30
  %s61 = sld [smem:[%s60]]
  %s62 = scalar_lea.smem %s0, 31
  %s63 = sld [smem:[%s62]]
  %s64 = sld [smem:[#allocation0]]
  $region169: #{mdm_forward.1} parent=0
    _
  %s66 = ssub.s32 1, %s64
  %s67 = scalar_select 0, %s66, %s64
  $region1: #{mdm_forward.1} parent=0
    #allocation3 [shape = 'u8[1024]{0}', space=vmem, size = 0x400, scoped, tag = 'input window, operand 16, single buffered']
    #allocation4 [shape = 's32[1]{0}', space=sflag, size = 0x4, scoped, tag = 'scoped memory for mdm_forward.1']
    #allocation5 [shape = 'u8[1024]{0}', space=vmem, size = 0x400, scoped, tag = 'input window, operand 18, single buffered']
    #allocation6 [shape = 's32[1]{0}', space=sflag, size = 0x4, scoped, tag = 'scoped memory for mdm_forward.1']
    #allocation7 [shape = 'u8[1024]{0}', space=vmem, size = 0x400, scoped, tag = 'input window, operand 20, single buffered']
    #allocation8 [shape = 'u8[1024]{0}', space=vmem, size = 0x400, scoped, tag = 'input window, operand 23, single buffered']
    #allocation9 [shape = 's32[1]{0}', space=sflag, size = 0x4, scoped, tag = 'scoped memory for mdm_forward.1']
    #allocation10 [shape = 'u8[1024]{0}', space=vmem, size = 0x400, scoped, tag = 'input window, operand 24, single buffered']
    #allocation11 [shape = 'u8[1024]{0}', space=vmem, size = 0x400, scoped, tag = 'input window, operand 26, single buffered']
    #allocation12 [shape = 's32[1]{0}', space=sflag, size = 0x4, scoped, tag = 'scoped memory for mdm_forward.1']
    #allocation13 [shape = 'u8[1024]{0}', space=vmem, size = 0x400, scoped, tag = 'input window, operand 28, single buffered']
    %68 = vsyncpa [#allocation4], 0
    %69 = vsyncpa [#allocation6], 0
    %70 = vsyncpa [#allocation9], 0
    %71 = vsyncpa [#allocation12], 0
    // Predicated region
    $region2: #{mdm_forward.1} parent=1 // pred_check
      _
    $region3: #{mdm_forward.1} parent=1 // pred_check_branch
      %73 = sbr.rel (0) target = $region5
    $region4: #{mdm_forward.1} parent=1 // pred_region
      _
    $region5: #{mdm_forward.1} parent=1 // pred_fallthru
      _
    // Predicated region
    $region6: #{mdm_forward.1} parent=1 // pred_check
      _
    $region7: #{mdm_forward.1} parent=1 // pred_check_branch
      %75 = sbr.rel (0) target = $region9
    $region8: #{mdm_forward.1} parent=1 // pred_region
      _
    $region9: #{mdm_forward.1} parent=1 // pred_fallthru
      _
    // Predicated region
    $region10: #{mdm_forward.1} parent=1 // pred_check
      _
    $region11: #{mdm_forward.1} parent=1 // pred_check_branch
      %77 = sbr.rel (0) target = $region13
    $region12: #{mdm_forward.1} parent=1 // pred_region
      _
    $region13: #{mdm_forward.1} parent=1 // pred_fallthru
      _
    // Predicated region
    $region14: #{mdm_forward.1} parent=1 // pred_check
      _
    $region15: #{mdm_forward.1} parent=1 // pred_check_branch
      %79 = sbr.rel (0) target = $region17
    $region16: #{mdm_forward.1} parent=1 // pred_region
      _
    $region17: #{mdm_forward.1} parent=1 // pred_fallthru
      _
    // Predicated region
    $region18: #{mdm_forward.1} parent=1 // pred_check
      _
    $region19: #{mdm_forward.1} parent=1 // pred_check_branch
      %81 = sbr.rel (0) target = $region21
    $region20: #{mdm_forward.1} parent=1 // pred_region
      _
    $region21: #{mdm_forward.1} parent=1 // pred_fallthru
      _
    // Predicated region
    $region22: #{mdm_forward.1} parent=1 // pred_check
      _
    $region23: #{mdm_forward.1} parent=1 // pred_check_branch
      %83 = sbr.rel (0) target = $region25
    $region24: #{mdm_forward.1} parent=1 // pred_region
      _
    $region25: #{mdm_forward.1} parent=1 // pred_fallthru
      _
    // Predicated region
    $region26: #{mdm_forward.1} parent=1 // pred_check
      _
    $region27: #{mdm_forward.1} parent=1 // pred_check_branch
      %85 = sbr.rel (0) target = $region29
    $region28: #{mdm_forward.1} parent=1 // pred_region
      _
    $region29: #{mdm_forward.1} parent=1 // pred_fallthru
      _
    // Predicated region
    $region30: #{mdm_forward.1} parent=1 // pred_check
      _
    $region31: #{mdm_forward.1} parent=1 // pred_check_branch
      %87 = sbr.rel (0) target = $region33
    $region32: #{mdm_forward.1} parent=1 // pred_region
      _
    $region33: #{mdm_forward.1} parent=1 // pred_fallthru
      _
    // Predicated region
    $region34: #{mdm_forward.1} parent=1 // pred_check
      _
    $region35: #{mdm_forward.1} parent=1 // pred_check_branch
      %89 = sbr.rel (0) target = $region37
    $region36: #{mdm_forward.1} parent=1 // pred_region
      _
    $region37: #{mdm_forward.1} parent=1 // pred_fallthru
      _
    // Predicated region
    $region38: #{mdm_forward.1} parent=1 // pred_check
      _
    $region39: #{mdm_forward.1} parent=1 // pred_check_branch
      %91 = sbr.rel (0) target = $region41
    $region40: #{mdm_forward.1} parent=1 // pred_region
      _
    $region41: #{mdm_forward.1} parent=1 // pred_fallthru
      _
    // Predicated region
    $region42: #{mdm_forward.1} parent=1 // pred_check
      _
    $region43: #{mdm_forward.1} parent=1 // pred_check_branch
      %93 = sbr.rel (0) target = $region45
    $region44: #{mdm_forward.1} parent=1 // pred_region
      _
    $region45: #{mdm_forward.1} parent=1 // pred_fallthru
      _
    // Predicated region
    $region46: #{mdm_forward.1} parent=1 // pred_check
      _
    $region47: #{mdm_forward.1} parent=1 // pred_check_branch
      %95 = sbr.rel (0) target = $region49
    $region48: #{mdm_forward.1} parent=1 // pred_region
      _
    $region49: #{mdm_forward.1} parent=1 // pred_fallthru
      _
    // Predicated region
    $region50: #{mdm_forward.1} parent=1 // pred_check
      _
    $region51: #{mdm_forward.1} parent=1 // pred_check_branch
      %97 = sbr.rel (0) target = $region53
    $region52: #{mdm_forward.1} parent=1 // pred_region
      _
    $region53: #{mdm_forward.1} parent=1 // pred_fallthru
      _
    // Predicated region
    $region54: #{mdm_forward.1} parent=1 // pred_check
      _
    $region55: #{mdm_forward.1} parent=1 // pred_check_branch
      %99 = sbr.rel (0) target = $region57
    $region56: #{mdm_forward.1} parent=1 // pred_region
      _
    $region57: #{mdm_forward.1} parent=1 // pred_fallthru
      _
    // Predicated region
    $region58: #{mdm_forward.1} parent=1 // pred_check
      _
    $region59: #{mdm_forward.1} parent=1 // pred_check_branch
      %101 = sbr.rel (0) target = $region61
    $region60: #{mdm_forward.1} parent=1 // pred_region
      _
    $region61: #{mdm_forward.1} parent=1 // pred_fallthru
      _
    // Predicated region
    $region62: #{mdm_forward.1} parent=1 // pred_check
      _
    $region63: #{mdm_forward.1} parent=1 // pred_check_branch
      %103 = sbr.rel (0) target = $region65
    $region64: #{mdm_forward.1} parent=1 // pred_region
      _
    $region65: #{mdm_forward.1} parent=1 // pred_fallthru
      _
    // Predicated region
    $region66: #{mdm_forward.1} parent=1 // pred_check
      _
    $region67: #{mdm_forward.1} parent=1 // pred_check_branch
      %105 = sbr.rel (0) target = $region69
    $region68: #{mdm_forward.1} parent=1 // pred_region
      %s107 = ssub.s32 32, 32
      %108 = vsyncadd [#allocation4], %s107
      %s109 = sshll.u32 [#allocation3], 4
      %s110 = int_to_ptr.vmem [resolvable:$true] %s109
      %115 = dma.hbm_to_vmem [thread:$0]  %s33, 32, %s110, [#allocation4], 16, 16, 1
    $region69: #{mdm_forward.1} parent=1 // pred_fallthru
      _
    // Predicated region
    $region70: #{mdm_forward.1} parent=1 // pred_check
      _
    $region71: #{mdm_forward.1} parent=1 // pred_check_branch
      %117 = sbr.rel (0) target = $region73
    $region72: #{mdm_forward.1} parent=1 // pred_region
      _
    $region73: #{mdm_forward.1} parent=1 // pred_fallthru
      _
    // Predicated region
    $region74: #{mdm_forward.1} parent=1 // pred_check
      _
    $region75: #{mdm_forward.1} parent=1 // pred_check_branch
      %119 = sbr.rel (0) target = $region77
    $region76: #{mdm_forward.1} parent=1 // pred_region
      %s121 = ssub.s32 32, 32
      %122 = vsyncadd [#allocation6], %s121
      %s123 = sshll.u32 [#allocation5], 4
      %s124 = int_to_ptr.vmem [resolvable:$true] %s123
      %129 = dma.hbm_to_vmem [thread:$0]  %s37, 32, %s124, [#allocation6], 16, 16, 1
    $region77: #{mdm_forward.1} parent=1 // pred_fallthru
      _
    // Predicated region
    $region78: #{mdm_forward.1} parent=1 // pred_check
      _
    $region79: #{mdm_forward.1} parent=1 // pred_check_branch
      %131 = sbr.rel (0) target = $region81
    $region80: #{mdm_forward.1} parent=1 // pred_region
      _
    $region81: #{mdm_forward.1} parent=1 // pred_fallthru
      _
    // Predicated region
    $region82: #{mdm_forward.1} parent=1 // pred_check
      _
    $region83: #{mdm_forward.1} parent=1 // pred_check_branch
      %133 = sbr.rel (0) target = $region85
    $region84: #{mdm_forward.1} parent=1 // pred_region
      %s135 = ssub.s32 32, 32
      %136 = vsyncadd [#allocation6], %s135
      %s137 = sshll.u32 [#allocation7], 4
      %s138 = int_to_ptr.vmem [resolvable:$true] %s137
      %143 = dma.hbm_to_vmem [thread:$0]  %s41, 32, %s138, [#allocation6], 16, 16, 1
    $region85: #{mdm_forward.1} parent=1 // pred_fallthru
      _
    // Predicated region
    $region86: #{mdm_forward.1} parent=1 // pred_check
      _
    $region87: #{mdm_forward.1} parent=1 // pred_check_branch
      %145 = sbr.rel (0) target = $region89
    $region88: #{mdm_forward.1} parent=1 // pred_region
      _
    $region89: #{mdm_forward.1} parent=1 // pred_fallthru
      _
    // Predicated region
    $region90: #{mdm_forward.1} parent=1 // pred_check
      _
    $region91: #{mdm_forward.1} parent=1 // pred_check_branch
      %147 = sbr.rel (0) target = $region93
    $region92: #{mdm_forward.1} parent=1 // pred_region
      _
    $region93: #{mdm_forward.1} parent=1 // pred_fallthru
      _
    // Predicated region
    $region94: #{mdm_forward.1} parent=1 // pred_check
      _
    $region95: #{mdm_forward.1} parent=1 // pred_check_branch
      %149 = sbr.rel (0) target = $region97
    $region96: #{mdm_forward.1} parent=1 // pred_region
      %s151 = ssub.s32 32, 32
      %152 = vsyncadd [#allocation9], %s151
      %s153 = sshll.u32 [#allocation8], 4
      %s154 = int_to_ptr.vmem [resolvable:$true] %s153
      %159 = dma.hbm_to_vmem [thread:$0]  %s47, 32, %s154, [#allocation9], 16, 16, 1
    $region97: #{mdm_forward.1} parent=1 // pred_fallthru
      _
    // Predicated region
    $region98: #{mdm_forward.1} parent=1 // pred_check
      _
    $region99: #{mdm_forward.1} parent=1 // pred_check_branch
      %161 = sbr.rel (0) target = $region101
    $region100: #{mdm_forward.1} parent=1 // pred_region
      %s163 = ssub.s32 32, 32
      %164 = vsyncadd [#allocation9], %s163
      %s165 = sshll.u32 [#allocation10], 4
      %s166 = int_to_ptr.vmem [resolvable:$true] %s165
      %171 = dma.hbm_to_vmem [thread:$0]  %s49, 32, %s166, [#allocation9], 16, 16, 1
    $region101: #{mdm_forward.1} parent=1 // pred_fallthru
      _
    // Predicated region
    $region102: #{mdm_forward.1} parent=1 // pred_check
      _
    $region103: #{mdm_forward.1} parent=1 // pred_check_branch
      %173 = sbr.rel (0) target = $region105
    $region104: #{mdm_forward.1} parent=1 // pred_region
      _
    $region105: #{mdm_forward.1} parent=1 // pred_fallthru
      _
    // Predicated region
    $region106: #{mdm_forward.1} parent=1 // pred_check
      _
    $region107: #{mdm_forward.1} parent=1 // pred_check_branch
      %175 = sbr.rel (0) target = $region109
    $region108: #{mdm_forward.1} parent=1 // pred_region
      %s177 = ssub.s32 32, 32
      %178 = vsyncadd [#allocation12], %s177
      %s179 = sshll.u32 [#allocation11], 4
      %s180 = int_to_ptr.vmem [resolvable:$true] %s179
      %185 = dma.hbm_to_vmem [thread:$0]  %s53, 32, %s180, [#allocation12], 16, 16, 1
    $region109: #{mdm_forward.1} parent=1 // pred_fallthru
      _
    // Predicated region
    $region110: #{mdm_forward.1} parent=1 // pred_check
      _
    $region111: #{mdm_forward.1} parent=1 // pred_check_branch
      %187 = sbr.rel (0) target = $region113
    $region112: #{mdm_forward.1} parent=1 // pred_region
      _
    $region113: #{mdm_forward.1} parent=1 // pred_fallthru
      _
    // Predicated region
    $region114: #{mdm_forward.1} parent=1 // pred_check
      _
    $region115: #{mdm_forward.1} parent=1 // pred_check_branch
      %189 = sbr.rel (0) target = $region117
    $region116: #{mdm_forward.1} parent=1 // pred_region
      %s191 = ssub.s32 32, 32
      %192 = vsyncadd [#allocation12], %s191
      %s193 = sshll.u32 [#allocation13], 4
      %s194 = int_to_ptr.vmem [resolvable:$true] %s193
      %199 = dma.hbm_to_vmem [thread:$0]  %s57, 32, %s194, [#allocation12], 16, 16, 1
    $region117: #{mdm_forward.1} parent=1 // pred_fallthru
      _
    // Predicated region
    $region118: #{mdm_forward.1} parent=1 // pred_check
      _
    $region119: #{mdm_forward.1} parent=1 // pred_check_branch
      %201 = sbr.rel (0) target = $region121
    $region120: #{mdm_forward.1} parent=1 // pred_region
      _
    $region121: #{mdm_forward.1} parent=1 // pred_fallthru
      _
    // Predicated region
    $region122: #{mdm_forward.1} parent=1 // pred_check
      _
    $region123: #{mdm_forward.1} parent=1 // pred_check_branch
      %203 = sbr.rel (0) target = $region125
    $region124: #{mdm_forward.1} parent=1 // pred_region
      _
    $region125: #{mdm_forward.1} parent=1 // pred_fallthru
      _
    // Predicated region
    $region126: #{mdm_forward.1} parent=1 // pred_check
      _
    $region127: #{mdm_forward.1} parent=1 // pred_check_branch
      %205 = sbr.rel (0) target = $region129
    $region128: #{mdm_forward.1} parent=1 // pred_region
      %206 = dma.done [#allocation4], 32
    $region129: #{mdm_forward.1} parent=1 // pred_fallthru
      _
    // Predicated region
    $region130: #{mdm_forward.1} parent=1 // pred_check
      _
    $region131: #{mdm_forward.1} parent=1 // pred_check_branch
      %208 = sbr.rel (0) target = $region133
    $region132: #{mdm_forward.1} parent=1 // pred_region
      %209 = dma.done [#allocation6], 32
    $region133: #{mdm_forward.1} parent=1 // pred_fallthru
      _
    // Predicated region
    $region134: #{mdm_forward.1} parent=1 // pred_check
      _
    $region135: #{mdm_forward.1} parent=1 // pred_check_branch
      %211 = sbr.rel (0) target = $region137
    $region136: #{mdm_forward.1} parent=1 // pred_region
      %212 = dma.done [#allocation6], 32
    $region137: #{mdm_forward.1} parent=1 // pred_fallthru
      _
    // Predicated region
    $region138: #{mdm_forward.1} parent=1 // pred_check
      _
    $region139: #{mdm_forward.1} parent=1 // pred_check_branch
      %214 = sbr.rel (0) target = $region141
    $region140: #{mdm_forward.1} parent=1 // pred_region
      %215 = dma.done [#allocation9], 32
    $region141: #{mdm_forward.1} parent=1 // pred_fallthru
      _
    // Predicated region
    $region142: #{mdm_forward.1} parent=1 // pred_check
      _
    $region143: #{mdm_forward.1} parent=1 // pred_check_branch
      %217 = sbr.rel (0) target = $region145
    $region144: #{mdm_forward.1} parent=1 // pred_region
      %218 = dma.done [#allocation9], 32
    $region145: #{mdm_forward.1} parent=1 // pred_fallthru
      _
    // Predicated region
    $region146: #{mdm_forward.1} parent=1 // pred_check
      _
    $region147: #{mdm_forward.1} parent=1 // pred_check_branch
      %220 = sbr.rel (0) target = $region149
    $region148: #{mdm_forward.1} parent=1 // pred_region
      %221 = dma.done [#allocation12], 32
    $region149: #{mdm_forward.1} parent=1 // pred_fallthru
      _
    // Predicated region
    $region150: #{mdm_forward.1} parent=1 // pred_check
      _
    $region151: #{mdm_forward.1} parent=1 // pred_check_branch
      %223 = sbr.rel (0) target = $region153
    $region152: #{mdm_forward.1} parent=1 // pred_region
      %224 = dma.done [#allocation12], 32
    $region153: #{mdm_forward.1} parent=1 // pred_fallthru
      _
    %v226 = vld [vmem:[%s1] sm:$0xff]
    %v227 = vld [vmem:[%s1 + $0x8] sm:$0xff]
    %v228 = vld [vmem:[%s11] sm:$0xf]
    %v229 = vld [vmem:[%s11 + $0x4] sm:$0xf]
    %v230 = vpack.c.bf16 %v227, %v226
    %v231 = vld [vmem:[%s13] sm:$0x1]
    %v233 = vlaneseq
    %v234 = vshrl.u32 %v233, 7
    %v235 = vsub.s32 0, %v234
    %v236 = vrot.slane %v231, %v235
    %v240 = vunpack.c.l.b16 %v228
    %v241 = vunpack.c.l.b16 %v229
    %v242 = vpack.c.b16 %v241, %v240
    %vm244 = vcmask 130048
    %v246 = vsel %vm244, %v230, 0
    %248 = vmatprep.subr.bf16.mxu0 0
    %249 = vmatpush1.bf16.msra.mxu0 %v242
    %250 = vmatprep.subr.bf16.mxu0 0
    %251 = vmatpush1.bf16.msra.mxu0 0
    %252 = vmatprep.subr.bf16.mxu0 0
    %253 = vmatpush1.bf16.msra.mxu0 0
    %254 = vmatprep.subr.bf16.mxu0 0
    %255 = vmatpush1.bf16.msra.mxu0 0
    %256 = vmatprep.subr.bf16.mxu0 0
    %257 = vmatpush1.bf16.msra.mxu0 0
    %258 = vmatprep.subr.bf16.mxu0 0
    %259 = vmatpush1.bf16.msra.mxu0 0
    %260 = vmatprep.subr.bf16.mxu0 0
    %261 = vmatpush1.bf16.msra.mxu0 0
    %262 = vmatprep.subr.bf16.mxu0 0
    %263 = vmatpush1.bf16.msra.mxu0 0
    %264 = vmatprep.subr.bf16.mxu0 0
    %265 = vmatpush1.bf16.msra.mxu0 0
    %266 = vmatprep.subr.bf16.mxu0 0
    %267 = vmatpush1.bf16.msra.mxu0 0
    %268 = vmatprep.subr.bf16.mxu0 0
    %269 = vmatpush1.bf16.msra.mxu0 0
    %270 = vmatprep.subr.bf16.mxu0 0
    %271 = vmatpush1.bf16.msra.mxu0 0
    %272 = vmatprep.subr.bf16.mxu0 0
    %273 = vmatpush1.bf16.msra.mxu0 0
    %274 = vmatprep.subr.bf16.mxu0 0
    %275 = vmatpush1.bf16.msra.mxu0 0
    %276 = vmatprep.subr.bf16.mxu0 0
    %277 = vmatpush1.bf16.msra.mxu0 0
    %278 = vmatprep.subr.bf16.mxu0 0
    %279 = vmatpush1.bf16.msra.mxu0 0
    %280 = vmatprep.mubr.bf16.mxu0 0
    %281 = vmatmul.mubr.bf16.gmra.mrb[0].mxu0 %v246
    %v282 = vpop.f32.mrb[0].mxu0
    %v283 = vadd.f32 %v236, %v282
    %v284 = vpop.f32.mrb[0].mxu0
    %v285 = vpop.f32.mrb[0].mxu0
    %v286 = vadd.f32 %v236, %v285
    %v287 = vpop.f32.mrb[0].mxu0
    %288 = vdwg.mxu0
    %v289 = vld [vmem:[%s9] sm:$0xff]
    %v290 = vadd.f32 %v283, %v289
    %v291 = vadd.f32 %v286, %v289
    %v292 = vld [vmem:[%s3] sm:$0x3]
    %v293 = vld [vmem:[%s15] sm:$0xf]
    %v294 = vld [vmem:[%s15 + $0x4] sm:$0xf]
    %v295 = vld [vmem:[%s15 + $0x8] sm:$0xf]
    %v296 = vld [vmem:[%s15 + $0xc] sm:$0xf]
    %v297 = vpack.c.bf16 %v292, %v292
    %v298 = vld [vmem:[%s17] sm:$0x1]
    %v300 = vlaneseq
    %v301 = vshrl.u32 %v300, 7
    %v302 = vsub.s32 0, %v301
    %v303 = vrot.slane %v298, %v302
    %v309 = vunpack.c.l.b16 %v293
    %v310 = vunpack.c.l.b16 %v294
    %v311 = vunpack.c.l.b16 %v295
    %v312 = vunpack.c.l.b16 %v296
    %v313 = vpack.c.b16 %v310, %v309
    %v314 = vpack.c.b16 %v312, %v311
    %vm317 = vcmask 261120
    %v319 = vsel %vm317, %v297, 0
    %321 = vmatprep.subr.bf16.mxu0 0
    %322 = vmatpush1.bf16.msra.mxu0 %v313
    %323 = vmatprep.subr.bf16.mxu0 0
    %324 = vmatpush1.bf16.msra.mxu0 %v314
    %325 = vmatprep.subr.bf16.mxu0 0
    %326 = vmatpush1.bf16.msra.mxu0 0
    %327 = vmatprep.subr.bf16.mxu0 0
    %328 = vmatpush1.bf16.msra.mxu0 0
    %329 = vmatprep.subr.bf16.mxu0 0
    %330 = vmatpush1.bf16.msra.mxu0 0
    %331 = vmatprep.subr.bf16.mxu0 0
    %332 = vmatpush1.bf16.msra.mxu0 0
    %333 = vmatprep.subr.bf16.mxu0 0
    %334 = vmatpush1.bf16.msra.mxu0 0
    %335 = vmatprep.subr.bf16.mxu0 0
    %336 = vmatpush1.bf16.msra.mxu0 0
    %337 = vmatprep.subr.bf16.mxu0 0
    %338 = vmatpush1.bf16.msra.mxu0 0
    %339 = vmatprep.subr.bf16.mxu0 0
    %340 = vmatpush1.bf16.msra.mxu0 0
    %341 = vmatprep.subr.bf16.mxu0 0
    %342 = vmatpush1.bf16.msra.mxu0 0
    %343 = vmatprep.subr.bf16.mxu0 0
    %344 = vmatpush1.bf16.msra.mxu0 0
    %345 = vmatprep.subr.bf16.mxu0 0
    %346 = vmatpush1.bf16.msra.mxu0 0
    %347 = vmatprep.subr.bf16.mxu0 0
    %348 = vmatpush1.bf16.msra.mxu0 0
    %349 = vmatprep.subr.bf16.mxu0 0
    %350 = vmatpush1.bf16.msra.mxu0 0
    %351 = vmatprep.subr.bf16.mxu0 0
    %352 = vmatpush1.bf16.msra.mxu0 0
    %353 = vmatprep.mubr.bf16.mxu0 0
    %354 = vmatmul.mubr.bf16.gmra.mrb[0].mxu0 %v319
    %v355 = vpop.f32.mrb[0].mxu0
    %v356 = vadd.f32 %v303, %v355
    %v357 = vpop.f32.mrb[0].mxu0
    %v358 = vpop.f32.mrb[0].mxu0
    %v359 = vpop.f32.mrb[0].mxu0
    %360 = vdwg.mxu0
    %v361 = vxor.u32 %v356, 2147483648
    %v362 = vmul.f32 %v361, 1.442695
    %v363 = vpow.pop %v362
    %v364 = vadd.f32 %v363, 1.0
    %v365 = vrcp.pop %v364
    %v366 = vmul.f32 1.0, %v365
    %v367 = vmul.f32 %v356, %v366
    %v368 = vld [vmem:[%s19] sm:$0xf]
    %v369 = vld [vmem:[%s19 + $0x4] sm:$0xf]
    %v370 = vld [vmem:[%s19 + $0x8] sm:$0xf]
    %v371 = vld [vmem:[%s19 + $0xc] sm:$0xf]
    %v372 = vpack.c.bf16 %v367, %v367
    %v373 = vld [vmem:[%s21] sm:$0x1]
    %v375 = vlaneseq
    %v376 = vshrl.u32 %v375, 7
    %v377 = vsub.s32 0, %v376
    %v378 = vrot.slane %v373, %v377
    %v384 = vunpack.c.l.b16 %v368
    %v385 = vunpack.c.l.b16 %v369
    %v386 = vunpack.c.l.b16 %v370
    %v387 = vunpack.c.l.b16 %v371
    %v388 = vpack.c.b16 %v385, %v384
    %v389 = vpack.c.b16 %v387, %v386
    %v393 = vsel %vm317, %v372, 0
    %395 = vmatprep.subr.bf16.mxu0 0
    %396 = vmatpush1.bf16.msra.mxu0 %v388
    %397 = vmatprep.subr.bf16.mxu0 0
    %398 = vmatpush1.bf16.msra.mxu0 %v389
    %399 = vmatprep.subr.bf16.mxu0 0
    %400 = vmatpush1.bf16.msra.mxu0 0
    %401 = vmatprep.subr.bf16.mxu0 0
    %402 = vmatpush1.bf16.msra.mxu0 0
    %403 = vmatprep.subr.bf16.mxu0 0
    %404 = vmatpush1.bf16.msra.mxu0 0
    %405 = vmatprep.subr.bf16.mxu0 0
    %406 = vmatpush1.bf16.msra.mxu0 0
    %407 = vmatprep.subr.bf16.mxu0 0
    %408 = vmatpush1.bf16.msra.mxu0 0
    %409 = vmatprep.subr.bf16.mxu0 0
    %410 = vmatpush1.bf16.msra.mxu0 0
    %411 = vmatprep.subr.bf16.mxu0 0
    %412 = vmatpush1.bf16.msra.mxu0 0
    %413 = vmatprep.subr.bf16.mxu0 0
    %414 = vmatpush1.bf16.msra.mxu0 0
    %415 = vmatprep.subr.bf16.mxu0 0
    %416 = vmatpush1.bf16.msra.mxu0 0
    %417 = vmatprep.subr.bf16.mxu0 0
    %418 = vmatpush1.bf16.msra.mxu0 0
    %419 = vmatprep.subr.bf16.mxu0 0
    %420 = vmatpush1.bf16.msra.mxu0 0
    %421 = vmatprep.subr.bf16.mxu0 0
    %422 = vmatpush1.bf16.msra.mxu0 0
    %423 = vmatprep.subr.bf16.mxu0 0
    %424 = vmatpush1.bf16.msra.mxu0 0
    %425 = vmatprep.subr.bf16.mxu0 0
    %426 = vmatpush1.bf16.msra.mxu0 0
    %427 = vmatprep.mubr.bf16.mxu0 0
    %428 = vmatmul.mubr.bf16.gmra.mrb[0].mxu0 %v393
    %v429 = vpop.f32.mrb[0].mxu0
    %v430 = vadd.f32 %v378, %v429
    %v431 = vpop.f32.mrb[0].mxu0
    %v432 = vpop.f32.mrb[0].mxu0
    %v433 = vpop.f32.mrb[0].mxu0
    %434 = vdwg.mxu0
    %v435 = vld [vmem:[%s7] sm:$0x1]
    %v436 = vld [vmem:[%s5] sm:$0x3]
    %v437 = vld [vmem:[%s23] sm:$0xf]
    %v438 = vld [vmem:[%s23 + $0x4] sm:$0xf]
    %v439 = vld [vmem:[%s23 + $0x8] sm:$0xf]
    %v440 = vld [vmem:[%s23 + $0xc] sm:$0xf]
    %v441 = vld [vmem:[%s23 + $0x10] sm:$0xf]
    %v442 = vld [vmem:[%s23 + $0x14] sm:$0xf]
    %v443 = vpack.c.bf16 %v436, %v436
    %v444 = vld [vmem:[%s25] sm:$0x1]
    %v446 = vlaneseq
    %v447 = vshrl.u32 %v446, 7
    %v448 = vsub.s32 0, %v447
    %v449 = vrot.slane %v444, %v448
    %v457 = vunpack.c.l.b16 %v437
    %v458 = vunpack.c.l.b16 %v438
    %v459 = vunpack.c.l.b16 %v439
    %v460 = vunpack.c.l.b16 %v440
    %v461 = vunpack.c.l.b16 %v441
    %v462 = vunpack.c.l.b16 %v442
    %v463 = vpack.c.b16 %v458, %v457
    %v464 = vpack.c.b16 %v460, %v459
    %v465 = vpack.c.b16 %v462, %v461
    %vm469 = vcmask 392192
    %v471 = vsel %vm469, %v443, 0
    %473 = vmatprep.subr.bf16.mxu0 0
    %474 = vmatpush1.bf16.msra.mxu0 %v463
    %475 = vmatprep.subr.bf16.mxu0 0
    %476 = vmatpush1.bf16.msra.mxu0 %v464
    %477 = vmatprep.subr.bf16.mxu0 0
    %478 = vmatpush1.bf16.msra.mxu0 %v465
    %479 = vmatprep.subr.bf16.mxu0 0
    %480 = vmatpush1.bf16.msra.mxu0 0
    %481 = vmatprep.subr.bf16.mxu0 0
    %482 = vmatpush1.bf16.msra.mxu0 0
    %483 = vmatprep.subr.bf16.mxu0 0
    %484 = vmatpush1.bf16.msra.mxu0 0
    %485 = vmatprep.subr.bf16.mxu0 0
    %486 = vmatpush1.bf16.msra.mxu0 0
    %487 = vmatprep.subr.bf16.mxu0 0
    %488 = vmatpush1.bf16.msra.mxu0 0
    %489 = vmatprep.subr.bf16.mxu0 0
    %490 = vmatpush1.bf16.msra.mxu0 0
    %491 = vmatprep.subr.bf16.mxu0 0
    %492 = vmatpush1.bf16.msra.mxu0 0
    %493 = vmatprep.subr.bf16.mxu0 0
    %494 = vmatpush1.bf16.msra.mxu0 0
    %495 = vmatprep.subr.bf16.mxu0 0
    %496 = vmatpush1.bf16.msra.mxu0 0
    %497 = vmatprep.subr.bf16.mxu0 0
    %498 = vmatpush1.bf16.msra.mxu0 0
    %499 = vmatprep.subr.bf16.mxu0 0
    %500 = vmatpush1.bf16.msra.mxu0 0
    %501 = vmatprep.subr.bf16.mxu0 0
    %502 = vmatpush1.bf16.msra.mxu0 0
    %503 = vmatprep.subr.bf16.mxu0 0
    %504 = vmatpush1.bf16.msra.mxu0 0
    %505 = vmatprep.mubr.bf16.mxu0 0
    %506 = vmatmul.mubr.bf16.gmra.mrb[0].mxu0 %v471
    %v507 = vpop.f32.mrb[0].mxu0
    %v508 = vadd.f32 %v449, %v507
    %v509 = vpop.f32.mrb[0].mxu0
    %v510 = vpop.f32.mrb[0].mxu0
    %v511 = vpop.f32.mrb[0].mxu0
    %512 = vdwg.mxu0
    %v513 = vadd.f32 %v430, %v508
    %v515 = vlaneseq
    %v516 = vshrl.u32 %v515, 7
    %v517 = vsub.s32 0, %v516
    %v518 = vrot.slane %v435, %v517
    %v520 = vadd.f32 %v513, %v518
    %521 = vst.msk [vmem:[#allocation2] sm:$0xff] %vm317, %v290
    %522 = vst.msk [vmem:[#allocation2 + $0x10] sm:$0xff] %vm317, %v291
    %v525 = vunpack.c.l.s4 1966171168
    %v526 = vunpack.c.0.s8 %v525
    %v527 = vlaneseq
    %v528 = vshrl.u32 %v527, 7
    %v529 = vsub.s32 %v526, %v528
    %v530 = vrot.slane %v520, %v529
    %v531 = vcombine.high %v530, %v530
    %v533 = vunpack.c.l.s4 1966171168
    %v534 = vunpack.c.0.s8 %v533
    %v535 = vlaneseq
    %v536 = vshrl.u32 %v535, 7
    %v537 = vsub.s32 %v534, %v536
    %v538 = vrot.slane %v530, %v537
    %v540 = vunpack.c.l.s4 1966171168
    %v541 = vunpack.c.0.s8 %v540
    %v542 = vlaneseq
    %v543 = vshrl.u32 %v542, 7
    %v544 = vsub.s32 %v541, %v543
    %v545 = vrot.slane %v531, %v544
    %vm548 = vcmask 253952
    %549 = vst.msk [vmem:[#allocation2 + $0x8] sm:$0x1] %vm548, %v538
    %550 = vst.msk [vmem:[#allocation2 + $0x18] sm:$0x1] %vm548, %v545
    %v551 = vld [vmem:[#allocation2] sm:$0xff]
    %v552 = vld [vmem:[#allocation2 + $0x8] sm:$0x1]
    %v553 = vld [vmem:[#allocation2 + $0x10] sm:$0xff]
    %v554 = vld [vmem:[#allocation2 + $0x18] sm:$0x1]
    %v559 = vcombine.high %v551, %v551
    %v561 = vunpack.c.l.s4 1966171168
    %v562 = vunpack.c.0.s8 %v561
    %v563 = vlaneseq
    %v564 = vshrl.u32 %v563, 7
    %v565 = vsub.s32 %v562, %v564
    %v566 = vrot.slane %v551, %v565
    %v568 = vunpack.c.l.s4 1966171168
    %v569 = vunpack.c.0.s8 %v568
    %v570 = vlaneseq
    %v571 = vshrl.u32 %v570, 7
    %v572 = vsub.s32 %v569, %v571
    %v573 = vrot.slane %v559, %v572
    %v574 = vcombine.high %v566, %v566
    %v575 = vcombine.high %v573, %v573
    %v577 = vunpack.c.l.s4 1966171168
    %v578 = vunpack.c.0.s8 %v577
    %v579 = vlaneseq
    %v580 = vshrl.u32 %v579, 7
    %v581 = vsub.s32 %v578, %v580
    %v582 = vrot.slane %v566, %v581
    %v584 = vunpack.c.l.s4 1966171168
    %v585 = vunpack.c.0.s8 %v584
    %v586 = vlaneseq
    %v587 = vshrl.u32 %v586, 7
    %v588 = vsub.s32 %v585, %v587
    %v589 = vrot.slane %v573, %v588
    %v591 = vunpack.c.l.s4 1966171168
    %v592 = vunpack.c.0.s8 %v591
    %v593 = vlaneseq
    %v594 = vshrl.u32 %v593, 7
    %v595 = vsub.s32 %v592, %v594
    %v596 = vrot.slane %v574, %v595
    %v598 = vunpack.c.l.s4 1966171168
    %v599 = vunpack.c.0.s8 %v598
    %v600 = vlaneseq
    %v601 = vshrl.u32 %v600, 7
    %v602 = vsub.s32 %v599, %v601
    %v603 = vrot.slane %v575, %v602
    %v604 = vcombine.high %v582, %v582
    %v605 = vcombine.high %v589, %v589
    %v606 = vcombine.high %v596, %v596
    %v607 = vcombine.high %v603, %v603
    %v609 = vunpack.c.l.s4 1966171168
    %v610 = vunpack.c.0.s8 %v609
    %v611 = vlaneseq
    %v612 = vshrl.u32 %v611, 7
    %v613 = vsub.s32 %v610, %v612
    %v614 = vrot.slane %v552, %v613
    %v616 = vunpack.c.l.s4 1966171168
    %v617 = vunpack.c.0.s8 %v616
    %v618 = vlaneseq
    %v619 = vshrl.u32 %v618, 7
    %v620 = vsub.s32 %v617, %v619
    %v621 = vrot.slane %v614, %v620
    %v622 = vcombine.high %v553, %v553
    %v624 = vunpack.c.l.s4 1966171168
    %v625 = vunpack.c.0.s8 %v624
    %v626 = vlaneseq
    %v627 = vshrl.u32 %v626, 7
    %v628 = vsub.s32 %v625, %v627
    %v629 = vrot.slane %v553, %v628
    %v631 = vunpack.c.l.s4 1966171168
    %v632 = vunpack.c.0.s8 %v631
    %v633 = vlaneseq
    %v634 = vshrl.u32 %v633, 7
    %v635 = vsub.s32 %v632, %v634
    %v636 = vrot.slane %v622, %v635
    %v637 = vcombine.high %v629, %v629
    %v638 = vcombine.high %v636, %v636
    %v640 = vunpack.c.l.s4 1966171168
    %v641 = vunpack.c.0.s8 %v640
    %v642 = vlaneseq
    %v643 = vshrl.u32 %v642, 7
    %v644 = vsub.s32 %v641, %v643
    %v645 = vrot.slane %v629, %v644
    %v647 = vunpack.c.l.s4 1966171168
    %v648 = vunpack.c.0.s8 %v647
    %v649 = vlaneseq
    %v650 = vshrl.u32 %v649, 7
    %v651 = vsub.s32 %v648, %v650
    %v652 = vrot.slane %v636, %v651
    %v654 = vunpack.c.l.s4 1966171168
    %v655 = vunpack.c.0.s8 %v654
    %v656 = vlaneseq
    %v657 = vshrl.u32 %v656, 7
    %v658 = vsub.s32 %v655, %v657
    %v659 = vrot.slane %v637, %v658
    %v661 = vunpack.c.l.s4 1966171168
    %v662 = vunpack.c.0.s8 %v661
    %v663 = vlaneseq
    %v664 = vshrl.u32 %v663, 7
    %v665 = vsub.s32 %v662, %v664
    %v666 = vrot.slane %v638, %v665
    %v667 = vcombine.high %v645, %v645
    %v668 = vcombine.high %v652, %v652
    %v669 = vcombine.high %v659, %v659
    %v670 = vcombine.high %v666, %v666
    %v672 = vunpack.c.l.s4 1966171168
    %v673 = vunpack.c.0.s8 %v672
    %v674 = vlaneseq
    %v675 = vshrl.u32 %v674, 7
    %v676 = vsub.s32 %v673, %v675
    %v677 = vrot.slane %v554, %v676
    %v679 = vunpack.c.l.s4 1966171168
    %v680 = vunpack.c.0.s8 %v679
    %v681 = vlaneseq
    %v682 = vshrl.u32 %v681, 7
    %v683 = vsub.s32 %v680, %v682
    %v684 = vrot.slane %v677, %v683
    loop: start=0, step=1, limit=2
    $region154: #{mdm_forward.1} parent=1 // loop_pre_header
      _
    $region155: #{mdm_forward.1} parent=1 // loop_header
      %s704 = sphi 0, %s708
      %p705 = scmp.ge.s32.totalorder %s704, 2
      %v709 = vphi %v582, %v5713
      %v710 = vphi %v596, %v5714
      %v711 = vphi %v604, %v5715
      %v712 = vphi %v606, %v5716
      %v713 = vphi %v589, %v5717
      %v714 = vphi %v603, %v5718
      %v715 = vphi %v605, %v5719
      %v716 = vphi %v607, %v5720
      %v717 = vphi %v621, %v5721
      %v718 = vphi %v645, %v5722
      %v719 = vphi %v659, %v5723
      %v720 = vphi %v667, %v5724
      %v721 = vphi %v669, %v5725
      %v722 = vphi %v652, %v5726
      %v723 = vphi %v666, %v5727
      %v724 = vphi %v668, %v5728
      %v725 = vphi %v670, %v5729
      %v726 = vphi %v684, %v5730
    $region156: #{mdm_forward.1} parent=1 // loop_header_branch
      %707 = sbr.rel (%p705) target = $region160
    $region157: #{mdm_forward.1} parent=1 // loop_body
      %v745 = vcombine.low %v709, %v710
      %v746 = vcombine.low %v711, %v712
      %v747 = vcombine.low %v713, %v714
      %v748 = vcombine.low %v715, %v716
      %v750 = vunpack.c.l.s4 1966171168
      %v751 = vunpack.c.0.s8 %v750
      %v752 = vlaneseq
      %v753 = vshrl.u32 %v752, 7
      %v754 = vsub.s32 %v751, %v753
      %v755 = vrot.slane %v745, %v754
      %v757 = vunpack.c.l.s4 1966171168
      %v758 = vunpack.c.0.s8 %v757
      %v759 = vlaneseq
      %v760 = vshrl.u32 %v759, 7
      %v761 = vsub.s32 %v758, %v760
      %v762 = vrot.slane %v746, %v761
      %v764 = vunpack.c.l.s4 1966171168
      %v765 = vunpack.c.0.s8 %v764
      %v766 = vlaneseq
      %v767 = vshrl.u32 %v766, 7
      %v768 = vsub.s32 %v765, %v767
      %v769 = vrot.slane %v747, %v768
      %v771 = vunpack.c.l.s4 1966171168
      %v772 = vunpack.c.0.s8 %v771
      %v773 = vlaneseq
      %v774 = vshrl.u32 %v773, 7
      %v775 = vsub.s32 %v772, %v774
      %v776 = vrot.slane %v748, %v775
      %v777 = vcombine.low %v755, %v762
      %v778 = vcombine.low %v769, %v776
      %v780 = vunpack.c.l.s4 1966171168
      %v781 = vunpack.c.0.s8 %v780
      %v782 = vlaneseq
      %v783 = vshrl.u32 %v782, 7
      %v784 = vsub.s32 %v781, %v783
      %v785 = vrot.slane %v777, %v784
      %v787 = vunpack.c.l.s4 1966171168
      %v788 = vunpack.c.0.s8 %v787
      %v789 = vlaneseq
      %v790 = vshrl.u32 %v789, 7
      %v791 = vsub.s32 %v788, %v790
      %v792 = vrot.slane %v778, %v791
      %v793 = vcombine.low %v785, %v792
      %v794 = vcombine.low %v717, %v718
      %v795 = vcombine.low %v719, %v720
      %v796 = vcombine.low %v721, %v722
      %v797 = vcombine.low %v723, %v724
      %v799 = vunpack.c.l.s4 1966171168
      %v800 = vunpack.c.0.s8 %v799
      %v801 = vlaneseq
      %v802 = vshrl.u32 %v801, 7
      %v803 = vsub.s32 %v800, %v802
      %v804 = vrot.slane %v794, %v803
      %v806 = vunpack.c.l.s4 1966171168
      %v807 = vunpack.c.0.s8 %v806
      %v808 = vlaneseq
      %v809 = vshrl.u32 %v808, 7
      %v810 = vsub.s32 %v807, %v809
      %v811 = vrot.slane %v795, %v810
      %v813 = vunpack.c.l.s4 1966171168
      %v814 = vunpack.c.0.s8 %v813
      %v815 = vlaneseq
      %v816 = vshrl.u32 %v815, 7
      %v817 = vsub.s32 %v814, %v816
      %v818 = vrot.slane %v796, %v817
      %v820 = vunpack.c.l.s4 1966171168
      %v821 = vunpack.c.0.s8 %v820
      %v822 = vlaneseq
      %v823 = vshrl.u32 %v822, 7
      %v824 = vsub.s32 %v821, %v823
      %v825 = vrot.slane %v797, %v824
      %v826 = vcombine.low %v804, %v811
      %v827 = vcombine.low %v818, %v825
      %v829 = vunpack.c.l.s4 1966171168
      %v830 = vunpack.c.0.s8 %v829
      %v831 = vlaneseq
      %v832 = vshrl.u32 %v831, 7
      %v833 = vsub.s32 %v830, %v832
      %v834 = vrot.slane %v826, %v833
      %v836 = vunpack.c.l.s4 1966171168
      %v837 = vunpack.c.0.s8 %v836
      %v838 = vlaneseq
      %v839 = vshrl.u32 %v838, 7
      %v840 = vsub.s32 %v837, %v839
      %v841 = vrot.slane %v827, %v840
      %v842 = vcombine.low %v834, %v841
      %v843 = vcombine.low %v725, %v726
      %v845 = vunpack.c.l.s4 1966171168
      %v846 = vunpack.c.0.s8 %v845
      %v847 = vlaneseq
      %v848 = vshrl.u32 %v847, 7
      %v849 = vsub.s32 %v846, %v848
      %v850 = vrot.slane %v843, %v849
      %v852 = vunpack.c.l.s4 1966171168
      %v853 = vunpack.c.0.s8 %v852
      %v854 = vlaneseq
      %v855 = vshrl.u32 %v854, 7
      %v856 = vsub.s32 %v853, %v855
      %v857 = vrot.slane %v850, %v856
      %v861 = vpack.c.bf16 %v842, %v793
      %v862 = vpack.c.bf16 %v857, %v857
      %s863 = smul.u32 %s704, 4
      %s864 = smul.addr %s863, 4
      %s865 = scalar_lea.vmem %s31, %s864
      %v866 = vld [vmem:[%s865] sm:$0xf]
      %v867 = vld [vmem:[%s865 + $0x4] sm:$0xf]
      %v868 = vld [vmem:[%s865 + $0x8] sm:$0xf]
      %v869 = vld [vmem:[%s865 + $0xc] sm:$0xf]
      %s870 = scalar_lea.vmem [#allocation3], %s704
      %v871 = vld [vmem:[%s870] sm:$0x1]
      %v873 = vlaneseq
      %v874 = vshrl.u32 %v873, 7
      %v875 = vsub.s32 0, %v874
      %v876 = vrot.slane %v871, %v875
      %v882 = vunpack.c.l.b16 %v866
      %v883 = vunpack.c.l.b16 %v867
      %v884 = vunpack.c.l.b16 %v868
      %v885 = vunpack.c.l.b16 %v869
      %v886 = vpack.c.b16 %v883, %v882
      %v887 = vpack.c.b16 %v885, %v884
      %v891 = vsel %vm317, %v861, 0
      %v894 = vsel %vm317, %v862, 0
      %896 = vmatprep.subr.bf16.mxu0 0
      %897 = vmatpush1.bf16.msra.mxu0 %v886
      %898 = vmatprep.subr.bf16.mxu0 0
      %899 = vmatpush1.bf16.msra.mxu0 %v887
      %900 = vmatprep.subr.bf16.mxu0 0
      %901 = vmatpush1.bf16.msra.mxu0 0
      %902 = vmatprep.subr.bf16.mxu0 0
      %903 = vmatpush1.bf16.msra.mxu0 0
      %904 = vmatprep.subr.bf16.mxu0 0
      %905 = vmatpush1.bf16.msra.mxu0 0
      %906 = vmatprep.subr.bf16.mxu0 0
      %907 = vmatpush1.bf16.msra.mxu0 0
      %908 = vmatprep.subr.bf16.mxu0 0
      %909 = vmatpush1.bf16.msra.mxu0 0
      %910 = vmatprep.subr.bf16.mxu0 0
      %911 = vmatpush1.bf16.msra.mxu0 0
      %912 = vmatprep.subr.bf16.mxu0 0
      %913 = vmatpush1.bf16.msra.mxu0 0
      %914 = vmatprep.subr.bf16.mxu0 0
      %915 = vmatpush1.bf16.msra.mxu0 0
      %916 = vmatprep.subr.bf16.mxu0 0
      %917 = vmatpush1.bf16.msra.mxu0 0
      %918 = vmatprep.subr.bf16.mxu0 0
      %919 = vmatpush1.bf16.msra.mxu0 0
      %920 = vmatprep.subr.bf16.mxu0 0
      %921 = vmatpush1.bf16.msra.mxu0 0
      %922 = vmatprep.subr.bf16.mxu0 0
      %923 = vmatpush1.bf16.msra.mxu0 0
      %924 = vmatprep.subr.bf16.mxu0 0
      %925 = vmatpush1.bf16.msra.mxu0 0
      %926 = vmatprep.subr.bf16.mxu0 0
      %927 = vmatpush1.bf16.msra.mxu0 0
      %928 = vmatprep.mubr.bf16.mxu0 0
      %929 = vmatmul.mubr.bf16.gmra.mrb[0].mxu0 %v891
      %v930 = vpop.f32.mrb[0].mxu0
      %v931 = vadd.f32 %v876, %v930
      %v932 = vpop.f32.mrb[0].mxu0
      %v933 = vpop.f32.mrb[0].mxu0
      %v934 = vadd.f32 %v876, %v933
      %v935 = vpop.f32.mrb[0].mxu0
      %936 = vmatprep.mubr.bf16.mxu0 0
      %937 = vmatmul.mubr.bf16.gmra.mrb[0].mxu0 %v894
      %v938 = vpop.f32.mrb[0].mxu0
      %v939 = vadd.f32 %v876, %v938
      %v940 = vpop.f32.mrb[0].mxu0
      %v941 = vpop.f32.mrb[0].mxu0
      %v942 = vpop.f32.mrb[0].mxu0
      %943 = vdwg.mxu0
      %s944 = smul.addr %s863, 4
      %s945 = scalar_lea.vmem %s35, %s944
      %v946 = vld [vmem:[%s945] sm:$0xf]
      %v947 = vld [vmem:[%s945 + $0x4] sm:$0xf]
      %v948 = vld [vmem:[%s945 + $0x8] sm:$0xf]
      %v949 = vld [vmem:[%s945 + $0xc] sm:$0xf]
      %s950 = scalar_lea.vmem [#allocation5], %s704
      %v951 = vld [vmem:[%s950] sm:$0x1]
      %v953 = vlaneseq
      %v954 = vshrl.u32 %v953, 7
      %v955 = vsub.s32 0, %v954
      %v956 = vrot.slane %v951, %v955
      %v962 = vunpack.c.l.b16 %v946
      %v963 = vunpack.c.l.b16 %v947
      %v964 = vunpack.c.l.b16 %v948
      %v965 = vunpack.c.l.b16 %v949
      %v966 = vpack.c.b16 %v963, %v962
      %v967 = vpack.c.b16 %v965, %v964
      %970 = vmatprep.subr.bf16.mxu0 0
      %971 = vmatpush1.bf16.msra.mxu0 %v966
      %972 = vmatprep.subr.bf16.mxu0 0
      %973 = vmatpush1.bf16.msra.mxu0 %v967
      %974 = vmatprep.subr.bf16.mxu0 0
      %975 = vmatpush1.bf16.msra.mxu0 0
      %976 = vmatprep.subr.bf16.mxu0 0
      %977 = vmatpush1.bf16.msra.mxu0 0
      %978 = vmatprep.subr.bf16.mxu0 0
      %979 = vmatpush1.bf16.msra.mxu0 0
      %980 = vmatprep.subr.bf16.mxu0 0
      %981 = vmatpush1.bf16.msra.mxu0 0
      %982 = vmatprep.subr.bf16.mxu0 0
      %983 = vmatpush1.bf16.msra.mxu0 0
      %984 = vmatprep.subr.bf16.mxu0 0
      %985 = vmatpush1.bf16.msra.mxu0 0
      %986 = vmatprep.subr.bf16.mxu0 0
      %987 = vmatpush1.bf16.msra.mxu0 0
      %988 = vmatprep.subr.bf16.mxu0 0
      %989 = vmatpush1.bf16.msra.mxu0 0
      %990 = vmatprep.subr.bf16.mxu0 0
      %991 = vmatpush1.bf16.msra.mxu0 0
      %992 = vmatprep.subr.bf16.mxu0 0
      %993 = vmatpush1.bf16.msra.mxu0 0
      %994 = vmatprep.subr.bf16.mxu0 0
      %995 = vmatpush1.bf16.msra.mxu0 0
      %996 = vmatprep.subr.bf16.mxu0 0
      %997 = vmatpush1.bf16.msra.mxu0 0
      %998 = vmatprep.subr.bf16.mxu0 0
      %999 = vmatpush1.bf16.msra.mxu0 0
      %1000 = vmatprep.subr.bf16.mxu0 0
      %1001 = vmatpush1.bf16.msra.mxu0 0
      %1002 = vmatprep.mubr.bf16.mxu0 0
      %1003 = vmatmul.mubr.bf16.gmra.mrb[0].mxu0 %v891
      %v1004 = vpop.f32.mrb[0].mxu0
      %v1005 = vadd.f32 %v956, %v1004
      %v1006 = vpop.f32.mrb[0].mxu0
      %v1007 = vpop.f32.mrb[0].mxu0
      %v1008 = vadd.f32 %v956, %v1007
      %v1009 = vpop.f32.mrb[0].mxu0
      %1010 = vmatprep.mubr.bf16.mxu0 0
      %1011 = vmatmul.mubr.bf16.gmra.mrb[0].mxu0 %v894
      %v1012 = vpop.f32.mrb[0].mxu0
      %v1013 = vadd.f32 %v956, %v1012
      %v1014 = vpop.f32.mrb[0].mxu0
      %v1015 = vpop.f32.mrb[0].mxu0
      %v1016 = vpop.f32.mrb[0].mxu0
      %1017 = vdwg.mxu0
      %s1018 = smul.addr %s863, 4
      %s1019 = scalar_lea.vmem %s39, %s1018
      %v1020 = vld [vmem:[%s1019] sm:$0xf]
      %v1021 = vld [vmem:[%s1019 + $0x4] sm:$0xf]
      %v1022 = vld [vmem:[%s1019 + $0x8] sm:$0xf]
      %v1023 = vld [vmem:[%s1019 + $0xc] sm:$0xf]
      %s1024 = scalar_lea.vmem [#allocation7], %s704
      %v1025 = vld [vmem:[%s1024] sm:$0x1]
      %v1027 = vlaneseq
      %v1028 = vshrl.u32 %v1027, 7
      %v1029 = vsub.s32 0, %v1028
      %v1030 = vrot.slane %v1025, %v1029
      %v1036 = vunpack.c.l.b16 %v1020
      %v1037 = vunpack.c.l.b16 %v1021
      %v1038 = vunpack.c.l.b16 %v1022
      %v1039 = vunpack.c.l.b16 %v1023
      %v1040 = vpack.c.b16 %v1037, %v1036
      %v1041 = vpack.c.b16 %v1039, %v1038
      %1044 = vmatprep.subr.bf16.mxu0 0
      %1045 = vmatpush1.bf16.msra.mxu0 %v1040
      %1046 = vmatprep.subr.bf16.mxu0 0
      %1047 = vmatpush1.bf16.msra.mxu0 %v1041
      %1048 = vmatprep.subr.bf16.mxu0 0
      %1049 = vmatpush1.bf16.msra.mxu0 0
      %1050 = vmatprep.subr.bf16.mxu0 0
      %1051 = vmatpush1.bf16.msra.mxu0 0
      %1052 = vmatprep.subr.bf16.mxu0 0
      %1053 = vmatpush1.bf16.msra.mxu0 0
      %1054 = vmatprep.subr.bf16.mxu0 0
      %1055 = vmatpush1.bf16.msra.mxu0 0
      %1056 = vmatprep.subr.bf16.mxu0 0
      %1057 = vmatpush1.bf16.msra.mxu0 0
      %1058 = vmatprep.subr.bf16.mxu0 0
      %1059 = vmatpush1.bf16.msra.mxu0 0
      %1060 = vmatprep.subr.bf16.mxu0 0
      %1061 = vmatpush1.bf16.msra.mxu0 0
      %1062 = vmatprep.subr.bf16.mxu0 0
      %1063 = vmatpush1.bf16.msra.mxu0 0
      %1064 = vmatprep.subr.bf16.mxu0 0
      %1065 = vmatpush1.bf16.msra.mxu0 0
      %1066 = vmatprep.subr.bf16.mxu0 0
      %1067 = vmatpush1.bf16.msra.mxu0 0
      %1068 = vmatprep.subr.bf16.mxu0 0
      %1069 = vmatpush1.bf16.msra.mxu0 0
      %1070 = vmatprep.subr.bf16.mxu0 0
      %1071 = vmatpush1.bf16.msra.mxu0 0
      %1072 = vmatprep.subr.bf16.mxu0 0
      %1073 = vmatpush1.bf16.msra.mxu0 0
      %1074 = vmatprep.subr.bf16.mxu0 0
      %1075 = vmatpush1.bf16.msra.mxu0 0
      %1076 = vmatprep.mubr.bf16.mxu0 0
      %1077 = vmatmul.mubr.bf16.gmra.mrb[0].mxu0 %v891
      %v1078 = vpop.f32.mrb[0].mxu0
      %v1079 = vadd.f32 %v1030, %v1078
      %v1080 = vpop.f32.mrb[0].mxu0
      %v1081 = vpop.f32.mrb[0].mxu0
      %v1082 = vadd.f32 %v1030, %v1081
      %v1083 = vpop.f32.mrb[0].mxu0
      %1084 = vmatprep.mubr.bf16.mxu0 0
      %1085 = vmatmul.mubr.bf16.gmra.mrb[0].mxu0 %v894
      %v1086 = vpop.f32.mrb[0].mxu0
      %v1087 = vadd.f32 %v1030, %v1086
      %v1088 = vpop.f32.mrb[0].mxu0
      %v1089 = vpop.f32.mrb[0].mxu0
      %v1090 = vpop.f32.mrb[0].mxu0
      %1091 = vdwg.mxu0
      %1095 = vrot.lane.b32.xlu0 %v931, 120
      %v1096 = vpop.permute.xlu0 %1095
      %1097 = vrot.lane.b32.xlu0 %v934, 120
      %v1098 = vpop.permute.xlu0 %1097
      %1099 = vrot.lane.b32.xlu0 %v939, 120
      %v1100 = vpop.permute.xlu0 %1099
      %1104 = vrot.lane.b32.xlu0 %v931, 112
      %v1105 = vpop.permute.xlu0 %1104
      %1106 = vrot.lane.b32.xlu0 %v934, 112
      %v1107 = vpop.permute.xlu0 %1106
      %1108 = vrot.lane.b32.xlu0 %v939, 112
      %v1109 = vpop.permute.xlu0 %1108
      %1113 = vrot.lane.b32.xlu0 %v931, 104
      %v1114 = vpop.permute.xlu0 %1113
      %1115 = vrot.lane.b32.xlu0 %v934, 104
      %v1116 = vpop.permute.xlu0 %1115
      %1117 = vrot.lane.b32.xlu0 %v939, 104
      %v1118 = vpop.permute.xlu0 %1117
      %v1122 = vcombine.low %v931, %v1105
      %v1123 = vcombine.high %v931, %v1105
      %v1125 = vunpack.c.l.s4 1983009808
      %v1126 = vunpack.c.0.s8 %v1125
      %v1127 = vlaneseq
      %v1128 = vshrl.u32 %v1127, 7
      %v1129 = vsub.s32 %v1126, %v1128
      %v1130 = vrot.slane %v1122, %v1129
      %v1132 = vunpack.c.l.s4 1983009808
      %v1133 = vunpack.c.0.s8 %v1132
      %v1134 = vlaneseq
      %v1135 = vshrl.u32 %v1134, 7
      %v1136 = vsub.s32 %v1133, %v1135
      %v1137 = vrot.slane %v1123, %v1136
      %v1138 = vcombine.low %v1096, %v1114
      %v1139 = vcombine.high %v1096, %v1114
      %v1141 = vunpack.c.l.s4 1983009808
      %v1142 = vunpack.c.0.s8 %v1141
      %v1143 = vlaneseq
      %v1144 = vshrl.u32 %v1143, 7
      %v1145 = vsub.s32 %v1142, %v1144
      %v1146 = vrot.slane %v1138, %v1145
      %v1148 = vunpack.c.l.s4 1983009808
      %v1149 = vunpack.c.0.s8 %v1148
      %v1150 = vlaneseq
      %v1151 = vshrl.u32 %v1150, 7
      %v1152 = vsub.s32 %v1149, %v1151
      %v1153 = vrot.slane %v1139, %v1152
      %v1154 = vcombine.low %v1130, %v1146
      %v1155 = vcombine.high %v1130, %v1146
      %v1157 = vunpack.c.l.s4 1934713408
      %v1158 = vunpack.c.0.s8 %v1157
      %v1159 = vlaneseq
      %v1160 = vshrl.u32 %v1159, 7
      %v1161 = vsub.s32 %v1158, %v1160
      %v1162 = vrot.slane %v1154, %v1161
      %v1164 = vunpack.c.l.s4 1934713408
      %v1165 = vunpack.c.0.s8 %v1164
      %v1166 = vlaneseq
      %v1167 = vshrl.u32 %v1166, 7
      %v1168 = vsub.s32 %v1165, %v1167
      %v1169 = vrot.slane %v1155, %v1168
      %v1170 = vcombine.low %v1137, %v1153
      %v1171 = vcombine.high %v1137, %v1153
      %v1173 = vunpack.c.l.s4 1934713408
      %v1174 = vunpack.c.0.s8 %v1173
      %v1175 = vlaneseq
      %v1176 = vshrl.u32 %v1175, 7
      %v1177 = vsub.s32 %v1174, %v1176
      %v1178 = vrot.slane %v1170, %v1177
      %v1180 = vunpack.c.l.s4 1934713408
      %v1181 = vunpack.c.0.s8 %v1180
      %v1182 = vlaneseq
      %v1183 = vshrl.u32 %v1182, 7
      %v1184 = vsub.s32 %v1181, %v1183
      %v1185 = vrot.slane %v1171, %v1184
      %v1186 = vcombine.high %v1162, 0.0
      %v1187 = vcombine.high %v1169, 0.0
      %v1188 = vcombine.high %v1178, 0.0
      %v1189 = vcombine.high %v1185, 0.0
      %v1190 = vcombine.low %v934, %v1107
      %v1191 = vcombine.high %v934, %v1107
      %v1193 = vunpack.c.l.s4 1983009808
      %v1194 = vunpack.c.0.s8 %v1193
      %v1195 = vlaneseq
      %v1196 = vshrl.u32 %v1195, 7
      %v1197 = vsub.s32 %v1194, %v1196
      %v1198 = vrot.slane %v1190, %v1197
      %v1200 = vunpack.c.l.s4 1983009808
      %v1201 = vunpack.c.0.s8 %v1200
      %v1202 = vlaneseq
      %v1203 = vshrl.u32 %v1202, 7
      %v1204 = vsub.s32 %v1201, %v1203
      %v1205 = vrot.slane %v1191, %v1204
      %v1206 = vcombine.low %v1098, %v1116
      %v1207 = vcombine.high %v1098, %v1116
      %v1209 = vunpack.c.l.s4 1983009808
      %v1210 = vunpack.c.0.s8 %v1209
      %v1211 = vlaneseq
      %v1212 = vshrl.u32 %v1211, 7
      %v1213 = vsub.s32 %v1210, %v1212
      %v1214 = vrot.slane %v1206, %v1213
      %v1216 = vunpack.c.l.s4 1983009808
      %v1217 = vunpack.c.0.s8 %v1216
      %v1218 = vlaneseq
      %v1219 = vshrl.u32 %v1218, 7
      %v1220 = vsub.s32 %v1217, %v1219
      %v1221 = vrot.slane %v1207, %v1220
      %v1222 = vcombine.low %v1198, %v1214
      %v1223 = vcombine.high %v1198, %v1214
      %v1225 = vunpack.c.l.s4 1934713408
      %v1226 = vunpack.c.0.s8 %v1225
      %v1227 = vlaneseq
      %v1228 = vshrl.u32 %v1227, 7
      %v1229 = vsub.s32 %v1226, %v1228
      %v1230 = vrot.slane %v1222, %v1229
      %v1232 = vunpack.c.l.s4 1934713408
      %v1233 = vunpack.c.0.s8 %v1232
      %v1234 = vlaneseq
      %v1235 = vshrl.u32 %v1234, 7
      %v1236 = vsub.s32 %v1233, %v1235
      %v1237 = vrot.slane %v1223, %v1236
      %v1238 = vcombine.low %v1205, %v1221
      %v1239 = vcombine.high %v1205, %v1221
      %v1241 = vunpack.c.l.s4 1934713408
      %v1242 = vunpack.c.0.s8 %v1241
      %v1243 = vlaneseq
      %v1244 = vshrl.u32 %v1243, 7
      %v1245 = vsub.s32 %v1242, %v1244
      %v1246 = vrot.slane %v1238, %v1245
      %v1248 = vunpack.c.l.s4 1934713408
      %v1249 = vunpack.c.0.s8 %v1248
      %v1250 = vlaneseq
      %v1251 = vshrl.u32 %v1250, 7
      %v1252 = vsub.s32 %v1249, %v1251
      %v1253 = vrot.slane %v1239, %v1252
      %v1254 = vcombine.high %v1230, 0.0
      %v1255 = vcombine.high %v1237, 0.0
      %v1256 = vcombine.high %v1246, 0.0
      %v1257 = vcombine.high %v1253, 0.0
      %v1258 = vcombine.low %v939, %v1109
      %v1260 = vunpack.c.l.s4 1983009808
      %v1261 = vunpack.c.0.s8 %v1260
      %v1262 = vlaneseq
      %v1263 = vshrl.u32 %v1262, 7
      %v1264 = vsub.s32 %v1261, %v1263
      %v1265 = vrot.slane %v1258, %v1264
      %v1266 = vcombine.low %v1100, %v1118
      %v1268 = vunpack.c.l.s4 1983009808
      %v1269 = vunpack.c.0.s8 %v1268
      %v1270 = vlaneseq
      %v1271 = vshrl.u32 %v1270, 7
      %v1272 = vsub.s32 %v1269, %v1271
      %v1273 = vrot.slane %v1266, %v1272
      %v1274 = vcombine.low %v1265, %v1273
      %v1276 = vunpack.c.l.s4 1934713408
      %v1277 = vunpack.c.0.s8 %v1276
      %v1278 = vlaneseq
      %v1279 = vshrl.u32 %v1278, 7
      %v1280 = vsub.s32 %v1277, %v1279
      %v1281 = vrot.slane %v1274, %v1280
      %v1282 = vcombine.low %v1162, %v1169
      %v1284 = vunpack.c.l.s4 1983009808
      %v1285 = vunpack.c.0.s8 %v1284
      %v1286 = vlaneseq
      %v1287 = vshrl.u32 %v1286, 7
      %v1288 = vsub.s32 %v1285, %v1287
      %v1289 = vrot.slane %v1282, %v1288
      %v1290 = vcombine.low %v1186, %v1187
      %v1292 = vunpack.c.l.s4 1983009808
      %v1293 = vunpack.c.0.s8 %v1292
      %v1294 = vlaneseq
      %v1295 = vshrl.u32 %v1294, 7
      %v1296 = vsub.s32 %v1293, %v1295
      %v1297 = vrot.slane %v1290, %v1296
      %v1298 = vcombine.low %v1178, %v1185
      %v1300 = vunpack.c.l.s4 1983009808
      %v1301 = vunpack.c.0.s8 %v1300
      %v1302 = vlaneseq
      %v1303 = vshrl.u32 %v1302, 7
      %v1304 = vsub.s32 %v1301, %v1303
      %v1305 = vrot.slane %v1298, %v1304
      %v1306 = vcombine.low %v1188, %v1189
      %v1308 = vunpack.c.l.s4 1983009808
      %v1309 = vunpack.c.0.s8 %v1308
      %v1310 = vlaneseq
      %v1311 = vshrl.u32 %v1310, 7
      %v1312 = vsub.s32 %v1309, %v1311
      %v1313 = vrot.slane %v1306, %v1312
      %v1314 = vcombine.low %v1289, %v1297
      %v1315 = vcombine.high %v1289, %v1297
      %v1317 = vunpack.c.l.s4 1934713408
      %v1318 = vunpack.c.0.s8 %v1317
      %v1319 = vlaneseq
      %v1320 = vshrl.u32 %v1319, 7
      %v1321 = vsub.s32 %v1318, %v1320
      %v1322 = vrot.slane %v1314, %v1321
      %v1324 = vunpack.c.l.s4 1934713408
      %v1325 = vunpack.c.0.s8 %v1324
      %v1326 = vlaneseq
      %v1327 = vshrl.u32 %v1326, 7
      %v1328 = vsub.s32 %v1325, %v1327
      %v1329 = vrot.slane %v1315, %v1328
      %v1330 = vcombine.low %v1305, %v1313
      %v1331 = vcombine.high %v1305, %v1313
      %v1333 = vunpack.c.l.s4 1934713408
      %v1334 = vunpack.c.0.s8 %v1333
      %v1335 = vlaneseq
      %v1336 = vshrl.u32 %v1335, 7
      %v1337 = vsub.s32 %v1334, %v1336
      %v1338 = vrot.slane %v1330, %v1337
      %v1340 = vunpack.c.l.s4 1934713408
      %v1341 = vunpack.c.0.s8 %v1340
      %v1342 = vlaneseq
      %v1343 = vshrl.u32 %v1342, 7
      %v1344 = vsub.s32 %v1341, %v1343
      %v1345 = vrot.slane %v1331, %v1344
      %v1346 = vcombine.low %v1322, %v1338
      %v1347 = vcombine.high %v1322, %v1338
      %v1348 = vcombine.low %v1329, %v1345
      %v1349 = vcombine.high %v1329, %v1345
      %v1351 = vunpack.c.l.s4 1983009808
      %v1352 = vunpack.c.0.s8 %v1351
      %v1353 = vlaneseq
      %v1354 = vshrl.u32 %v1353, 7
      %v1355 = vsub.s32 %v1352, %v1354
      %v1356 = vrot.slane %v1230, %v1355
      %v1357 = vcombine.high %v1356, 0.0
      %v1359 = vunpack.c.l.s4 1934713408
      %v1360 = vunpack.c.0.s8 %v1359
      %v1361 = vlaneseq
      %v1362 = vshrl.u32 %v1361, 7
      %v1363 = vsub.s32 %v1360, %v1362
      %v1364 = vrot.slane %v1356, %v1363
      %v1366 = vunpack.c.l.s4 1934713408
      %v1367 = vunpack.c.0.s8 %v1366
      %v1368 = vlaneseq
      %v1369 = vshrl.u32 %v1368, 7
      %v1370 = vsub.s32 %v1367, %v1369
      %v1371 = vrot.slane %v1357, %v1370
      %v1372 = vcombine.high %v1364, 0.0
      %v1373 = vcombine.high %v1371, 0.0
      %v1374 = vcombine.low %v1254, %v1255
      %v1376 = vunpack.c.l.s4 1983009808
      %v1377 = vunpack.c.0.s8 %v1376
      %v1378 = vlaneseq
      %v1379 = vshrl.u32 %v1378, 7
      %v1380 = vsub.s32 %v1377, %v1379
      %v1381 = vrot.slane %v1374, %v1380
      %v1382 = vcombine.low %v1237, %v1246
      %v1384 = vunpack.c.l.s4 1983009808
      %v1385 = vunpack.c.0.s8 %v1384
      %v1386 = vlaneseq
      %v1387 = vshrl.u32 %v1386, 7
      %v1388 = vsub.s32 %v1385, %v1387
      %v1389 = vrot.slane %v1382, %v1388
      %v1390 = vcombine.low %v1256, %v1257
      %v1392 = vunpack.c.l.s4 1983009808
      %v1393 = vunpack.c.0.s8 %v1392
      %v1394 = vlaneseq
      %v1395 = vshrl.u32 %v1394, 7
      %v1396 = vsub.s32 %v1393, %v1395
      %v1397 = vrot.slane %v1390, %v1396
      %v1398 = vcombine.low %v1253, %v1281
      %v1400 = vunpack.c.l.s4 1983009808
      %v1401 = vunpack.c.0.s8 %v1400
      %v1402 = vlaneseq
      %v1403 = vshrl.u32 %v1402, 7
      %v1404 = vsub.s32 %v1401, %v1403
      %v1405 = vrot.slane %v1398, %v1404
      %v1406 = vcombine.low %v1381, %v1389
      %v1407 = vcombine.high %v1381, %v1389
      %v1409 = vunpack.c.l.s4 1934713408
      %v1410 = vunpack.c.0.s8 %v1409
      %v1411 = vlaneseq
      %v1412 = vshrl.u32 %v1411, 7
      %v1413 = vsub.s32 %v1410, %v1412
      %v1414 = vrot.slane %v1406, %v1413
      %v1416 = vunpack.c.l.s4 1934713408
      %v1417 = vunpack.c.0.s8 %v1416
      %v1418 = vlaneseq
      %v1419 = vshrl.u32 %v1418, 7
      %v1420 = vsub.s32 %v1417, %v1419
      %v1421 = vrot.slane %v1407, %v1420
      %v1422 = vcombine.low %v1397, %v1405
      %v1423 = vcombine.high %v1397, %v1405
      %v1425 = vunpack.c.l.s4 1934713408
      %v1426 = vunpack.c.0.s8 %v1425
      %v1427 = vlaneseq
      %v1428 = vshrl.u32 %v1427, 7
      %v1429 = vsub.s32 %v1426, %v1428
      %v1430 = vrot.slane %v1422, %v1429
      %v1432 = vunpack.c.l.s4 1934713408
      %v1433 = vunpack.c.0.s8 %v1432
      %v1434 = vlaneseq
      %v1435 = vshrl.u32 %v1434, 7
      %v1436 = vsub.s32 %v1433, %v1435
      %v1437 = vrot.slane %v1423, %v1436
      %v1438 = vcombine.low %v1414, %v1430
      %v1439 = vcombine.high %v1414, %v1430
      %v1440 = vcombine.low %v1421, %v1437
      %v1441 = vcombine.high %v1421, %v1437
      %v1442 = vcombine.high %v1281, 0.0
      %v1444 = vunpack.c.l.s4 1983009808
      %v1445 = vunpack.c.0.s8 %v1444
      %v1446 = vlaneseq
      %v1447 = vshrl.u32 %v1446, 7
      %v1448 = vsub.s32 %v1445, %v1447
      %v1449 = vrot.slane %v1442, %v1448
      %v1450 = vcombine.high %v1449, 0.0
      %v1452 = vunpack.c.l.s4 1934713408
      %v1453 = vunpack.c.0.s8 %v1452
      %v1454 = vlaneseq
      %v1455 = vshrl.u32 %v1454, 7
      %v1456 = vsub.s32 %v1453, %v1455
      %v1457 = vrot.slane %v1449, %v1456
      %v1459 = vunpack.c.l.s4 1934713408
      %v1460 = vunpack.c.0.s8 %v1459
      %v1461 = vlaneseq
      %v1462 = vshrl.u32 %v1461, 7
      %v1463 = vsub.s32 %v1460, %v1462
      %v1464 = vrot.slane %v1450, %v1463
      %v1465 = vcombine.high %v1457, 0.0
      %v1466 = vcombine.high %v1464, 0.0
      %v1467 = vpack.c.bf16 %v1364, %v1346
      %v1468 = vpack.c.bf16 %v1372, %v1347
      %v1469 = vpack.c.bf16 %v1371, %v1348
      %v1470 = vpack.c.bf16 %v1373, %v1349
      %v1471 = vpack.c.bf16 %v1457, %v1438
      %v1472 = vpack.c.bf16 %v1465, %v1439
      %v1473 = vpack.c.bf16 %v1464, %v1440
      %v1474 = vpack.c.bf16 %v1466, %v1441
      %1478 = vrot.lane.b32.xlu0 %v1005, 120
      %v1479 = vpop.permute.xlu0 %1478
      %1480 = vrot.lane.b32.xlu0 %v1008, 120
      %v1481 = vpop.permute.xlu0 %1480
      %1482 = vrot.lane.b32.xlu0 %v1013, 120
      %v1483 = vpop.permute.xlu0 %1482
      %1487 = vrot.lane.b32.xlu0 %v1005, 112
      %v1488 = vpop.permute.xlu0 %1487
      %1489 = vrot.lane.b32.xlu0 %v1008, 112
      %v1490 = vpop.permute.xlu0 %1489
      %1491 = vrot.lane.b32.xlu0 %v1013, 112
      %v1492 = vpop.permute.xlu0 %1491
      %1496 = vrot.lane.b32.xlu0 %v1005, 104
      %v1497 = vpop.permute.xlu0 %1496
      %1498 = vrot.lane.b32.xlu0 %v1008, 104
      %v1499 = vpop.permute.xlu0 %1498
      %1500 = vrot.lane.b32.xlu0 %v1013, 104
      %v1501 = vpop.permute.xlu0 %1500
      %v1505 = vcombine.low %v1005, %v1488
      %v1506 = vcombine.high %v1005, %v1488
      %v1508 = vunpack.c.l.s4 1983009808
      %v1509 = vunpack.c.0.s8 %v1508
      %v1510 = vlaneseq
      %v1511 = vshrl.u32 %v1510, 7
      %v1512 = vsub.s32 %v1509, %v1511
      %v1513 = vrot.slane %v1505, %v1512
      %v1515 = vunpack.c.l.s4 1983009808
      %v1516 = vunpack.c.0.s8 %v1515
      %v1517 = vlaneseq
      %v1518 = vshrl.u32 %v1517, 7
      %v1519 = vsub.s32 %v1516, %v1518
      %v1520 = vrot.slane %v1506, %v1519
      %v1521 = vcombine.low %v1479, %v1497
      %v1522 = vcombine.high %v1479, %v1497
      %v1524 = vunpack.c.l.s4 1983009808
      %v1525 = vunpack.c.0.s8 %v1524
      %v1526 = vlaneseq
      %v1527 = vshrl.u32 %v1526, 7
      %v1528 = vsub.s32 %v1525, %v1527
      %v1529 = vrot.slane %v1521, %v1528
      %v1531 = vunpack.c.l.s4 1983009808
      %v1532 = vunpack.c.0.s8 %v1531
      %v1533 = vlaneseq
      %v1534 = vshrl.u32 %v1533, 7
      %v1535 = vsub.s32 %v1532, %v1534
      %v1536 = vrot.slane %v1522, %v1535
      %v1537 = vcombine.low %v1513, %v1529
      %v1538 = vcombine.high %v1513, %v1529
      %v1540 = vunpack.c.l.s4 1934713408
      %v1541 = vunpack.c.0.s8 %v1540
      %v1542 = vlaneseq
      %v1543 = vshrl.u32 %v1542, 7
      %v1544 = vsub.s32 %v1541, %v1543
      %v1545 = vrot.slane %v1537, %v1544
      %v1547 = vunpack.c.l.s4 1934713408
      %v1548 = vunpack.c.0.s8 %v1547
      %v1549 = vlaneseq
      %v1550 = vshrl.u32 %v1549, 7
      %v1551 = vsub.s32 %v1548, %v1550
      %v1552 = vrot.slane %v1538, %v1551
      %v1553 = vcombine.low %v1520, %v1536
      %v1554 = vcombine.high %v1520, %v1536
      %v1556 = vunpack.c.l.s4 1934713408
      %v1557 = vunpack.c.0.s8 %v1556
      %v1558 = vlaneseq
      %v1559 = vshrl.u32 %v1558, 7
      %v1560 = vsub.s32 %v1557, %v1559
      %v1561 = vrot.slane %v1553, %v1560
      %v1563 = vunpack.c.l.s4 1934713408
      %v1564 = vunpack.c.0.s8 %v1563
      %v1565 = vlaneseq
      %v1566 = vshrl.u32 %v1565, 7
      %v1567 = vsub.s32 %v1564, %v1566
      %v1568 = vrot.slane %v1554, %v1567
      %v1569 = vcombine.high %v1545, 0.0
      %v1570 = vcombine.high %v1552, 0.0
      %v1571 = vcombine.high %v1561, 0.0
      %v1572 = vcombine.high %v1568, 0.0
      %v1573 = vcombine.low %v1008, %v1490
      %v1574 = vcombine.high %v1008, %v1490
      %v1576 = vunpack.c.l.s4 1983009808
      %v1577 = vunpack.c.0.s8 %v1576
      %v1578 = vlaneseq
      %v1579 = vshrl.u32 %v1578, 7
      %v1580 = vsub.s32 %v1577, %v1579
      %v1581 = vrot.slane %v1573, %v1580
      %v1583 = vunpack.c.l.s4 1983009808
      %v1584 = vunpack.c.0.s8 %v1583
      %v1585 = vlaneseq
      %v1586 = vshrl.u32 %v1585, 7
      %v1587 = vsub.s32 %v1584, %v1586
      %v1588 = vrot.slane %v1574, %v1587
      %v1589 = vcombine.low %v1481, %v1499
      %v1590 = vcombine.high %v1481, %v1499
      %v1592 = vunpack.c.l.s4 1983009808
      %v1593 = vunpack.c.0.s8 %v1592
      %v1594 = vlaneseq
      %v1595 = vshrl.u32 %v1594, 7
      %v1596 = vsub.s32 %v1593, %v1595
      %v1597 = vrot.slane %v1589, %v1596
      %v1599 = vunpack.c.l.s4 1983009808
      %v1600 = vunpack.c.0.s8 %v1599
      %v1601 = vlaneseq
      %v1602 = vshrl.u32 %v1601, 7
      %v1603 = vsub.s32 %v1600, %v1602
      %v1604 = vrot.slane %v1590, %v1603
      %v1605 = vcombine.low %v1581, %v1597
      %v1606 = vcombine.high %v1581, %v1597
      %v1608 = vunpack.c.l.s4 1934713408
      %v1609 = vunpack.c.0.s8 %v1608
      %v1610 = vlaneseq
      %v1611 = vshrl.u32 %v1610, 7
      %v1612 = vsub.s32 %v1609, %v1611
      %v1613 = vrot.slane %v1605, %v1612
      %v1615 = vunpack.c.l.s4 1934713408
      %v1616 = vunpack.c.0.s8 %v1615
      %v1617 = vlaneseq
      %v1618 = vshrl.u32 %v1617, 7
      %v1619 = vsub.s32 %v1616, %v1618
      %v1620 = vrot.slane %v1606, %v1619
      %v1621 = vcombine.low %v1588, %v1604
      %v1622 = vcombine.high %v1588, %v1604
      %v1624 = vunpack.c.l.s4 1934713408
      %v1625 = vunpack.c.0.s8 %v1624
      %v1626 = vlaneseq
      %v1627 = vshrl.u32 %v1626, 7
      %v1628 = vsub.s32 %v1625, %v1627
      %v1629 = vrot.slane %v1621, %v1628
      %v1631 = vunpack.c.l.s4 1934713408
      %v1632 = vunpack.c.0.s8 %v1631
      %v1633 = vlaneseq
      %v1634 = vshrl.u32 %v1633, 7
      %v1635 = vsub.s32 %v1632, %v1634
      %v1636 = vrot.slane %v1622, %v1635
      %v1637 = vcombine.high %v1613, 0.0
      %v1638 = vcombine.high %v1620, 0.0
      %v1639 = vcombine.high %v1629, 0.0
      %v1640 = vcombine.high %v1636, 0.0
      %v1641 = vcombine.low %v1013, %v1492
      %v1643 = vunpack.c.l.s4 1983009808
      %v1644 = vunpack.c.0.s8 %v1643
      %v1645 = vlaneseq
      %v1646 = vshrl.u32 %v1645, 7
      %v1647 = vsub.s32 %v1644, %v1646
      %v1648 = vrot.slane %v1641, %v1647
      %v1649 = vcombine.low %v1483, %v1501
      %v1651 = vunpack.c.l.s4 1983009808
      %v1652 = vunpack.c.0.s8 %v1651
      %v1653 = vlaneseq
      %v1654 = vshrl.u32 %v1653, 7
      %v1655 = vsub.s32 %v1652, %v1654
      %v1656 = vrot.slane %v1649, %v1655
      %v1657 = vcombine.low %v1648, %v1656
      %v1659 = vunpack.c.l.s4 1934713408
      %v1660 = vunpack.c.0.s8 %v1659
      %v1661 = vlaneseq
      %v1662 = vshrl.u32 %v1661, 7
      %v1663 = vsub.s32 %v1660, %v1662
      %v1664 = vrot.slane %v1657, %v1663
      %v1665 = vcombine.low %v1545, %v1552
      %v1667 = vunpack.c.l.s4 1983009808
      %v1668 = vunpack.c.0.s8 %v1667
      %v1669 = vlaneseq
      %v1670 = vshrl.u32 %v1669, 7
      %v1671 = vsub.s32 %v1668, %v1670
      %v1672 = vrot.slane %v1665, %v1671
      %v1673 = vcombine.low %v1569, %v1570
      %v1675 = vunpack.c.l.s4 1983009808
      %v1676 = vunpack.c.0.s8 %v1675
      %v1677 = vlaneseq
      %v1678 = vshrl.u32 %v1677, 7
      %v1679 = vsub.s32 %v1676, %v1678
      %v1680 = vrot.slane %v1673, %v1679
      %v1681 = vcombine.low %v1561, %v1568
      %v1683 = vunpack.c.l.s4 1983009808
      %v1684 = vunpack.c.0.s8 %v1683
      %v1685 = vlaneseq
      %v1686 = vshrl.u32 %v1685, 7
      %v1687 = vsub.s32 %v1684, %v1686
      %v1688 = vrot.slane %v1681, %v1687
      %v1689 = vcombine.low %v1571, %v1572
      %v1691 = vunpack.c.l.s4 1983009808
      %v1692 = vunpack.c.0.s8 %v1691
      %v1693 = vlaneseq
      %v1694 = vshrl.u32 %v1693, 7
      %v1695 = vsub.s32 %v1692, %v1694
      %v1696 = vrot.slane %v1689, %v1695
      %v1697 = vcombine.low %v1672, %v1680
      %v1698 = vcombine.high %v1672, %v1680
      %v1700 = vunpack.c.l.s4 1934713408
      %v1701 = vunpack.c.0.s8 %v1700
      %v1702 = vlaneseq
      %v1703 = vshrl.u32 %v1702, 7
      %v1704 = vsub.s32 %v1701, %v1703
      %v1705 = vrot.slane %v1697, %v1704
      %v1707 = vunpack.c.l.s4 1934713408
      %v1708 = vunpack.c.0.s8 %v1707
      %v1709 = vlaneseq
      %v1710 = vshrl.u32 %v1709, 7
      %v1711 = vsub.s32 %v1708, %v1710
      %v1712 = vrot.slane %v1698, %v1711
      %v1713 = vcombine.low %v1688, %v1696
      %v1714 = vcombine.high %v1688, %v1696
      %v1716 = vunpack.c.l.s4 1934713408
      %v1717 = vunpack.c.0.s8 %v1716
      %v1718 = vlaneseq
      %v1719 = vshrl.u32 %v1718, 7
      %v1720 = vsub.s32 %v1717, %v1719
      %v1721 = vrot.slane %v1713, %v1720
      %v1723 = vunpack.c.l.s4 1934713408
      %v1724 = vunpack.c.0.s8 %v1723
      %v1725 = vlaneseq
      %v1726 = vshrl.u32 %v1725, 7
      %v1727 = vsub.s32 %v1724, %v1726
      %v1728 = vrot.slane %v1714, %v1727
      %v1729 = vcombine.low %v1705, %v1721
      %v1730 = vcombine.high %v1705, %v1721
      %v1731 = vcombine.low %v1712, %v1728
      %v1732 = vcombine.high %v1712, %v1728
      %v1734 = vunpack.c.l.s4 1983009808
      %v1735 = vunpack.c.0.s8 %v1734
      %v1736 = vlaneseq
      %v1737 = vshrl.u32 %v1736, 7
      %v1738 = vsub.s32 %v1735, %v1737
      %v1739 = vrot.slane %v1613, %v1738
      %v1740 = vcombine.high %v1739, 0.0
      %v1742 = vunpack.c.l.s4 1934713408
      %v1743 = vunpack.c.0.s8 %v1742
      %v1744 = vlaneseq
      %v1745 = vshrl.u32 %v1744, 7
      %v1746 = vsub.s32 %v1743, %v1745
      %v1747 = vrot.slane %v1739, %v1746
      %v1749 = vunpack.c.l.s4 1934713408
      %v1750 = vunpack.c.0.s8 %v1749
      %v1751 = vlaneseq
      %v1752 = vshrl.u32 %v1751, 7
      %v1753 = vsub.s32 %v1750, %v1752
      %v1754 = vrot.slane %v1740, %v1753
      %v1755 = vcombine.high %v1747, 0.0
      %v1756 = vcombine.high %v1754, 0.0
      %v1757 = vcombine.low %v1637, %v1638
      %v1759 = vunpack.c.l.s4 1983009808
      %v1760 = vunpack.c.0.s8 %v1759
      %v1761 = vlaneseq
      %v1762 = vshrl.u32 %v1761, 7
      %v1763 = vsub.s32 %v1760, %v1762
      %v1764 = vrot.slane %v1757, %v1763
      %v1765 = vcombine.low %v1620, %v1629
      %v1767 = vunpack.c.l.s4 1983009808
      %v1768 = vunpack.c.0.s8 %v1767
      %v1769 = vlaneseq
      %v1770 = vshrl.u32 %v1769, 7
      %v1771 = vsub.s32 %v1768, %v1770
      %v1772 = vrot.slane %v1765, %v1771
      %v1773 = vcombine.low %v1639, %v1640
      %v1775 = vunpack.c.l.s4 1983009808
      %v1776 = vunpack.c.0.s8 %v1775
      %v1777 = vlaneseq
      %v1778 = vshrl.u32 %v1777, 7
      %v1779 = vsub.s32 %v1776, %v1778
      %v1780 = vrot.slane %v1773, %v1779
      %v1781 = vcombine.low %v1636, %v1664
      %v1783 = vunpack.c.l.s4 1983009808
      %v1784 = vunpack.c.0.s8 %v1783
      %v1785 = vlaneseq
      %v1786 = vshrl.u32 %v1785, 7
      %v1787 = vsub.s32 %v1784, %v1786
      %v1788 = vrot.slane %v1781, %v1787
      %v1789 = vcombine.low %v1764, %v1772
      %v1790 = vcombine.high %v1764, %v1772
      %v1792 = vunpack.c.l.s4 1934713408
      %v1793 = vunpack.c.0.s8 %v1792
      %v1794 = vlaneseq
      %v1795 = vshrl.u32 %v1794, 7
      %v1796 = vsub.s32 %v1793, %v1795
      %v1797 = vrot.slane %v1789, %v1796
      %v1799 = vunpack.c.l.s4 1934713408
      %v1800 = vunpack.c.0.s8 %v1799
      %v1801 = vlaneseq
      %v1802 = vshrl.u32 %v1801, 7
      %v1803 = vsub.s32 %v1800, %v1802
      %v1804 = vrot.slane %v1790, %v1803
      %v1805 = vcombine.low %v1780, %v1788
      %v1806 = vcombine.high %v1780, %v1788
      %v1808 = vunpack.c.l.s4 1934713408
      %v1809 = vunpack.c.0.s8 %v1808
      %v1810 = vlaneseq
      %v1811 = vshrl.u32 %v1810, 7
      %v1812 = vsub.s32 %v1809, %v1811
      %v1813 = vrot.slane %v1805, %v1812
      %v1815 = vunpack.c.l.s4 1934713408
      %v1816 = vunpack.c.0.s8 %v1815
      %v1817 = vlaneseq
      %v1818 = vshrl.u32 %v1817, 7
      %v1819 = vsub.s32 %v1816, %v1818
      %v1820 = vrot.slane %v1806, %v1819
      %v1821 = vcombine.low %v1797, %v1813
      %v1822 = vcombine.high %v1797, %v1813
      %v1823 = vcombine.low %v1804, %v1820
      %v1824 = vcombine.high %v1804, %v1820
      %v1825 = vcombine.high %v1664, 0.0
      %v1827 = vunpack.c.l.s4 1983009808
      %v1828 = vunpack.c.0.s8 %v1827
      %v1829 = vlaneseq
      %v1830 = vshrl.u32 %v1829, 7
      %v1831 = vsub.s32 %v1828, %v1830
      %v1832 = vrot.slane %v1825, %v1831
      %v1833 = vcombine.high %v1832, 0.0
      %v1835 = vunpack.c.l.s4 1934713408
      %v1836 = vunpack.c.0.s8 %v1835
      %v1837 = vlaneseq
      %v1838 = vshrl.u32 %v1837, 7
      %v1839 = vsub.s32 %v1836, %v1838
      %v1840 = vrot.slane %v1832, %v1839
      %v1842 = vunpack.c.l.s4 1934713408
      %v1843 = vunpack.c.0.s8 %v1842
      %v1844 = vlaneseq
      %v1845 = vshrl.u32 %v1844, 7
      %v1846 = vsub.s32 %v1843, %v1845
      %v1847 = vrot.slane %v1833, %v1846
      %v1848 = vcombine.high %v1840, 0.0
      %v1849 = vcombine.high %v1847, 0.0
      %v1850 = vpack.c.bf16 %v1747, %v1729
      %v1851 = vpack.c.bf16 %v1755, %v1730
      %v1852 = vpack.c.bf16 %v1754, %v1731
      %v1853 = vpack.c.bf16 %v1756, %v1732
      %v1854 = vpack.c.bf16 %v1840, %v1821
      %v1855 = vpack.c.bf16 %v1848, %v1822
      %v1856 = vpack.c.bf16 %v1847, %v1823
      %v1857 = vpack.c.bf16 %v1849, %v1824
      %1861 = vrot.lane.b32.xlu0 %v1079, 120
      %v1862 = vpop.permute.xlu0 %1861
      %1863 = vrot.lane.b32.xlu0 %v1082, 120
      %v1864 = vpop.permute.xlu0 %1863
      %1865 = vrot.lane.b32.xlu0 %v1087, 120
      %v1866 = vpop.permute.xlu0 %1865
      %1870 = vrot.lane.b32.xlu0 %v1079, 112
      %v1871 = vpop.permute.xlu0 %1870
      %1872 = vrot.lane.b32.xlu0 %v1082, 112
      %v1873 = vpop.permute.xlu0 %1872
      %1874 = vrot.lane.b32.xlu0 %v1087, 112
      %v1875 = vpop.permute.xlu0 %1874
      %1879 = vrot.lane.b32.xlu0 %v1079, 104
      %v1880 = vpop.permute.xlu0 %1879
      %1881 = vrot.lane.b32.xlu0 %v1082, 104
      %v1882 = vpop.permute.xlu0 %1881
      %1883 = vrot.lane.b32.xlu0 %v1087, 104
      %v1884 = vpop.permute.xlu0 %1883
      %v1888 = vcombine.low %v1079, %v1871
      %v1889 = vcombine.high %v1079, %v1871
      %v1891 = vunpack.c.l.s4 1983009808
      %v1892 = vunpack.c.0.s8 %v1891
      %v1893 = vlaneseq
      %v1894 = vshrl.u32 %v1893, 7
      %v1895 = vsub.s32 %v1892, %v1894
      %v1896 = vrot.slane %v1888, %v1895
      %v1898 = vunpack.c.l.s4 1983009808
      %v1899 = vunpack.c.0.s8 %v1898
      %v1900 = vlaneseq
      %v1901 = vshrl.u32 %v1900, 7
      %v1902 = vsub.s32 %v1899, %v1901
      %v1903 = vrot.slane %v1889, %v1902
      %v1904 = vcombine.low %v1862, %v1880
      %v1905 = vcombine.high %v1862, %v1880
      %v1907 = vunpack.c.l.s4 1983009808
      %v1908 = vunpack.c.0.s8 %v1907
      %v1909 = vlaneseq
      %v1910 = vshrl.u32 %v1909, 7
      %v1911 = vsub.s32 %v1908, %v1910
      %v1912 = vrot.slane %v1904, %v1911
      %v1914 = vunpack.c.l.s4 1983009808
      %v1915 = vunpack.c.0.s8 %v1914
      %v1916 = vlaneseq
      %v1917 = vshrl.u32 %v1916, 7
      %v1918 = vsub.s32 %v1915, %v1917
      %v1919 = vrot.slane %v1905, %v1918
      %v1920 = vcombine.low %v1896, %v1912
      %v1921 = vcombine.high %v1896, %v1912
      %v1923 = vunpack.c.l.s4 1934713408
      %v1924 = vunpack.c.0.s8 %v1923
      %v1925 = vlaneseq
      %v1926 = vshrl.u32 %v1925, 7
      %v1927 = vsub.s32 %v1924, %v1926
      %v1928 = vrot.slane %v1920, %v1927
      %v1930 = vunpack.c.l.s4 1934713408
      %v1931 = vunpack.c.0.s8 %v1930
      %v1932 = vlaneseq
      %v1933 = vshrl.u32 %v1932, 7
      %v1934 = vsub.s32 %v1931, %v1933
      %v1935 = vrot.slane %v1921, %v1934
      %v1936 = vcombine.low %v1903, %v1919
      %v1937 = vcombine.high %v1903, %v1919
      %v1939 = vunpack.c.l.s4 1934713408
      %v1940 = vunpack.c.0.s8 %v1939
      %v1941 = vlaneseq
      %v1942 = vshrl.u32 %v1941, 7
      %v1943 = vsub.s32 %v1940, %v1942
      %v1944 = vrot.slane %v1936, %v1943
      %v1946 = vunpack.c.l.s4 1934713408
      %v1947 = vunpack.c.0.s8 %v1946
      %v1948 = vlaneseq
      %v1949 = vshrl.u32 %v1948, 7
      %v1950 = vsub.s32 %v1947, %v1949
      %v1951 = vrot.slane %v1937, %v1950
      %v1952 = vcombine.high %v1928, 0.0
      %v1953 = vcombine.high %v1935, 0.0
      %v1954 = vcombine.high %v1944, 0.0
      %v1955 = vcombine.high %v1951, 0.0
      %v1956 = vcombine.low %v1082, %v1873
      %v1957 = vcombine.high %v1082, %v1873
      %v1959 = vunpack.c.l.s4 1983009808
      %v1960 = vunpack.c.0.s8 %v1959
      %v1961 = vlaneseq
      %v1962 = vshrl.u32 %v1961, 7
      %v1963 = vsub.s32 %v1960, %v1962
      %v1964 = vrot.slane %v1956, %v1963
      %v1966 = vunpack.c.l.s4 1983009808
      %v1967 = vunpack.c.0.s8 %v1966
      %v1968 = vlaneseq
      %v1969 = vshrl.u32 %v1968, 7
      %v1970 = vsub.s32 %v1967, %v1969
      %v1971 = vrot.slane %v1957, %v1970
      %v1972 = vcombine.low %v1864, %v1882
      %v1973 = vcombine.high %v1864, %v1882
      %v1975 = vunpack.c.l.s4 1983009808
      %v1976 = vunpack.c.0.s8 %v1975
      %v1977 = vlaneseq
      %v1978 = vshrl.u32 %v1977, 7
      %v1979 = vsub.s32 %v1976, %v1978
      %v1980 = vrot.slane %v1972, %v1979
      %v1982 = vunpack.c.l.s4 1983009808
      %v1983 = vunpack.c.0.s8 %v1982
      %v1984 = vlaneseq
      %v1985 = vshrl.u32 %v1984, 7
      %v1986 = vsub.s32 %v1983, %v1985
      %v1987 = vrot.slane %v1973, %v1986
      %v1988 = vcombine.low %v1964, %v1980
      %v1989 = vcombine.high %v1964, %v1980
      %v1991 = vunpack.c.l.s4 1934713408
      %v1992 = vunpack.c.0.s8 %v1991
      %v1993 = vlaneseq
      %v1994 = vshrl.u32 %v1993, 7
      %v1995 = vsub.s32 %v1992, %v1994
      %v1996 = vrot.slane %v1988, %v1995
      %v1998 = vunpack.c.l.s4 1934713408
      %v1999 = vunpack.c.0.s8 %v1998
      %v2000 = vlaneseq
      %v2001 = vshrl.u32 %v2000, 7
      %v2002 = vsub.s32 %v1999, %v2001
      %v2003 = vrot.slane %v1989, %v2002
      %v2004 = vcombine.low %v1971, %v1987
      %v2005 = vcombine.high %v1971, %v1987
      %v2007 = vunpack.c.l.s4 1934713408
      %v2008 = vunpack.c.0.s8 %v2007
      %v2009 = vlaneseq
      %v2010 = vshrl.u32 %v2009, 7
      %v2011 = vsub.s32 %v2008, %v2010
      %v2012 = vrot.slane %v2004, %v2011
      %v2014 = vunpack.c.l.s4 1934713408
      %v2015 = vunpack.c.0.s8 %v2014
      %v2016 = vlaneseq
      %v2017 = vshrl.u32 %v2016, 7
      %v2018 = vsub.s32 %v2015, %v2017
      %v2019 = vrot.slane %v2005, %v2018
      %v2020 = vcombine.high %v1996, 0.0
      %v2021 = vcombine.high %v2003, 0.0
      %v2022 = vcombine.high %v2012, 0.0
      %v2023 = vcombine.high %v2019, 0.0
      %v2024 = vcombine.low %v1087, %v1875
      %v2026 = vunpack.c.l.s4 1983009808
      %v2027 = vunpack.c.0.s8 %v2026
      %v2028 = vlaneseq
      %v2029 = vshrl.u32 %v2028, 7
      %v2030 = vsub.s32 %v2027, %v2029
      %v2031 = vrot.slane %v2024, %v2030
      %v2032 = vcombine.low %v1866, %v1884
      %v2034 = vunpack.c.l.s4 1983009808
      %v2035 = vunpack.c.0.s8 %v2034
      %v2036 = vlaneseq
      %v2037 = vshrl.u32 %v2036, 7
      %v2038 = vsub.s32 %v2035, %v2037
      %v2039 = vrot.slane %v2032, %v2038
      %v2040 = vcombine.low %v2031, %v2039
      %v2042 = vunpack.c.l.s4 1934713408
      %v2043 = vunpack.c.0.s8 %v2042
      %v2044 = vlaneseq
      %v2045 = vshrl.u32 %v2044, 7
      %v2046 = vsub.s32 %v2043, %v2045
      %v2047 = vrot.slane %v2040, %v2046
      %v2048 = vcombine.low %v1928, %v1935
      %v2050 = vunpack.c.l.s4 1983009808
      %v2051 = vunpack.c.0.s8 %v2050
      %v2052 = vlaneseq
      %v2053 = vshrl.u32 %v2052, 7
      %v2054 = vsub.s32 %v2051, %v2053
      %v2055 = vrot.slane %v2048, %v2054
      %v2056 = vcombine.low %v1952, %v1953
      %v2058 = vunpack.c.l.s4 1983009808
      %v2059 = vunpack.c.0.s8 %v2058
      %v2060 = vlaneseq
      %v2061 = vshrl.u32 %v2060, 7
      %v2062 = vsub.s32 %v2059, %v2061
      %v2063 = vrot.slane %v2056, %v2062
      %v2064 = vcombine.low %v1944, %v1951
      %v2066 = vunpack.c.l.s4 1983009808
      %v2067 = vunpack.c.0.s8 %v2066
      %v2068 = vlaneseq
      %v2069 = vshrl.u32 %v2068, 7
      %v2070 = vsub.s32 %v2067, %v2069
      %v2071 = vrot.slane %v2064, %v2070
      %v2072 = vcombine.low %v1954, %v1955
      %v2074 = vunpack.c.l.s4 1983009808
      %v2075 = vunpack.c.0.s8 %v2074
      %v2076 = vlaneseq
      %v2077 = vshrl.u32 %v2076, 7
      %v2078 = vsub.s32 %v2075, %v2077
      %v2079 = vrot.slane %v2072, %v2078
      %v2080 = vcombine.low %v2055, %v2063
      %v2081 = vcombine.high %v2055, %v2063
      %v2083 = vunpack.c.l.s4 1934713408
      %v2084 = vunpack.c.0.s8 %v2083
      %v2085 = vlaneseq
      %v2086 = vshrl.u32 %v2085, 7
      %v2087 = vsub.s32 %v2084, %v2086
      %v2088 = vrot.slane %v2080, %v2087
      %v2090 = vunpack.c.l.s4 1934713408
      %v2091 = vunpack.c.0.s8 %v2090
      %v2092 = vlaneseq
      %v2093 = vshrl.u32 %v2092, 7
      %v2094 = vsub.s32 %v2091, %v2093
      %v2095 = vrot.slane %v2081, %v2094
      %v2096 = vcombine.low %v2071, %v2079
      %v2097 = vcombine.high %v2071, %v2079
      %v2099 = vunpack.c.l.s4 1934713408
      %v2100 = vunpack.c.0.s8 %v2099
      %v2101 = vlaneseq
      %v2102 = vshrl.u32 %v2101, 7
      %v2103 = vsub.s32 %v2100, %v2102
      %v2104 = vrot.slane %v2096, %v2103
      %v2106 = vunpack.c.l.s4 1934713408
      %v2107 = vunpack.c.0.s8 %v2106
      %v2108 = vlaneseq
      %v2109 = vshrl.u32 %v2108, 7
      %v2110 = vsub.s32 %v2107, %v2109
      %v2111 = vrot.slane %v2097, %v2110
      %v2112 = vcombine.low %v2088, %v2104
      %v2113 = vcombine.high %v2088, %v2104
      %v2114 = vcombine.low %v2095, %v2111
      %v2115 = vcombine.high %v2095, %v2111
      %v2117 = vunpack.c.l.s4 1983009808
      %v2118 = vunpack.c.0.s8 %v2117
      %v2119 = vlaneseq
      %v2120 = vshrl.u32 %v2119, 7
      %v2121 = vsub.s32 %v2118, %v2120
      %v2122 = vrot.slane %v1996, %v2121
      %v2123 = vcombine.high %v2122, 0.0
      %v2125 = vunpack.c.l.s4 1934713408
      %v2126 = vunpack.c.0.s8 %v2125
      %v2127 = vlaneseq
      %v2128 = vshrl.u32 %v2127, 7
      %v2129 = vsub.s32 %v2126, %v2128
      %v2130 = vrot.slane %v2122, %v2129
      %v2132 = vunpack.c.l.s4 1934713408
      %v2133 = vunpack.c.0.s8 %v2132
      %v2134 = vlaneseq
      %v2135 = vshrl.u32 %v2134, 7
      %v2136 = vsub.s32 %v2133, %v2135
      %v2137 = vrot.slane %v2123, %v2136
      %v2138 = vcombine.high %v2130, 0.0
      %v2139 = vcombine.high %v2137, 0.0
      %v2140 = vcombine.low %v2020, %v2021
      %v2142 = vunpack.c.l.s4 1983009808
      %v2143 = vunpack.c.0.s8 %v2142
      %v2144 = vlaneseq
      %v2145 = vshrl.u32 %v2144, 7
      %v2146 = vsub.s32 %v2143, %v2145
      %v2147 = vrot.slane %v2140, %v2146
      %v2148 = vcombine.low %v2003, %v2012
      %v2150 = vunpack.c.l.s4 1983009808
      %v2151 = vunpack.c.0.s8 %v2150
      %v2152 = vlaneseq
      %v2153 = vshrl.u32 %v2152, 7
      %v2154 = vsub.s32 %v2151, %v2153
      %v2155 = vrot.slane %v2148, %v2154
      %v2156 = vcombine.low %v2022, %v2023
      %v2158 = vunpack.c.l.s4 1983009808
      %v2159 = vunpack.c.0.s8 %v2158
      %v2160 = vlaneseq
      %v2161 = vshrl.u32 %v2160, 7
      %v2162 = vsub.s32 %v2159, %v2161
      %v2163 = vrot.slane %v2156, %v2162
      %v2164 = vcombine.low %v2019, %v2047
      %v2166 = vunpack.c.l.s4 1983009808
      %v2167 = vunpack.c.0.s8 %v2166
      %v2168 = vlaneseq
      %v2169 = vshrl.u32 %v2168, 7
      %v2170 = vsub.s32 %v2167, %v2169
      %v2171 = vrot.slane %v2164, %v2170
      %v2172 = vcombine.low %v2147, %v2155
      %v2173 = vcombine.high %v2147, %v2155
      %v2175 = vunpack.c.l.s4 1934713408
      %v2176 = vunpack.c.0.s8 %v2175
      %v2177 = vlaneseq
      %v2178 = vshrl.u32 %v2177, 7
      %v2179 = vsub.s32 %v2176, %v2178
      %v2180 = vrot.slane %v2172, %v2179
      %v2182 = vunpack.c.l.s4 1934713408
      %v2183 = vunpack.c.0.s8 %v2182
      %v2184 = vlaneseq
      %v2185 = vshrl.u32 %v2184, 7
      %v2186 = vsub.s32 %v2183, %v2185
      %v2187 = vrot.slane %v2173, %v2186
      %v2188 = vcombine.low %v2163, %v2171
      %v2189 = vcombine.high %v2163, %v2171
      %v2191 = vunpack.c.l.s4 1934713408
      %v2192 = vunpack.c.0.s8 %v2191
      %v2193 = vlaneseq
      %v2194 = vshrl.u32 %v2193, 7
      %v2195 = vsub.s32 %v2192, %v2194
      %v2196 = vrot.slane %v2188, %v2195
      %v2198 = vunpack.c.l.s4 1934713408
      %v2199 = vunpack.c.0.s8 %v2198
      %v2200 = vlaneseq
      %v2201 = vshrl.u32 %v2200, 7
      %v2202 = vsub.s32 %v2199, %v2201
      %v2203 = vrot.slane %v2189, %v2202
      %v2204 = vcombine.low %v2180, %v2196
      %v2205 = vcombine.high %v2180, %v2196
      %v2206 = vcombine.low %v2187, %v2203
      %v2207 = vcombine.high %v2187, %v2203
      %v2208 = vcombine.high %v2047, 0.0
      %v2210 = vunpack.c.l.s4 1983009808
      %v2211 = vunpack.c.0.s8 %v2210
      %v2212 = vlaneseq
      %v2213 = vshrl.u32 %v2212, 7
      %v2214 = vsub.s32 %v2211, %v2213
      %v2215 = vrot.slane %v2208, %v2214
      %v2216 = vcombine.high %v2215, 0.0
      %v2218 = vunpack.c.l.s4 1934713408
      %v2219 = vunpack.c.0.s8 %v2218
      %v2220 = vlaneseq
      %v2221 = vshrl.u32 %v2220, 7
      %v2222 = vsub.s32 %v2219, %v2221
      %v2223 = vrot.slane %v2215, %v2222
      %v2225 = vunpack.c.l.s4 1934713408
      %v2226 = vunpack.c.0.s8 %v2225
      %v2227 = vlaneseq
      %v2228 = vshrl.u32 %v2227, 7
      %v2229 = vsub.s32 %v2226, %v2228
      %v2230 = vrot.slane %v2216, %v2229
      %v2231 = vcombine.high %v2223, 0.0
      %v2232 = vcombine.high %v2230, 0.0
      %v2233 = vpack.c.bf16 %v2130, %v2112
      %v2234 = vpack.c.bf16 %v2138, %v2113
      %v2235 = vpack.c.bf16 %v2137, %v2114
      %v2236 = vpack.c.bf16 %v2139, %v2115
      %v2237 = vpack.c.bf16 %v2223, %v2204
      %v2238 = vpack.c.bf16 %v2231, %v2205
      %v2239 = vpack.c.bf16 %v2230, %v2206
      %v2240 = vpack.c.bf16 %v2232, %v2207
      %vm2241 = vcmask 64512
      %v2243 = vsel %vm2241, %v1467, 0
      %v2246 = vsel %vm2241, %v1850, 0
      %2248 = vmatprep.subr.bf16.mxu0 0
      %2249 = vmatpush1.bf16.xpose.msra.mxu0 %v2246
      %2250 = vmatprep.subr.bf16.mxu0 0
      %2251 = vmatpush1.bf16.xpose.msra.mxu0 0
      %2252 = vmatprep.subr.bf16.mxu0 0
      %2253 = vmatpush1.bf16.xpose.msra.mxu0 0
      %2254 = vmatprep.subr.bf16.mxu0 0
      %2255 = vmatpush1.bf16.xpose.msra.mxu0 0
      %2256 = vmatprep.subr.bf16.mxu0 0
      %2257 = vmatpush1.bf16.xpose.msra.mxu0 0
      %2258 = vmatprep.subr.bf16.mxu0 0
      %2259 = vmatpush1.bf16.xpose.msra.mxu0 0
      %2260 = vmatprep.subr.bf16.mxu0 0
      %2261 = vmatpush1.bf16.xpose.msra.mxu0 0
      %2262 = vmatprep.subr.bf16.mxu0 0
      %2263 = vmatpush1.bf16.xpose.msra.mxu0 0
      %2264 = vmatprep.subr.bf16.mxu0 0
      %2265 = vmatpush1.bf16.xpose.msra.mxu0 0
      %2266 = vmatprep.subr.bf16.mxu0 0
      %2267 = vmatpush1.bf16.xpose.msra.mxu0 0
      %2268 = vmatprep.subr.bf16.mxu0 0
      %2269 = vmatpush1.bf16.xpose.msra.mxu0 0
      %2270 = vmatprep.subr.bf16.mxu0 0
      %2271 = vmatpush1.bf16.xpose.msra.mxu0 0
      %2272 = vmatprep.subr.bf16.mxu0 0
      %2273 = vmatpush1.bf16.xpose.msra.mxu0 0
      %2274 = vmatprep.subr.bf16.mxu0 0
      %2275 = vmatpush1.bf16.xpose.msra.mxu0 0
      %2276 = vmatprep.subr.bf16.mxu0 0
      %2277 = vmatpush1.bf16.xpose.msra.mxu0 0
      %2278 = vmatprep.subr.bf16.mxu0 0
      %2279 = vmatpush1.bf16.xpose.msra.mxu0 0
      %2280 = vmatprep.mubr.bf16.mxu0 0
      %2281 = vmatmul.mubr.bf16.gmra.mrb[0].mxu0 %v2243
      %v2282 = vpop.f32.mrb[0].mxu0
      %v2283 = vadd.f32 0.0, %v2282
      %v2284 = vpop.f32.mrb[0].mxu0
      %v2285 = vpop.f32.mrb[0].mxu0
      %v2286 = vadd.f32 0.0, %v2285
      %v2287 = vpop.f32.mrb[0].mxu0
      %2288 = vdwg.mxu0
      %v2290 = vsel %vm2241, %v1468, 0
      %v2293 = vsel %vm2241, %v1851, 0
      %2295 = vmatprep.subr.bf16.mxu0 0
      %2296 = vmatpush1.bf16.xpose.msra.mxu0 %v2293
      %2297 = vmatprep.subr.bf16.mxu0 0
      %2298 = vmatpush1.bf16.xpose.msra.mxu0 0
      %2299 = vmatprep.subr.bf16.mxu0 0
      %2300 = vmatpush1.bf16.xpose.msra.mxu0 0
      %2301 = vmatprep.subr.bf16.mxu0 0
      %2302 = vmatpush1.bf16.xpose.msra.mxu0 0
      %2303 = vmatprep.subr.bf16.mxu0 0
      %2304 = vmatpush1.bf16.xpose.msra.mxu0 0
      %2305 = vmatprep.subr.bf16.mxu0 0
      %2306 = vmatpush1.bf16.xpose.msra.mxu0 0
      %2307 = vmatprep.subr.bf16.mxu0 0
      %2308 = vmatpush1.bf16.xpose.msra.mxu0 0
      %2309 = vmatprep.subr.bf16.mxu0 0
      %2310 = vmatpush1.bf16.xpose.msra.mxu0 0
      %2311 = vmatprep.subr.bf16.mxu0 0
      %2312 = vmatpush1.bf16.xpose.msra.mxu0 0
      %2313 = vmatprep.subr.bf16.mxu0 0
      %2314 = vmatpush1.bf16.xpose.msra.mxu0 0
      %2315 = vmatprep.subr.bf16.mxu0 0
      %2316 = vmatpush1.bf16.xpose.msra.mxu0 0
      %2317 = vmatprep.subr.bf16.mxu0 0
      %2318 = vmatpush1.bf16.xpose.msra.mxu0 0
      %2319 = vmatprep.subr.bf16.mxu0 0
      %2320 = vmatpush1.bf16.xpose.msra.mxu0 0
      %2321 = vmatprep.subr.bf16.mxu0 0
      %2322 = vmatpush1.bf16.xpose.msra.mxu0 0
      %2323 = vmatprep.subr.bf16.mxu0 0
      %2324 = vmatpush1.bf16.xpose.msra.mxu0 0
      %2325 = vmatprep.subr.bf16.mxu0 0
      %2326 = vmatpush1.bf16.xpose.msra.mxu0 0
      %2327 = vmatprep.mubr.bf16.mxu0 0
      %2328 = vmatmul.mubr.bf16.gmra.mrb[0].mxu0 %v2290
      %v2329 = vpop.f32.mrb[0].mxu0
      %v2330 = vadd.f32 0.0, %v2329
      %v2331 = vpop.f32.mrb[0].mxu0
      %v2332 = vpop.f32.mrb[0].mxu0
      %v2333 = vadd.f32 0.0, %v2332
      %v2334 = vpop.f32.mrb[0].mxu0
      %2335 = vdwg.mxu0
      %v2337 = vsel %vm2241, %v1469, 0
      %v2340 = vsel %vm2241, %v1852, 0
      %2342 = vmatprep.subr.bf16.mxu0 0
      %2343 = vmatpush1.bf16.xpose.msra.mxu0 %v2340
      %2344 = vmatprep.subr.bf16.mxu0 0
      %2345 = vmatpush1.bf16.xpose.msra.mxu0 0
      %2346 = vmatprep.subr.bf16.mxu0 0
      %2347 = vmatpush1.bf16.xpose.msra.mxu0 0
      %2348 = vmatprep.subr.bf16.mxu0 0
      %2349 = vmatpush1.bf16.xpose.msra.mxu0 0
      %2350 = vmatprep.subr.bf16.mxu0 0
      %2351 = vmatpush1.bf16.xpose.msra.mxu0 0
      %2352 = vmatprep.subr.bf16.mxu0 0
      %2353 = vmatpush1.bf16.xpose.msra.mxu0 0
      %2354 = vmatprep.subr.bf16.mxu0 0
      %2355 = vmatpush1.bf16.xpose.msra.mxu0 0
      %2356 = vmatprep.subr.bf16.mxu0 0
      %2357 = vmatpush1.bf16.xpose.msra.mxu0 0
      %2358 = vmatprep.subr.bf16.mxu0 0
      %2359 = vmatpush1.bf16.xpose.msra.mxu0 0
      %2360 = vmatprep.subr.bf16.mxu0 0
      %2361 = vmatpush1.bf16.xpose.msra.mxu0 0
      %2362 = vmatprep.subr.bf16.mxu0 0
      %2363 = vmatpush1.bf16.xpose.msra.mxu0 0
      %2364 = vmatprep.subr.bf16.mxu0 0
      %2365 = vmatpush1.bf16.xpose.msra.mxu0 0
      %2366 = vmatprep.subr.bf16.mxu0 0
      %2367 = vmatpush1.bf16.xpose.msra.mxu0 0
      %2368 = vmatprep.subr.bf16.mxu0 0
      %2369 = vmatpush1.bf16.xpose.msra.mxu0 0
      %2370 = vmatprep.subr.bf16.mxu0 0
      %2371 = vmatpush1.bf16.xpose.msra.mxu0 0
      %2372 = vmatprep.subr.bf16.mxu0 0
      %2373 = vmatpush1.bf16.xpose.msra.mxu0 0
      %2374 = vmatprep.mubr.bf16.mxu0 0
      %2375 = vmatmul.mubr.bf16.gmra.mrb[0].mxu0 %v2337
      %v2376 = vpop.f32.mrb[0].mxu0
      %v2377 = vadd.f32 0.0, %v2376
      %v2378 = vpop.f32.mrb[0].mxu0
      %v2379 = vpop.f32.mrb[0].mxu0
      %v2380 = vadd.f32 0.0, %v2379
      %v2381 = vpop.f32.mrb[0].mxu0
      %2382 = vdwg.mxu0
      %v2384 = vsel %vm2241, %v1470, 0
      %v2387 = vsel %vm2241, %v1853, 0
      %2389 = vmatprep.subr.bf16.mxu0 0
      %2390 = vmatpush1.bf16.xpose.msra.mxu0 %v2387
      %2391 = vmatprep.subr.bf16.mxu0 0
      %2392 = vmatpush1.bf16.xpose.msra.mxu0 0
      %2393 = vmatprep.subr.bf16.mxu0 0
      %2394 = vmatpush1.bf16.xpose.msra.mxu0 0
      %2395 = vmatprep.subr.bf16.mxu0 0
      %2396 = vmatpush1.bf16.xpose.msra.mxu0 0
      %2397 = vmatprep.subr.bf16.mxu0 0
      %2398 = vmatpush1.bf16.xpose.msra.mxu0 0
      %2399 = vmatprep.subr.bf16.mxu0 0
      %2400 = vmatpush1.bf16.xpose.msra.mxu0 0
      %2401 = vmatprep.subr.bf16.mxu0 0
      %2402 = vmatpush1.bf16.xpose.msra.mxu0 0
      %2403 = vmatprep.subr.bf16.mxu0 0
      %2404 = vmatpush1.bf16.xpose.msra.mxu0 0
      %2405 = vmatprep.subr.bf16.mxu0 0
      %2406 = vmatpush1.bf16.xpose.msra.mxu0 0
      %2407 = vmatprep.subr.bf16.mxu0 0
      %2408 = vmatpush1.bf16.xpose.msra.mxu0 0
      %2409 = vmatprep.subr.bf16.mxu0 0
      %2410 = vmatpush1.bf16.xpose.msra.mxu0 0
      %2411 = vmatprep.subr.bf16.mxu0 0
      %2412 = vmatpush1.bf16.xpose.msra.mxu0 0
      %2413 = vmatprep.subr.bf16.mxu0 0
      %2414 = vmatpush1.bf16.xpose.msra.mxu0 0
      %2415 = vmatprep.subr.bf16.mxu0 0
      %2416 = vmatpush1.bf16.xpose.msra.mxu0 0
      %2417 = vmatprep.subr.bf16.mxu0 0
      %2418 = vmatpush1.bf16.xpose.msra.mxu0 0
      %2419 = vmatprep.subr.bf16.mxu0 0
      %2420 = vmatpush1.bf16.xpose.msra.mxu0 0
      %2421 = vmatprep.mubr.bf16.mxu0 0
      %2422 = vmatmul.mubr.bf16.gmra.mrb[0].mxu0 %v2384
      %v2423 = vpop.f32.mrb[0].mxu0
      %v2424 = vadd.f32 0.0, %v2423
      %v2425 = vpop.f32.mrb[0].mxu0
      %v2426 = vpop.f32.mrb[0].mxu0
      %v2427 = vadd.f32 0.0, %v2426
      %v2428 = vpop.f32.mrb[0].mxu0
      %2429 = vdwg.mxu0
      %v2431 = vsel %vm2241, %v1471, 0
      %v2434 = vsel %vm2241, %v1854, 0
      %2436 = vmatprep.subr.bf16.mxu0 0
      %2437 = vmatpush1.bf16.xpose.msra.mxu0 %v2434
      %2438 = vmatprep.subr.bf16.mxu0 0
      %2439 = vmatpush1.bf16.xpose.msra.mxu0 0
      %2440 = vmatprep.subr.bf16.mxu0 0
      %2441 = vmatpush1.bf16.xpose.msra.mxu0 0
      %2442 = vmatprep.subr.bf16.mxu0 0
      %2443 = vmatpush1.bf16.xpose.msra.mxu0 0
      %2444 = vmatprep.subr.bf16.mxu0 0
      %2445 = vmatpush1.bf16.xpose.msra.mxu0 0
      %2446 = vmatprep.subr.bf16.mxu0 0
      %2447 = vmatpush1.bf16.xpose.msra.mxu0 0
      %2448 = vmatprep.subr.bf16.mxu0 0
      %2449 = vmatpush1.bf16.xpose.msra.mxu0 0
      %2450 = vmatprep.subr.bf16.mxu0 0
      %2451 = vmatpush1.bf16.xpose.msra.mxu0 0
      %2452 = vmatprep.subr.bf16.mxu0 0
      %2453 = vmatpush1.bf16.xpose.msra.mxu0 0
      %2454 = vmatprep.subr.bf16.mxu0 0
      %2455 = vmatpush1.bf16.xpose.msra.mxu0 0
      %2456 = vmatprep.subr.bf16.mxu0 0
      %2457 = vmatpush1.bf16.xpose.msra.mxu0 0
      %2458 = vmatprep.subr.bf16.mxu0 0
      %2459 = vmatpush1.bf16.xpose.msra.mxu0 0
      %2460 = vmatprep.subr.bf16.mxu0 0
      %2461 = vmatpush1.bf16.xpose.msra.mxu0 0
      %2462 = vmatprep.subr.bf16.mxu0 0
      %2463 = vmatpush1.bf16.xpose.msra.mxu0 0
      %2464 = vmatprep.subr.bf16.mxu0 0
      %2465 = vmatpush1.bf16.xpose.msra.mxu0 0
      %2466 = vmatprep.subr.bf16.mxu0 0
      %2467 = vmatpush1.bf16.xpose.msra.mxu0 0
      %2468 = vmatprep.mubr.bf16.mxu0 0
      %2469 = vmatmul.mubr.bf16.gmra.mrb[0].mxu0 %v2431
      %v2470 = vpop.f32.mrb[0].mxu0
      %v2471 = vadd.f32 0.0, %v2470
      %v2472 = vpop.f32.mrb[0].mxu0
      %v2473 = vpop.f32.mrb[0].mxu0
      %v2474 = vadd.f32 0.0, %v2473
      %v2475 = vpop.f32.mrb[0].mxu0
      %2476 = vdwg.mxu0
      %v2478 = vsel %vm2241, %v1472, 0
      %v2481 = vsel %vm2241, %v1855, 0
      %2483 = vmatprep.subr.bf16.mxu0 0
      %2484 = vmatpush1.bf16.xpose.msra.mxu0 %v2481
      %2485 = vmatprep.subr.bf16.mxu0 0
      %2486 = vmatpush1.bf16.xpose.msra.mxu0 0
      %2487 = vmatprep.subr.bf16.mxu0 0
      %2488 = vmatpush1.bf16.xpose.msra.mxu0 0
      %2489 = vmatprep.subr.bf16.mxu0 0
      %2490 = vmatpush1.bf16.xpose.msra.mxu0 0
      %2491 = vmatprep.subr.bf16.mxu0 0
      %2492 = vmatpush1.bf16.xpose.msra.mxu0 0
      %2493 = vmatprep.subr.bf16.mxu0 0
      %2494 = vmatpush1.bf16.xpose.msra.mxu0 0
      %2495 = vmatprep.subr.bf16.mxu0 0
      %2496 = vmatpush1.bf16.xpose.msra.mxu0 0
      %2497 = vmatprep.subr.bf16.mxu0 0
      %2498 = vmatpush1.bf16.xpose.msra.mxu0 0
      %2499 = vmatprep.subr.bf16.mxu0 0
      %2500 = vmatpush1.bf16.xpose.msra.mxu0 0
      %2501 = vmatprep.subr.bf16.mxu0 0
      %2502 = vmatpush1.bf16.xpose.msra.mxu0 0
      %2503 = vmatprep.subr.bf16.mxu0 0
      %2504 = vmatpush1.bf16.xpose.msra.mxu0 0
      %2505 = vmatprep.subr.bf16.mxu0 0
      %2506 = vmatpush1.bf16.xpose.msra.mxu0 0
      %2507 = vmatprep.subr.bf16.mxu0 0
      %2508 = vmatpush1.bf16.xpose.msra.mxu0 0
      %2509 = vmatprep.subr.bf16.mxu0 0
      %2510 = vmatpush1.bf16.xpose.msra.mxu0 0
      %2511 = vmatprep.subr.bf16.mxu0 0
      %2512 = vmatpush1.bf16.xpose.msra.mxu0 0
      %2513 = vmatprep.subr.bf16.mxu0 0
      %2514 = vmatpush1.bf16.xpose.msra.mxu0 0
      %2515 = vmatprep.mubr.bf16.mxu0 0
      %2516 = vmatmul.mubr.bf16.gmra.mrb[0].mxu0 %v2478
      %v2517 = vpop.f32.mrb[0].mxu0
      %v2518 = vadd.f32 0.0, %v2517
      %v2519 = vpop.f32.mrb[0].mxu0
      %v2520 = vpop.f32.mrb[0].mxu0
      %v2521 = vadd.f32 0.0, %v2520
      %v2522 = vpop.f32.mrb[0].mxu0
      %2523 = vdwg.mxu0
      %v2525 = vsel %vm2241, %v1473, 0
      %v2528 = vsel %vm2241, %v1856, 0
      %2530 = vmatprep.subr.bf16.mxu0 0
      %2531 = vmatpush1.bf16.xpose.msra.mxu0 %v2528
      %2532 = vmatprep.subr.bf16.mxu0 0
      %2533 = vmatpush1.bf16.xpose.msra.mxu0 0
      %2534 = vmatprep.subr.bf16.mxu0 0
      %2535 = vmatpush1.bf16.xpose.msra.mxu0 0
      %2536 = vmatprep.subr.bf16.mxu0 0
      %2537 = vmatpush1.bf16.xpose.msra.mxu0 0
      %2538 = vmatprep.subr.bf16.mxu0 0
      %2539 = vmatpush1.bf16.xpose.msra.mxu0 0
      %2540 = vmatprep.subr.bf16.mxu0 0
      %2541 = vmatpush1.bf16.xpose.msra.mxu0 0
      %2542 = vmatprep.subr.bf16.mxu0 0
      %2543 = vmatpush1.bf16.xpose.msra.mxu0 0
      %2544 = vmatprep.subr.bf16.mxu0 0
      %2545 = vmatpush1.bf16.xpose.msra.mxu0 0
      %2546 = vmatprep.subr.bf16.mxu0 0
      %2547 = vmatpush1.bf16.xpose.msra.mxu0 0
      %2548 = vmatprep.subr.bf16.mxu0 0
      %2549 = vmatpush1.bf16.xpose.msra.mxu0 0
      %2550 = vmatprep.subr.bf16.mxu0 0
      %2551 = vmatpush1.bf16.xpose.msra.mxu0 0
      %2552 = vmatprep.subr.bf16.mxu0 0
      %2553 = vmatpush1.bf16.xpose.msra.mxu0 0
      %2554 = vmatprep.subr.bf16.mxu0 0
      %2555 = vmatpush1.bf16.xpose.msra.mxu0 0
      %2556 = vmatprep.subr.bf16.mxu0 0
      %2557 = vmatpush1.bf16.xpose.msra.mxu0 0
      %2558 = vmatprep.subr.bf16.mxu0 0
      %2559 = vmatpush1.bf16.xpose.msra.mxu0 0
      %2560 = vmatprep.subr.bf16.mxu0 0
      %2561 = vmatpush1.bf16.xpose.msra.mxu0 0
      %2562 = vmatprep.mubr.bf16.mxu0 0
      %2563 = vmatmul.mubr.bf16.gmra.mrb[0].mxu0 %v2525
      %v2564 = vpop.f32.mrb[0].mxu0
      %v2565 = vadd.f32 0.0, %v2564
      %v2566 = vpop.f32.mrb[0].mxu0
      %v2567 = vpop.f32.mrb[0].mxu0
      %v2568 = vadd.f32 0.0, %v2567
      %v2569 = vpop.f32.mrb[0].mxu0
      %2570 = vdwg.mxu0
      %v2572 = vsel %vm2241, %v1474, 0
      %v2575 = vsel %vm2241, %v1857, 0
      %2577 = vmatprep.subr.bf16.mxu0 0
      %2578 = vmatpush1.bf16.xpose.msra.mxu0 %v2575
      %2579 = vmatprep.subr.bf16.mxu0 0
      %2580 = vmatpush1.bf16.xpose.msra.mxu0 0
      %2581 = vmatprep.subr.bf16.mxu0 0
      %2582 = vmatpush1.bf16.xpose.msra.mxu0 0
      %2583 = vmatprep.subr.bf16.mxu0 0
      %2584 = vmatpush1.bf16.xpose.msra.mxu0 0
      %2585 = vmatprep.subr.bf16.mxu0 0
      %2586 = vmatpush1.bf16.xpose.msra.mxu0 0
      %2587 = vmatprep.subr.bf16.mxu0 0
      %2588 = vmatpush1.bf16.xpose.msra.mxu0 0
      %2589 = vmatprep.subr.bf16.mxu0 0
      %2590 = vmatpush1.bf16.xpose.msra.mxu0 0
      %2591 = vmatprep.subr.bf16.mxu0 0
      %2592 = vmatpush1.bf16.xpose.msra.mxu0 0
      %2593 = vmatprep.subr.bf16.mxu0 0
      %2594 = vmatpush1.bf16.xpose.msra.mxu0 0
      %2595 = vmatprep.subr.bf16.mxu0 0
      %2596 = vmatpush1.bf16.xpose.msra.mxu0 0
      %2597 = vmatprep.subr.bf16.mxu0 0
      %2598 = vmatpush1.bf16.xpose.msra.mxu0 0
      %2599 = vmatprep.subr.bf16.mxu0 0
      %2600 = vmatpush1.bf16.xpose.msra.mxu0 0
      %2601 = vmatprep.subr.bf16.mxu0 0
      %2602 = vmatpush1.bf16.xpose.msra.mxu0 0
      %2603 = vmatprep.subr.bf16.mxu0 0
      %2604 = vmatpush1.bf16.xpose.msra.mxu0 0
      %2605 = vmatprep.subr.bf16.mxu0 0
      %2606 = vmatpush1.bf16.xpose.msra.mxu0 0
      %2607 = vmatprep.subr.bf16.mxu0 0
      %2608 = vmatpush1.bf16.xpose.msra.mxu0 0
      %2609 = vmatprep.mubr.bf16.mxu0 0
      %2610 = vmatmul.mubr.bf16.gmra.mrb[0].mxu0 %v2572
      %v2611 = vpop.f32.mrb[0].mxu0
      %v2612 = vadd.f32 0.0, %v2611
      %v2613 = vpop.f32.mrb[0].mxu0
      %v2614 = vpop.f32.mrb[0].mxu0
      %v2615 = vadd.f32 0.0, %v2614
      %v2616 = vpop.f32.mrb[0].mxu0
      %2617 = vdwg.mxu0
      %vm2618 = vcmask 72704
      %v2619 = vsel %vm2618, %v2283, -inf
      %2620 = vmax.xlane.f32.xlu0 %v2619
      %v2621 = vpop.xlane.xlu0 %2620
      %vm2622 = vcmask 65536
      %v2623 = vsel %vm2622, %v2286, -inf
      %2624 = vmax.xlane.f32.xlu0 %v2623
      %v2625 = vpop.xlane.xlu0 %2624
      %v2626 = vsel %vm2618, %v2330, -inf
      %2627 = vmax.xlane.f32.xlu0 %v2626
      %v2628 = vpop.xlane.xlu0 %2627
      %v2629 = vsel %vm2622, %v2333, -inf
      %2630 = vmax.xlane.f32.xlu0 %v2629
      %v2631 = vpop.xlane.xlu0 %2630
      %v2632 = vsel %vm2618, %v2377, -inf
      %2633 = vmax.xlane.f32.xlu0 %v2632
      %v2634 = vpop.xlane.xlu0 %2633
      %v2635 = vsel %vm2622, %v2380, -inf
      %2636 = vmax.xlane.f32.xlu0 %v2635
      %v2637 = vpop.xlane.xlu0 %2636
      %v2638 = vsel %vm2618, %v2424, -inf
      %2639 = vmax.xlane.f32.xlu0 %v2638
      %v2640 = vpop.xlane.xlu0 %2639
      %v2641 = vsel %vm2622, %v2427, -inf
      %2642 = vmax.xlane.f32.xlu0 %v2641
      %v2643 = vpop.xlane.xlu0 %2642
      %v2644 = vsel %vm2618, %v2471, -inf
      %2645 = vmax.xlane.f32.xlu0 %v2644
      %v2646 = vpop.xlane.xlu0 %2645
      %v2647 = vsel %vm2622, %v2474, -inf
      %2648 = vmax.xlane.f32.xlu0 %v2647
      %v2649 = vpop.xlane.xlu0 %2648
      %v2650 = vsel %vm2618, %v2518, -inf
      %2651 = vmax.xlane.f32.xlu0 %v2650
      %v2652 = vpop.xlane.xlu0 %2651
      %v2653 = vsel %vm2622, %v2521, -inf
      %2654 = vmax.xlane.f32.xlu0 %v2653
      %v2655 = vpop.xlane.xlu0 %2654
      %v2656 = vsel %vm2618, %v2565, -inf
      %2657 = vmax.xlane.f32.xlu0 %v2656
      %v2658 = vpop.xlane.xlu0 %2657
      %v2659 = vsel %vm2622, %v2568, -inf
      %2660 = vmax.xlane.f32.xlu0 %v2659
      %v2661 = vpop.xlane.xlu0 %2660
      %v2662 = vsel %vm2618, %v2612, -inf
      %2663 = vmax.xlane.f32.xlu0 %v2662
      %v2664 = vpop.xlane.xlu0 %2663
      %v2665 = vsel %vm2622, %v2615, -inf
      %2666 = vmax.xlane.f32.xlu0 %v2665
      %v2667 = vpop.xlane.xlu0 %2666
      %v2668 = vsub.f32 %v2283, %v2621
      %v2669 = vsub.f32 %v2286, %v2625
      %v2670 = vsub.f32 %v2330, %v2628
      %v2671 = vsub.f32 %v2333, %v2631
      %v2672 = vsub.f32 %v2377, %v2634
      %v2673 = vsub.f32 %v2380, %v2637
      %v2674 = vsub.f32 %v2424, %v2640
      %v2675 = vsub.f32 %v2427, %v2643
      %v2676 = vsub.f32 %v2471, %v2646
      %v2677 = vsub.f32 %v2474, %v2649
      %v2678 = vsub.f32 %v2518, %v2652
      %v2679 = vsub.f32 %v2521, %v2655
      %v2680 = vsub.f32 %v2565, %v2658
      %v2681 = vsub.f32 %v2568, %v2661
      %v2682 = vsub.f32 %v2612, %v2664
      %v2683 = vsub.f32 %v2615, %v2667
      %v2684 = vmul.f32 %v2668, 1.442695
      %v2685 = vpow.pop %v2684
      %v2686 = vmul.f32 %v2669, 1.442695
      %v2687 = vpow.pop %v2686
      %v2688 = vmul.f32 %v2670, 1.442695
      %v2689 = vpow.pop %v2688
      %v2690 = vmul.f32 %v2671, 1.442695
      %v2691 = vpow.pop %v2690
      %v2692 = vmul.f32 %v2672, 1.442695
      %v2693 = vpow.pop %v2692
      %v2694 = vmul.f32 %v2673, 1.442695
      %v2695 = vpow.pop %v2694
      %v2696 = vmul.f32 %v2674, 1.442695
      %v2697 = vpow.pop %v2696
      %v2698 = vmul.f32 %v2675, 1.442695
      %v2699 = vpow.pop %v2698
      %v2700 = vmul.f32 %v2676, 1.442695
      %v2701 = vpow.pop %v2700
      %v2702 = vmul.f32 %v2677, 1.442695
      %v2703 = vpow.pop %v2702
      %v2704 = vmul.f32 %v2678, 1.442695
      %v2705 = vpow.pop %v2704
      %v2706 = vmul.f32 %v2679, 1.442695
      %v2707 = vpow.pop %v2706
      %v2708 = vmul.f32 %v2680, 1.442695
      %v2709 = vpow.pop %v2708
      %v2710 = vmul.f32 %v2681, 1.442695
      %v2711 = vpow.pop %v2710
      %v2712 = vmul.f32 %v2682, 1.442695
      %v2713 = vpow.pop %v2712
      %v2714 = vmul.f32 %v2683, 1.442695
      %v2715 = vpow.pop %v2714
      %v2716 = vsel %vm2618, %v2685, 0.0
      %2717 = vadd.xlane.f32.xlu0 %v2716
      %v2718 = vpop.xlane.xlu0 %2717
      %v2719 = vsel %vm2622, %v2687, 0.0
      %2720 = vadd.xlane.f32.xlu0 %v2719
      %v2721 = vpop.xlane.xlu0 %2720
      %v2722 = vsel %vm2618, %v2689, 0.0
      %2723 = vadd.xlane.f32.xlu0 %v2722
      %v2724 = vpop.xlane.xlu0 %2723
      %v2725 = vsel %vm2622, %v2691, 0.0
      %2726 = vadd.xlane.f32.xlu0 %v2725
      %v2727 = vpop.xlane.xlu0 %2726
      %v2728 = vsel %vm2618, %v2693, 0.0
      %2729 = vadd.xlane.f32.xlu0 %v2728
      %v2730 = vpop.xlane.xlu0 %2729
      %v2731 = vsel %vm2622, %v2695, 0.0
      %2732 = vadd.xlane.f32.xlu0 %v2731
      %v2733 = vpop.xlane.xlu0 %2732
      %v2734 = vsel %vm2618, %v2697, 0.0
      %2735 = vadd.xlane.f32.xlu0 %v2734
      %v2736 = vpop.xlane.xlu0 %2735
      %v2737 = vsel %vm2622, %v2699, 0.0
      %2738 = vadd.xlane.f32.xlu0 %v2737
      %v2739 = vpop.xlane.xlu0 %2738
      %v2740 = vsel %vm2618, %v2701, 0.0
      %2741 = vadd.xlane.f32.xlu0 %v2740
      %v2742 = vpop.xlane.xlu0 %2741
      %v2743 = vsel %vm2622, %v2703, 0.0
      %2744 = vadd.xlane.f32.xlu0 %v2743
      %v2745 = vpop.xlane.xlu0 %2744
      %v2746 = vsel %vm2618, %v2705, 0.0
      %2747 = vadd.xlane.f32.xlu0 %v2746
      %v2748 = vpop.xlane.xlu0 %2747
      %v2749 = vsel %vm2622, %v2707, 0.0
      %2750 = vadd.xlane.f32.xlu0 %v2749
      %v2751 = vpop.xlane.xlu0 %2750
      %v2752 = vsel %vm2618, %v2709, 0.0
      %2753 = vadd.xlane.f32.xlu0 %v2752
      %v2754 = vpop.xlane.xlu0 %2753
      %v2755 = vsel %vm2622, %v2711, 0.0
      %2756 = vadd.xlane.f32.xlu0 %v2755
      %v2757 = vpop.xlane.xlu0 %2756
      %v2758 = vsel %vm2618, %v2713, 0.0
      %2759 = vadd.xlane.f32.xlu0 %v2758
      %v2760 = vpop.xlane.xlu0 %2759
      %v2761 = vsel %vm2622, %v2715, 0.0
      %2762 = vadd.xlane.f32.xlu0 %v2761
      %v2763 = vpop.xlane.xlu0 %2762
      %v2764 = vrcp.pop %v2718
      %v2765 = vrcp.pop %v2721
      %v2766 = vrcp.pop %v2724
      %v2767 = vrcp.pop %v2727
      %v2768 = vrcp.pop %v2730
      %v2769 = vrcp.pop %v2733
      %v2770 = vrcp.pop %v2736
      %v2771 = vrcp.pop %v2739
      %v2772 = vrcp.pop %v2742
      %v2773 = vrcp.pop %v2745
      %v2774 = vrcp.pop %v2748
      %v2775 = vrcp.pop %v2751
      %v2776 = vrcp.pop %v2754
      %v2777 = vrcp.pop %v2757
      %v2778 = vrcp.pop %v2760
      %v2779 = vrcp.pop %v2763
      %v2780 = vmul.f32 %v2685, %v2764
      %v2781 = vmul.f32 %v2687, %v2765
      %v2782 = vmul.f32 %v2689, %v2766
      %v2783 = vmul.f32 %v2691, %v2767
      %v2784 = vmul.f32 %v2693, %v2768
      %v2785 = vmul.f32 %v2695, %v2769
      %v2786 = vmul.f32 %v2697, %v2770
      %v2787 = vmul.f32 %v2699, %v2771
      %v2788 = vmul.f32 %v2701, %v2772
      %v2789 = vmul.f32 %v2703, %v2773
      %v2790 = vmul.f32 %v2705, %v2774
      %v2791 = vmul.f32 %v2707, %v2775
      %v2792 = vmul.f32 %v2709, %v2776
      %v2793 = vmul.f32 %v2711, %v2777
      %v2794 = vmul.f32 %v2713, %v2778
      %v2795 = vmul.f32 %v2715, %v2779
      %v2796 = vpack.c.bf16 %v2781, %v2780
      %v2797 = vpack.c.bf16 %v2783, %v2782
      %v2798 = vpack.c.bf16 %v2785, %v2784
      %v2799 = vpack.c.bf16 %v2787, %v2786
      %v2800 = vpack.c.bf16 %v2789, %v2788
      %v2801 = vpack.c.bf16 %v2791, %v2790
      %v2802 = vpack.c.bf16 %v2793, %v2792
      %v2803 = vpack.c.bf16 %v2795, %v2794
      %v2805 = vsel %vm2618, %v2796, 0
      %vm2807 = vcmask 1043456
      %vm2808 = vcmask 1044480
      %v2809 = vsel %vm2807, 4294967295, 65535
      %v2810 = vsel %vm2808, %v2809, 0
      %v2812 = vand.u32 %v2233, %v2810
      %2814 = vmatprep.subr.bf16.mxu0 0
      %2815 = vmatpush1.bf16.msra.mxu0 %v2812
      %2816 = vmatprep.subr.bf16.mxu0 0
      %2817 = vmatpush1.bf16.msra.mxu0 0
      %2818 = vmatprep.subr.bf16.mxu0 0
      %2819 = vmatpush1.bf16.msra.mxu0 0
      %2820 = vmatprep.subr.bf16.mxu0 0
      %2821 = vmatpush1.bf16.msra.mxu0 0
      %2822 = vmatprep.subr.bf16.mxu0 0
      %2823 = vmatpush1.bf16.msra.mxu0 0
      %2824 = vmatprep.subr.bf16.mxu0 0
      %2825 = vmatpush1.bf16.msra.mxu0 0
      %2826 = vmatprep.subr.bf16.mxu0 0
      %2827 = vmatpush1.bf16.msra.mxu0 0
      %2828 = vmatprep.subr.bf16.mxu0 0
      %2829 = vmatpush1.bf16.msra.mxu0 0
      %2830 = vmatprep.subr.bf16.mxu0 0
      %2831 = vmatpush1.bf16.msra.mxu0 0
      %2832 = vmatprep.subr.bf16.mxu0 0
      %2833 = vmatpush1.bf16.msra.mxu0 0
      %2834 = vmatprep.subr.bf16.mxu0 0
      %2835 = vmatpush1.bf16.msra.mxu0 0
      %2836 = vmatprep.subr.bf16.mxu0 0
      %2837 = vmatpush1.bf16.msra.mxu0 0
      %2838 = vmatprep.subr.bf16.mxu0 0
      %2839 = vmatpush1.bf16.msra.mxu0 0
      %2840 = vmatprep.subr.bf16.mxu0 0
      %2841 = vmatpush1.bf16.msra.mxu0 0
      %2842 = vmatprep.subr.bf16.mxu0 0
      %2843 = vmatpush1.bf16.msra.mxu0 0
      %2844 = vmatprep.subr.bf16.mxu0 0
      %2845 = vmatpush1.bf16.msra.mxu0 0
      %2846 = vmatprep.mubr.bf16.mxu0 0
      %2847 = vmatmul.mubr.bf16.gmra.mrb[0].mxu0 %v2805
      %v2848 = vpop.f32.mrb[0].mxu0
      %v2849 = vadd.f32 0.0, %v2848
      %v2850 = vpop.f32.mrb[0].mxu0
      %v2851 = vpop.f32.mrb[0].mxu0
      %v2852 = vadd.f32 0.0, %v2851
      %v2853 = vpop.f32.mrb[0].mxu0
      %2854 = vdwg.mxu0
      %v2856 = vsel %vm2618, %v2797, 0
      %v2859 = vand.u32 %v2234, %v2810
      %2861 = vmatprep.subr.bf16.mxu0 0
      %2862 = vmatpush1.bf16.msra.mxu0 %v2859
      %2863 = vmatprep.subr.bf16.mxu0 0
      %2864 = vmatpush1.bf16.msra.mxu0 0
      %2865 = vmatprep.subr.bf16.mxu0 0
      %2866 = vmatpush1.bf16.msra.mxu0 0
      %2867 = vmatprep.subr.bf16.mxu0 0
      %2868 = vmatpush1.bf16.msra.mxu0 0
      %2869 = vmatprep.subr.bf16.mxu0 0
      %2870 = vmatpush1.bf16.msra.mxu0 0
      %2871 = vmatprep.subr.bf16.mxu0 0
      %2872 = vmatpush1.bf16.msra.mxu0 0
      %2873 = vmatprep.subr.bf16.mxu0 0
      %2874 = vmatpush1.bf16.msra.mxu0 0
      %2875 = vmatprep.subr.bf16.mxu0 0
      %2876 = vmatpush1.bf16.msra.mxu0 0
      %2877 = vmatprep.subr.bf16.mxu0 0
      %2878 = vmatpush1.bf16.msra.mxu0 0
      %2879 = vmatprep.subr.bf16.mxu0 0
      %2880 = vmatpush1.bf16.msra.mxu0 0
      %2881 = vmatprep.subr.bf16.mxu0 0
      %2882 = vmatpush1.bf16.msra.mxu0 0
      %2883 = vmatprep.subr.bf16.mxu0 0
      %2884 = vmatpush1.bf16.msra.mxu0 0
      %2885 = vmatprep.subr.bf16.mxu0 0
      %2886 = vmatpush1.bf16.msra.mxu0 0
      %2887 = vmatprep.subr.bf16.mxu0 0
      %2888 = vmatpush1.bf16.msra.mxu0 0
      %2889 = vmatprep.subr.bf16.mxu0 0
      %2890 = vmatpush1.bf16.msra.mxu0 0
      %2891 = vmatprep.subr.bf16.mxu0 0
      %2892 = vmatpush1.bf16.msra.mxu0 0
      %2893 = vmatprep.mubr.bf16.mxu0 0
      %2894 = vmatmul.mubr.bf16.gmra.mrb[0].mxu0 %v2856
      %v2895 = vpop.f32.mrb[0].mxu0
      %v2896 = vadd.f32 0.0, %v2895
      %v2897 = vpop.f32.mrb[0].mxu0
      %v2898 = vpop.f32.mrb[0].mxu0
      %v2899 = vadd.f32 0.0, %v2898
      %v2900 = vpop.f32.mrb[0].mxu0
      %2901 = vdwg.mxu0
      %v2903 = vsel %vm2618, %v2798, 0
      %v2906 = vand.u32 %v2235, %v2810
      %2908 = vmatprep.subr.bf16.mxu0 0
      %2909 = vmatpush1.bf16.msra.mxu0 %v2906
      %2910 = vmatprep.subr.bf16.mxu0 0
      %2911 = vmatpush1.bf16.msra.mxu0 0
      %2912 = vmatprep.subr.bf16.mxu0 0
      %2913 = vmatpush1.bf16.msra.mxu0 0
      %2914 = vmatprep.subr.bf16.mxu0 0
      %2915 = vmatpush1.bf16.msra.mxu0 0
      %2916 = vmatprep.subr.bf16.mxu0 0
      %2917 = vmatpush1.bf16.msra.mxu0 0
      %2918 = vmatprep.subr.bf16.mxu0 0
      %2919 = vmatpush1.bf16.msra.mxu0 0
      %2920 = vmatprep.subr.bf16.mxu0 0
      %2921 = vmatpush1.bf16.msra.mxu0 0
      %2922 = vmatprep.subr.bf16.mxu0 0
      %2923 = vmatpush1.bf16.msra.mxu0 0
      %2924 = vmatprep.subr.bf16.mxu0 0
      %2925 = vmatpush1.bf16.msra.mxu0 0
      %2926 = vmatprep.subr.bf16.mxu0 0
      %2927 = vmatpush1.bf16.msra.mxu0 0
      %2928 = vmatprep.subr.bf16.mxu0 0
      %2929 = vmatpush1.bf16.msra.mxu0 0
      %2930 = vmatprep.subr.bf16.mxu0 0
      %2931 = vmatpush1.bf16.msra.mxu0 0
      %2932 = vmatprep.subr.bf16.mxu0 0
      %2933 = vmatpush1.bf16.msra.mxu0 0
      %2934 = vmatprep.subr.bf16.mxu0 0
      %2935 = vmatpush1.bf16.msra.mxu0 0
      %2936 = vmatprep.subr.bf16.mxu0 0
      %2937 = vmatpush1.bf16.msra.mxu0 0
      %2938 = vmatprep.subr.bf16.mxu0 0
      %2939 = vmatpush1.bf16.msra.mxu0 0
      %2940 = vmatprep.mubr.bf16.mxu0 0
      %2941 = vmatmul.mubr.bf16.gmra.mrb[0].mxu0 %v2903
      %v2942 = vpop.f32.mrb[0].mxu0
      %v2943 = vadd.f32 0.0, %v2942
      %v2944 = vpop.f32.mrb[0].mxu0
      %v2945 = vpop.f32.mrb[0].mxu0
      %v2946 = vadd.f32 0.0, %v2945
      %v2947 = vpop.f32.mrb[0].mxu0
      %2948 = vdwg.mxu0
      %v2950 = vsel %vm2618, %v2799, 0
      %v2953 = vand.u32 %v2236, %v2810
      %2955 = vmatprep.subr.bf16.mxu0 0
      %2956 = vmatpush1.bf16.msra.mxu0 %v2953
      %2957 = vmatprep.subr.bf16.mxu0 0
      %2958 = vmatpush1.bf16.msra.mxu0 0
      %2959 = vmatprep.subr.bf16.mxu0 0
      %2960 = vmatpush1.bf16.msra.mxu0 0
      %2961 = vmatprep.subr.bf16.mxu0 0
      %2962 = vmatpush1.bf16.msra.mxu0 0
      %2963 = vmatprep.subr.bf16.mxu0 0
      %2964 = vmatpush1.bf16.msra.mxu0 0
      %2965 = vmatprep.subr.bf16.mxu0 0
      %2966 = vmatpush1.bf16.msra.mxu0 0
      %2967 = vmatprep.subr.bf16.mxu0 0
      %2968 = vmatpush1.bf16.msra.mxu0 0
      %2969 = vmatprep.subr.bf16.mxu0 0
      %2970 = vmatpush1.bf16.msra.mxu0 0
      %2971 = vmatprep.subr.bf16.mxu0 0
      %2972 = vmatpush1.bf16.msra.mxu0 0
      %2973 = vmatprep.subr.bf16.mxu0 0
      %2974 = vmatpush1.bf16.msra.mxu0 0
      %2975 = vmatprep.subr.bf16.mxu0 0
      %2976 = vmatpush1.bf16.msra.mxu0 0
      %2977 = vmatprep.subr.bf16.mxu0 0
      %2978 = vmatpush1.bf16.msra.mxu0 0
      %2979 = vmatprep.subr.bf16.mxu0 0
      %2980 = vmatpush1.bf16.msra.mxu0 0
      %2981 = vmatprep.subr.bf16.mxu0 0
      %2982 = vmatpush1.bf16.msra.mxu0 0
      %2983 = vmatprep.subr.bf16.mxu0 0
      %2984 = vmatpush1.bf16.msra.mxu0 0
      %2985 = vmatprep.subr.bf16.mxu0 0
      %2986 = vmatpush1.bf16.msra.mxu0 0
      %2987 = vmatprep.mubr.bf16.mxu0 0
      %2988 = vmatmul.mubr.bf16.gmra.mrb[0].mxu0 %v2950
      %v2989 = vpop.f32.mrb[0].mxu0
      %v2990 = vadd.f32 0.0, %v2989
      %v2991 = vpop.f32.mrb[0].mxu0
      %v2992 = vpop.f32.mrb[0].mxu0
      %v2993 = vadd.f32 0.0, %v2992
      %v2994 = vpop.f32.mrb[0].mxu0
      %2995 = vdwg.mxu0
      %v2997 = vsel %vm2618, %v2800, 0
      %v3000 = vand.u32 %v2237, %v2810
      %3002 = vmatprep.subr.bf16.mxu0 0
      %3003 = vmatpush1.bf16.msra.mxu0 %v3000
      %3004 = vmatprep.subr.bf16.mxu0 0
      %3005 = vmatpush1.bf16.msra.mxu0 0
      %3006 = vmatprep.subr.bf16.mxu0 0
      %3007 = vmatpush1.bf16.msra.mxu0 0
      %3008 = vmatprep.subr.bf16.mxu0 0
      %3009 = vmatpush1.bf16.msra.mxu0 0
      %3010 = vmatprep.subr.bf16.mxu0 0
      %3011 = vmatpush1.bf16.msra.mxu0 0
      %3012 = vmatprep.subr.bf16.mxu0 0
      %3013 = vmatpush1.bf16.msra.mxu0 0
      %3014 = vmatprep.subr.bf16.mxu0 0
      %3015 = vmatpush1.bf16.msra.mxu0 0
      %3016 = vmatprep.subr.bf16.mxu0 0
      %3017 = vmatpush1.bf16.msra.mxu0 0
      %3018 = vmatprep.subr.bf16.mxu0 0
      %3019 = vmatpush1.bf16.msra.mxu0 0
      %3020 = vmatprep.subr.bf16.mxu0 0
      %3021 = vmatpush1.bf16.msra.mxu0 0
      %3022 = vmatprep.subr.bf16.mxu0 0
      %3023 = vmatpush1.bf16.msra.mxu0 0
      %3024 = vmatprep.subr.bf16.mxu0 0
      %3025 = vmatpush1.bf16.msra.mxu0 0
      %3026 = vmatprep.subr.bf16.mxu0 0
      %3027 = vmatpush1.bf16.msra.mxu0 0
      %3028 = vmatprep.subr.bf16.mxu0 0
      %3029 = vmatpush1.bf16.msra.mxu0 0
      %3030 = vmatprep.subr.bf16.mxu0 0
      %3031 = vmatpush1.bf16.msra.mxu0 0
      %3032 = vmatprep.subr.bf16.mxu0 0
      %3033 = vmatpush1.bf16.msra.mxu0 0
      %3034 = vmatprep.mubr.bf16.mxu0 0
      %3035 = vmatmul.mubr.bf16.gmra.mrb[0].mxu0 %v2997
      %v3036 = vpop.f32.mrb[0].mxu0
      %v3037 = vadd.f32 0.0, %v3036
      %v3038 = vpop.f32.mrb[0].mxu0
      %v3039 = vpop.f32.mrb[0].mxu0
      %v3040 = vadd.f32 0.0, %v3039
      %v3041 = vpop.f32.mrb[0].mxu0
      %3042 = vdwg.mxu0
      %v3044 = vsel %vm2618, %v2801, 0
      %v3047 = vand.u32 %v2238, %v2810
      %3049 = vmatprep.subr.bf16.mxu0 0
      %3050 = vmatpush1.bf16.msra.mxu0 %v3047
      %3051 = vmatprep.subr.bf16.mxu0 0
      %3052 = vmatpush1.bf16.msra.mxu0 0
      %3053 = vmatprep.subr.bf16.mxu0 0
      %3054 = vmatpush1.bf16.msra.mxu0 0
      %3055 = vmatprep.subr.bf16.mxu0 0
      %3056 = vmatpush1.bf16.msra.mxu0 0
      %3057 = vmatprep.subr.bf16.mxu0 0
      %3058 = vmatpush1.bf16.msra.mxu0 0
      %3059 = vmatprep.subr.bf16.mxu0 0
      %3060 = vmatpush1.bf16.msra.mxu0 0
      %3061 = vmatprep.subr.bf16.mxu0 0
      %3062 = vmatpush1.bf16.msra.mxu0 0
      %3063 = vmatprep.subr.bf16.mxu0 0
      %3064 = vmatpush1.bf16.msra.mxu0 0
      %3065 = vmatprep.subr.bf16.mxu0 0
      %3066 = vmatpush1.bf16.msra.mxu0 0
      %3067 = vmatprep.subr.bf16.mxu0 0
      %3068 = vmatpush1.bf16.msra.mxu0 0
      %3069 = vmatprep.subr.bf16.mxu0 0
      %3070 = vmatpush1.bf16.msra.mxu0 0
      %3071 = vmatprep.subr.bf16.mxu0 0
      %3072 = vmatpush1.bf16.msra.mxu0 0
      %3073 = vmatprep.subr.bf16.mxu0 0
      %3074 = vmatpush1.bf16.msra.mxu0 0
      %3075 = vmatprep.subr.bf16.mxu0 0
      %3076 = vmatpush1.bf16.msra.mxu0 0
      %3077 = vmatprep.subr.bf16.mxu0 0
      %3078 = vmatpush1.bf16.msra.mxu0 0
      %3079 = vmatprep.subr.bf16.mxu0 0
      %3080 = vmatpush1.bf16.msra.mxu0 0
      %3081 = vmatprep.mubr.bf16.mxu0 0
      %3082 = vmatmul.mubr.bf16.gmra.mrb[0].mxu0 %v3044
      %v3083 = vpop.f32.mrb[0].mxu0
      %v3084 = vadd.f32 0.0, %v3083
      %v3085 = vpop.f32.mrb[0].mxu0
      %v3086 = vpop.f32.mrb[0].mxu0
      %v3087 = vadd.f32 0.0, %v3086
      %v3088 = vpop.f32.mrb[0].mxu0
      %3089 = vdwg.mxu0
      %v3091 = vsel %vm2618, %v2802, 0
      %v3094 = vand.u32 %v2239, %v2810
      %3096 = vmatprep.subr.bf16.mxu0 0
      %3097 = vmatpush1.bf16.msra.mxu0 %v3094
      %3098 = vmatprep.subr.bf16.mxu0 0
      %3099 = vmatpush1.bf16.msra.mxu0 0
      %3100 = vmatprep.subr.bf16.mxu0 0
      %3101 = vmatpush1.bf16.msra.mxu0 0
      %3102 = vmatprep.subr.bf16.mxu0 0
      %3103 = vmatpush1.bf16.msra.mxu0 0
      %3104 = vmatprep.subr.bf16.mxu0 0
      %3105 = vmatpush1.bf16.msra.mxu0 0
      %3106 = vmatprep.subr.bf16.mxu0 0
      %3107 = vmatpush1.bf16.msra.mxu0 0
      %3108 = vmatprep.subr.bf16.mxu0 0
      %3109 = vmatpush1.bf16.msra.mxu0 0
      %3110 = vmatprep.subr.bf16.mxu0 0
      %3111 = vmatpush1.bf16.msra.mxu0 0
      %3112 = vmatprep.subr.bf16.mxu0 0
      %3113 = vmatpush1.bf16.msra.mxu0 0
      %3114 = vmatprep.subr.bf16.mxu0 0
      %3115 = vmatpush1.bf16.msra.mxu0 0
      %3116 = vmatprep.subr.bf16.mxu0 0
      %3117 = vmatpush1.bf16.msra.mxu0 0
      %3118 = vmatprep.subr.bf16.mxu0 0
      %3119 = vmatpush1.bf16.msra.mxu0 0
      %3120 = vmatprep.subr.bf16.mxu0 0
      %3121 = vmatpush1.bf16.msra.mxu0 0
      %3122 = vmatprep.subr.bf16.mxu0 0
      %3123 = vmatpush1.bf16.msra.mxu0 0
      %3124 = vmatprep.subr.bf16.mxu0 0
      %3125 = vmatpush1.bf16.msra.mxu0 0
      %3126 = vmatprep.subr.bf16.mxu0 0
      %3127 = vmatpush1.bf16.msra.mxu0 0
      %3128 = vmatprep.mubr.bf16.mxu0 0
      %3129 = vmatmul.mubr.bf16.gmra.mrb[0].mxu0 %v3091
      %v3130 = vpop.f32.mrb[0].mxu0
      %v3131 = vadd.f32 0.0, %v3130
      %v3132 = vpop.f32.mrb[0].mxu0
      %v3133 = vpop.f32.mrb[0].mxu0
      %v3134 = vadd.f32 0.0, %v3133
      %v3135 = vpop.f32.mrb[0].mxu0
      %3136 = vdwg.mxu0
      %v3138 = vsel %vm2618, %v2803, 0
      %v3141 = vand.u32 %v2240, %v2810
      %3143 = vmatprep.subr.bf16.mxu0 0
      %3144 = vmatpush1.bf16.msra.mxu0 %v3141
      %3145 = vmatprep.subr.bf16.mxu0 0
      %3146 = vmatpush1.bf16.msra.mxu0 0
      %3147 = vmatprep.subr.bf16.mxu0 0
      %3148 = vmatpush1.bf16.msra.mxu0 0
      %3149 = vmatprep.subr.bf16.mxu0 0
      %3150 = vmatpush1.bf16.msra.mxu0 0
      %3151 = vmatprep.subr.bf16.mxu0 0
      %3152 = vmatpush1.bf16.msra.mxu0 0
      %3153 = vmatprep.subr.bf16.mxu0 0
      %3154 = vmatpush1.bf16.msra.mxu0 0
      %3155 = vmatprep.subr.bf16.mxu0 0
      %3156 = vmatpush1.bf16.msra.mxu0 0
      %3157 = vmatprep.subr.bf16.mxu0 0
      %3158 = vmatpush1.bf16.msra.mxu0 0
      %3159 = vmatprep.subr.bf16.mxu0 0
      %3160 = vmatpush1.bf16.msra.mxu0 0
      %3161 = vmatprep.subr.bf16.mxu0 0
      %3162 = vmatpush1.bf16.msra.mxu0 0
      %3163 = vmatprep.subr.bf16.mxu0 0
      %3164 = vmatpush1.bf16.msra.mxu0 0
      %3165 = vmatprep.subr.bf16.mxu0 0
      %3166 = vmatpush1.bf16.msra.mxu0 0
      %3167 = vmatprep.subr.bf16.mxu0 0
      %3168 = vmatpush1.bf16.msra.mxu0 0
      %3169 = vmatprep.subr.bf16.mxu0 0
      %3170 = vmatpush1.bf16.msra.mxu0 0
      %3171 = vmatprep.subr.bf16.mxu0 0
      %3172 = vmatpush1.bf16.msra.mxu0 0
      %3173 = vmatprep.subr.bf16.mxu0 0
      %3174 = vmatpush1.bf16.msra.mxu0 0
      %3175 = vmatprep.mubr.bf16.mxu0 0
      %3176 = vmatmul.mubr.bf16.gmra.mrb[0].mxu0 %v3138
      %v3177 = vpop.f32.mrb[0].mxu0
      %v3178 = vadd.f32 0.0, %v3177
      %v3179 = vpop.f32.mrb[0].mxu0
      %v3180 = vpop.f32.mrb[0].mxu0
      %v3181 = vadd.f32 0.0, %v3180
      %v3182 = vpop.f32.mrb[0].mxu0
      %3183 = vdwg.mxu0
      %v3184 = vcombine.low %v2849, %v2943
      %v3185 = vcombine.high %v2849, %v2943
      %v3187 = vunpack.c.l.s4 1983009808
      %v3188 = vunpack.c.0.s8 %v3187
      %v3189 = vlaneseq
      %v3190 = vshrl.u32 %v3189, 7
      %v3191 = vsub.s32 %v3188, %v3190
      %v3192 = vrot.slane %v3184, %v3191
      %v3194 = vunpack.c.l.s4 1983009808
      %v3195 = vunpack.c.0.s8 %v3194
      %v3196 = vlaneseq
      %v3197 = vshrl.u32 %v3196, 7
      %v3198 = vsub.s32 %v3195, %v3197
      %v3199 = vrot.slane %v3185, %v3198
      %v3200 = vcombine.low %v2896, %v2990
      %v3201 = vcombine.high %v2896, %v2990
      %v3203 = vunpack.c.l.s4 1983009808
      %v3204 = vunpack.c.0.s8 %v3203
      %v3205 = vlaneseq
      %v3206 = vshrl.u32 %v3205, 7
      %v3207 = vsub.s32 %v3204, %v3206
      %v3208 = vrot.slane %v3200, %v3207
      %v3210 = vunpack.c.l.s4 1983009808
      %v3211 = vunpack.c.0.s8 %v3210
      %v3212 = vlaneseq
      %v3213 = vshrl.u32 %v3212, 7
      %v3214 = vsub.s32 %v3211, %v3213
      %v3215 = vrot.slane %v3201, %v3214
      %v3216 = vcombine.low %v3192, %v3208
      %v3217 = vcombine.high %v3192, %v3208
      %v3219 = vunpack.c.l.s4 1934713408
      %v3220 = vunpack.c.0.s8 %v3219
      %v3221 = vlaneseq
      %v3222 = vshrl.u32 %v3221, 7
      %v3223 = vsub.s32 %v3220, %v3222
      %v3224 = vrot.slane %v3216, %v3223
      %v3226 = vunpack.c.l.s4 1934713408
      %v3227 = vunpack.c.0.s8 %v3226
      %v3228 = vlaneseq
      %v3229 = vshrl.u32 %v3228, 7
      %v3230 = vsub.s32 %v3227, %v3229
      %v3231 = vrot.slane %v3217, %v3230
      %v3232 = vcombine.low %v3199, %v3215
      %v3233 = vcombine.high %v3199, %v3215
      %v3235 = vunpack.c.l.s4 1934713408
      %v3236 = vunpack.c.0.s8 %v3235
      %v3237 = vlaneseq
      %v3238 = vshrl.u32 %v3237, 7
      %v3239 = vsub.s32 %v3236, %v3238
      %v3240 = vrot.slane %v3232, %v3239
      %v3242 = vunpack.c.l.s4 1934713408
      %v3243 = vunpack.c.0.s8 %v3242
      %v3244 = vlaneseq
      %v3245 = vshrl.u32 %v3244, 7
      %v3246 = vsub.s32 %v3243, %v3245
      %v3247 = vrot.slane %v3233, %v3246
      %v3248 = vcombine.high %v3224, 0.0
      %v3249 = vcombine.high %v3231, 0.0
      %v3250 = vcombine.high %v3240, 0.0
      %v3251 = vcombine.high %v3247, 0.0
      %v3252 = vcombine.low %v2852, %v2946
      %v3254 = vunpack.c.l.s4 1983009808
      %v3255 = vunpack.c.0.s8 %v3254
      %v3256 = vlaneseq
      %v3257 = vshrl.u32 %v3256, 7
      %v3258 = vsub.s32 %v3255, %v3257
      %v3259 = vrot.slane %v3252, %v3258
      %v3260 = vcombine.low %v2899, %v2993
      %v3262 = vunpack.c.l.s4 1983009808
      %v3263 = vunpack.c.0.s8 %v3262
      %v3264 = vlaneseq
      %v3265 = vshrl.u32 %v3264, 7
      %v3266 = vsub.s32 %v3263, %v3265
      %v3267 = vrot.slane %v3260, %v3266
      %v3268 = vcombine.low %v3259, %v3267
      %v3270 = vunpack.c.l.s4 1934713408
      %v3271 = vunpack.c.0.s8 %v3270
      %v3272 = vlaneseq
      %v3273 = vshrl.u32 %v3272, 7
      %v3274 = vsub.s32 %v3271, %v3273
      %v3275 = vrot.slane %v3268, %v3274
      %v3276 = vcombine.low %v3037, %v3131
      %v3277 = vcombine.high %v3037, %v3131
      %v3279 = vunpack.c.l.s4 1983009808
      %v3280 = vunpack.c.0.s8 %v3279
      %v3281 = vlaneseq
      %v3282 = vshrl.u32 %v3281, 7
      %v3283 = vsub.s32 %v3280, %v3282
      %v3284 = vrot.slane %v3276, %v3283
      %v3286 = vunpack.c.l.s4 1983009808
      %v3287 = vunpack.c.0.s8 %v3286
      %v3288 = vlaneseq
      %v3289 = vshrl.u32 %v3288, 7
      %v3290 = vsub.s32 %v3287, %v3289
      %v3291 = vrot.slane %v3277, %v3290
      %v3292 = vcombine.low %v3084, %v3178
      %v3293 = vcombine.high %v3084, %v3178
      %v3295 = vunpack.c.l.s4 1983009808
      %v3296 = vunpack.c.0.s8 %v3295
      %v3297 = vlaneseq
      %v3298 = vshrl.u32 %v3297, 7
      %v3299 = vsub.s32 %v3296, %v3298
      %v3300 = vrot.slane %v3292, %v3299
      %v3302 = vunpack.c.l.s4 1983009808
      %v3303 = vunpack.c.0.s8 %v3302
      %v3304 = vlaneseq
      %v3305 = vshrl.u32 %v3304, 7
      %v3306 = vsub.s32 %v3303, %v3305
      %v3307 = vrot.slane %v3293, %v3306
      %v3308 = vcombine.low %v3284, %v3300
      %v3309 = vcombine.high %v3284, %v3300
      %v3311 = vunpack.c.l.s4 1934713408
      %v3312 = vunpack.c.0.s8 %v3311
      %v3313 = vlaneseq
      %v3314 = vshrl.u32 %v3313, 7
      %v3315 = vsub.s32 %v3312, %v3314
      %v3316 = vrot.slane %v3308, %v3315
      %v3318 = vunpack.c.l.s4 1934713408
      %v3319 = vunpack.c.0.s8 %v3318
      %v3320 = vlaneseq
      %v3321 = vshrl.u32 %v3320, 7
      %v3322 = vsub.s32 %v3319, %v3321
      %v3323 = vrot.slane %v3309, %v3322
      %v3324 = vcombine.low %v3291, %v3307
      %v3325 = vcombine.high %v3291, %v3307
      %v3327 = vunpack.c.l.s4 1934713408
      %v3328 = vunpack.c.0.s8 %v3327
      %v3329 = vlaneseq
      %v3330 = vshrl.u32 %v3329, 7
      %v3331 = vsub.s32 %v3328, %v3330
      %v3332 = vrot.slane %v3324, %v3331
      %v3334 = vunpack.c.l.s4 1934713408
      %v3335 = vunpack.c.0.s8 %v3334
      %v3336 = vlaneseq
      %v3337 = vshrl.u32 %v3336, 7
      %v3338 = vsub.s32 %v3335, %v3337
      %v3339 = vrot.slane %v3325, %v3338
      %v3340 = vcombine.high %v3316, 0.0
      %v3341 = vcombine.high %v3323, 0.0
      %v3342 = vcombine.high %v3332, 0.0
      %v3343 = vcombine.low %v3040, %v3134
      %v3345 = vunpack.c.l.s4 1983009808
      %v3346 = vunpack.c.0.s8 %v3345
      %v3347 = vlaneseq
      %v3348 = vshrl.u32 %v3347, 7
      %v3349 = vsub.s32 %v3346, %v3348
      %v3350 = vrot.slane %v3343, %v3349
      %v3351 = vcombine.low %v3087, %v3181
      %v3353 = vunpack.c.l.s4 1983009808
      %v3354 = vunpack.c.0.s8 %v3353
      %v3355 = vlaneseq
      %v3356 = vshrl.u32 %v3355, 7
      %v3357 = vsub.s32 %v3354, %v3356
      %v3358 = vrot.slane %v3351, %v3357
      %v3359 = vcombine.low %v3350, %v3358
      %v3360 = vcombine.low %v3224, %v3231
      %v3362 = vunpack.c.l.s4 1983009808
      %v3363 = vunpack.c.0.s8 %v3362
      %v3364 = vlaneseq
      %v3365 = vshrl.u32 %v3364, 7
      %v3366 = vsub.s32 %v3363, %v3365
      %v3367 = vrot.slane %v3360, %v3366
      %v3368 = vcombine.low %v3248, %v3249
      %v3370 = vunpack.c.l.s4 1983009808
      %v3371 = vunpack.c.0.s8 %v3370
      %v3372 = vlaneseq
      %v3373 = vshrl.u32 %v3372, 7
      %v3374 = vsub.s32 %v3371, %v3373
      %v3375 = vrot.slane %v3368, %v3374
      %v3376 = vcombine.low %v3240, %v3247
      %v3378 = vunpack.c.l.s4 1983009808
      %v3379 = vunpack.c.0.s8 %v3378
      %v3380 = vlaneseq
      %v3381 = vshrl.u32 %v3380, 7
      %v3382 = vsub.s32 %v3379, %v3381
      %v3383 = vrot.slane %v3376, %v3382
      %v3384 = vcombine.low %v3250, %v3251
      %v3386 = vunpack.c.l.s4 1983009808
      %v3387 = vunpack.c.0.s8 %v3386
      %v3388 = vlaneseq
      %v3389 = vshrl.u32 %v3388, 7
      %v3390 = vsub.s32 %v3387, %v3389
      %v3391 = vrot.slane %v3384, %v3390
      %v3392 = vcombine.low %v3367, %v3375
      %v3393 = vcombine.high %v3367, %v3375
      %v3395 = vunpack.c.l.s4 1934713408
      %v3396 = vunpack.c.0.s8 %v3395
      %v3397 = vlaneseq
      %v3398 = vshrl.u32 %v3397, 7
      %v3399 = vsub.s32 %v3396, %v3398
      %v3400 = vrot.slane %v3392, %v3399
      %v3402 = vunpack.c.l.s4 1934713408
      %v3403 = vunpack.c.0.s8 %v3402
      %v3404 = vlaneseq
      %v3405 = vshrl.u32 %v3404, 7
      %v3406 = vsub.s32 %v3403, %v3405
      %v3407 = vrot.slane %v3393, %v3406
      %v3408 = vcombine.low %v3383, %v3391
      %v3409 = vcombine.high %v3383, %v3391
      %v3411 = vunpack.c.l.s4 1934713408
      %v3412 = vunpack.c.0.s8 %v3411
      %v3413 = vlaneseq
      %v3414 = vshrl.u32 %v3413, 7
      %v3415 = vsub.s32 %v3412, %v3414
      %v3416 = vrot.slane %v3408, %v3415
      %v3418 = vunpack.c.l.s4 1934713408
      %v3419 = vunpack.c.0.s8 %v3418
      %v3420 = vlaneseq
      %v3421 = vshrl.u32 %v3420, 7
      %v3422 = vsub.s32 %v3419, %v3421
      %v3423 = vrot.slane %v3409, %v3422
      %v3424 = vcombine.low %v3400, %v3416
      %v3425 = vcombine.high %v3400, %v3416
      %v3426 = vcombine.low %v3407, %v3423
      %v3427 = vcombine.high %v3407, %v3423
      %v3428 = vcombine.low %v3275, %v3340
      %v3430 = vunpack.c.l.s4 1983009808
      %v3431 = vunpack.c.0.s8 %v3430
      %v3432 = vlaneseq
      %v3433 = vshrl.u32 %v3432, 7
      %v3434 = vsub.s32 %v3431, %v3433
      %v3435 = vrot.slane %v3428, %v3434
      %v3436 = vcombine.low %v3316, %v3323
      %v3438 = vunpack.c.l.s4 1983009808
      %v3439 = vunpack.c.0.s8 %v3438
      %v3440 = vlaneseq
      %v3441 = vshrl.u32 %v3440, 7
      %v3442 = vsub.s32 %v3439, %v3441
      %v3443 = vrot.slane %v3436, %v3442
      %v3444 = vcombine.low %v3341, %v3342
      %v3446 = vunpack.c.l.s4 1983009808
      %v3447 = vunpack.c.0.s8 %v3446
      %v3448 = vlaneseq
      %v3449 = vshrl.u32 %v3448, 7
      %v3450 = vsub.s32 %v3447, %v3449
      %v3451 = vrot.slane %v3444, %v3450
      %v3452 = vcombine.low %v3332, %v3339
      %v3454 = vunpack.c.l.s4 1983009808
      %v3455 = vunpack.c.0.s8 %v3454
      %v3456 = vlaneseq
      %v3457 = vshrl.u32 %v3456, 7
      %v3458 = vsub.s32 %v3455, %v3457
      %v3459 = vrot.slane %v3452, %v3458
      %v3460 = vcombine.low %v3435, %v3443
      %v3461 = vcombine.high %v3435, %v3443
      %v3463 = vunpack.c.l.s4 1934713408
      %v3464 = vunpack.c.0.s8 %v3463
      %v3465 = vlaneseq
      %v3466 = vshrl.u32 %v3465, 7
      %v3467 = vsub.s32 %v3464, %v3466
      %v3468 = vrot.slane %v3460, %v3467
      %v3470 = vunpack.c.l.s4 1934713408
      %v3471 = vunpack.c.0.s8 %v3470
      %v3472 = vlaneseq
      %v3473 = vshrl.u32 %v3472, 7
      %v3474 = vsub.s32 %v3471, %v3473
      %v3475 = vrot.slane %v3461, %v3474
      %v3476 = vcombine.low %v3451, %v3459
      %v3477 = vcombine.high %v3451, %v3459
      %v3479 = vunpack.c.l.s4 1934713408
      %v3480 = vunpack.c.0.s8 %v3479
      %v3481 = vlaneseq
      %v3482 = vshrl.u32 %v3481, 7
      %v3483 = vsub.s32 %v3480, %v3482
      %v3484 = vrot.slane %v3476, %v3483
      %v3486 = vunpack.c.l.s4 1934713408
      %v3487 = vunpack.c.0.s8 %v3486
      %v3488 = vlaneseq
      %v3489 = vshrl.u32 %v3488, 7
      %v3490 = vsub.s32 %v3487, %v3489
      %v3491 = vrot.slane %v3477, %v3490
      %v3492 = vcombine.low %v3468, %v3484
      %v3493 = vcombine.high %v3468, %v3484
      %v3494 = vcombine.low %v3475, %v3491
      %v3495 = vcombine.high %v3475, %v3491
      %v3496 = vcombine.high %v3339, 0.0
      %v3498 = vunpack.c.l.s4 1983009808
      %v3499 = vunpack.c.0.s8 %v3498
      %v3500 = vlaneseq
      %v3501 = vshrl.u32 %v3500, 7
      %v3502 = vsub.s32 %v3499, %v3501
      %v3503 = vrot.slane %v3496, %v3502
      %v3505 = vunpack.c.l.s4 1934713408
      %v3506 = vunpack.c.0.s8 %v3505
      %v3507 = vlaneseq
      %v3508 = vshrl.u32 %v3507, 7
      %v3509 = vsub.s32 %v3506, %v3508
      %v3510 = vrot.slane %v3359, %v3509
      %v3512 = vunpack.c.l.s4 1983009808
      %v3513 = vunpack.c.0.s8 %v3512
      %v3514 = vlaneseq
      %v3515 = vshrl.u32 %v3514, 7
      %v3516 = vsub.s32 %v3513, %v3515
      %v3517 = vrot.slane %v3510, %v3516
      %v3518 = vcombine.low %v3503, %v3517
      %v3519 = vcombine.high %v3503, %v3517
      %v3521 = vunpack.c.l.s4 1934713408
      %v3522 = vunpack.c.0.s8 %v3521
      %v3523 = vlaneseq
      %v3524 = vshrl.u32 %v3523, 7
      %v3525 = vsub.s32 %v3522, %v3524
      %v3526 = vrot.slane %v3518, %v3525
      %v3528 = vunpack.c.l.s4 1934713408
      %v3529 = vunpack.c.0.s8 %v3528
      %v3530 = vlaneseq
      %v3531 = vshrl.u32 %v3530, 7
      %v3532 = vsub.s32 %v3529, %v3531
      %v3533 = vrot.slane %v3519, %v3532
      %v3534 = vcombine.high %v3526, 0.0
      %v3535 = vcombine.high %v3533, 0.0
      %3539 = vrot.lane.b32.xlu0 %v3425, 8
      %v3540 = vpop.permute.xlu0 %3539
      %3541 = vrot.lane.b32.xlu0 %v3493, 8
      %v3542 = vpop.permute.xlu0 %3541
      %3543 = vrot.lane.b32.xlu0 %v3534, 8
      %v3544 = vpop.permute.xlu0 %3543
      %3551 = vrot.lane.b32.xlu0 %v3426, 16
      %v3552 = vpop.permute.xlu0 %3551
      %3553 = vrot.lane.b32.xlu0 %v3494, 16
      %v3554 = vpop.permute.xlu0 %3553
      %3555 = vrot.lane.b32.xlu0 %v3533, 16
      %v3556 = vpop.permute.xlu0 %3555
      %3563 = vrot.lane.b32.xlu0 %v3427, 24
      %v3564 = vpop.permute.xlu0 %3563
      %3565 = vrot.lane.b32.xlu0 %v3495, 24
      %v3566 = vpop.permute.xlu0 %3565
      %3567 = vrot.lane.b32.xlu0 %v3535, 24
      %v3568 = vpop.permute.xlu0 %3567
      %v3572 = vsel %vm2241, %v3424, %v3540
      %v3573 = vsel %vm2241, %v3492, %v3542
      %v3574 = vsel %vm2241, %v3526, %v3544
      %v3575 = vsel %vm244, %v3572, %v3552
      %v3576 = vsel %vm244, %v3573, %v3554
      %v3577 = vsel %vm244, %v3574, %v3556
      %vm3578 = vcmask 195584
      %v3579 = vsel %vm3578, %v3575, %v3564
      %v3580 = vsel %vm3578, %v3576, %v3566
      %v3581 = vsel %vm3578, %v3577, %v3568
      %s3582 = smul.addr %s863, 4
      %s3583 = scalar_lea.vmem %s43, %s3582
      %v3584 = vld [vmem:[%s3583] sm:$0xf]
      %v3585 = vld [vmem:[%s3583 + $0x4] sm:$0xf]
      %v3586 = vld [vmem:[%s3583 + $0x8] sm:$0xf]
      %v3587 = vld [vmem:[%s3583 + $0xc] sm:$0xf]
      %v3588 = vpack.c.bf16 %v3580, %v3579
      %v3589 = vpack.c.bf16 %v3581, %v3581
      %s3590 = scalar_lea.vmem %s45, %s704
      %v3591 = vld [vmem:[%s3590] sm:$0x1]
      %v3593 = vlaneseq
      %v3594 = vshrl.u32 %v3593, 7
      %v3595 = vsub.s32 0, %v3594
      %v3596 = vrot.slane %v3591, %v3595
      %v3602 = vunpack.c.l.b16 %v3584
      %v3603 = vunpack.c.l.b16 %v3585
      %v3604 = vunpack.c.l.b16 %v3586
      %v3605 = vunpack.c.l.b16 %v3587
      %v3606 = vpack.c.b16 %v3603, %v3602
      %v3607 = vpack.c.b16 %v3605, %v3604
      %v3611 = vsel %vm317, %v3588, 0
      %v3614 = vsel %vm317, %v3589, 0
      %3616 = vmatprep.subr.bf16.mxu0 0
      %3617 = vmatpush1.bf16.msra.mxu0 %v3606
      %3618 = vmatprep.subr.bf16.mxu0 0
      %3619 = vmatpush1.bf16.msra.mxu0 %v3607
      %3620 = vmatprep.subr.bf16.mxu0 0
      %3621 = vmatpush1.bf16.msra.mxu0 0
      %3622 = vmatprep.subr.bf16.mxu0 0
      %3623 = vmatpush1.bf16.msra.mxu0 0
      %3624 = vmatprep.subr.bf16.mxu0 0
      %3625 = vmatpush1.bf16.msra.mxu0 0
      %3626 = vmatprep.subr.bf16.mxu0 0
      %3627 = vmatpush1.bf16.msra.mxu0 0
      %3628 = vmatprep.subr.bf16.mxu0 0
      %3629 = vmatpush1.bf16.msra.mxu0 0
      %3630 = vmatprep.subr.bf16.mxu0 0
      %3631 = vmatpush1.bf16.msra.mxu0 0
      %3632 = vmatprep.subr.bf16.mxu0 0
      %3633 = vmatpush1.bf16.msra.mxu0 0
      %3634 = vmatprep.subr.bf16.mxu0 0
      %3635 = vmatpush1.bf16.msra.mxu0 0
      %3636 = vmatprep.subr.bf16.mxu0 0
      %3637 = vmatpush1.bf16.msra.mxu0 0
      %3638 = vmatprep.subr.bf16.mxu0 0
      %3639 = vmatpush1.bf16.msra.mxu0 0
      %3640 = vmatprep.subr.bf16.mxu0 0
      %3641 = vmatpush1.bf16.msra.mxu0 0
      %3642 = vmatprep.subr.bf16.mxu0 0
      %3643 = vmatpush1.bf16.msra.mxu0 0
      %3644 = vmatprep.subr.bf16.mxu0 0
      %3645 = vmatpush1.bf16.msra.mxu0 0
      %3646 = vmatprep.subr.bf16.mxu0 0
      %3647 = vmatpush1.bf16.msra.mxu0 0
      %3648 = vmatprep.mubr.bf16.mxu0 0
      %3649 = vmatmul.mubr.bf16.gmra.mrb[0].mxu0 %v3611
      %v3650 = vpop.f32.mrb[0].mxu0
      %v3651 = vadd.f32 %v3596, %v3650
      %v3652 = vpop.f32.mrb[0].mxu0
      %v3653 = vpop.f32.mrb[0].mxu0
      %v3654 = vadd.f32 %v3596, %v3653
      %v3655 = vpop.f32.mrb[0].mxu0
      %3656 = vmatprep.mubr.bf16.mxu0 0
      %3657 = vmatmul.mubr.bf16.gmra.mrb[0].mxu0 %v3614
      %v3658 = vpop.f32.mrb[0].mxu0
      %v3659 = vadd.f32 %v3596, %v3658
      %v3660 = vpop.f32.mrb[0].mxu0
      %v3661 = vpop.f32.mrb[0].mxu0
      %v3662 = vpop.f32.mrb[0].mxu0
      %3663 = vdwg.mxu0
      %v3667 = vcombine.high %v3651, %v3651
      %v3669 = vunpack.c.l.s4 1966171168
      %v3670 = vunpack.c.0.s8 %v3669
      %v3671 = vlaneseq
      %v3672 = vshrl.u32 %v3671, 7
      %v3673 = vsub.s32 %v3670, %v3672
      %v3674 = vrot.slane %v3651, %v3673
      %v3676 = vunpack.c.l.s4 1966171168
      %v3677 = vunpack.c.0.s8 %v3676
      %v3678 = vlaneseq
      %v3679 = vshrl.u32 %v3678, 7
      %v3680 = vsub.s32 %v3677, %v3679
      %v3681 = vrot.slane %v3667, %v3680
      %v3682 = vcombine.high %v3674, %v3674
      %v3683 = vcombine.high %v3681, %v3681
      %v3685 = vunpack.c.l.s4 1966171168
      %v3686 = vunpack.c.0.s8 %v3685
      %v3687 = vlaneseq
      %v3688 = vshrl.u32 %v3687, 7
      %v3689 = vsub.s32 %v3686, %v3688
      %v3690 = vrot.slane %v3674, %v3689
      %v3692 = vunpack.c.l.s4 1966171168
      %v3693 = vunpack.c.0.s8 %v3692
      %v3694 = vlaneseq
      %v3695 = vshrl.u32 %v3694, 7
      %v3696 = vsub.s32 %v3693, %v3695
      %v3697 = vrot.slane %v3681, %v3696
      %v3699 = vunpack.c.l.s4 1966171168
      %v3700 = vunpack.c.0.s8 %v3699
      %v3701 = vlaneseq
      %v3702 = vshrl.u32 %v3701, 7
      %v3703 = vsub.s32 %v3700, %v3702
      %v3704 = vrot.slane %v3682, %v3703
      %v3706 = vunpack.c.l.s4 1966171168
      %v3707 = vunpack.c.0.s8 %v3706
      %v3708 = vlaneseq
      %v3709 = vshrl.u32 %v3708, 7
      %v3710 = vsub.s32 %v3707, %v3709
      %v3711 = vrot.slane %v3683, %v3710
      %v3712 = vcombine.high %v3690, %v3690
      %v3713 = vcombine.high %v3697, %v3697
      %v3714 = vcombine.high %v3704, %v3704
      %v3715 = vcombine.high %v3711, %v3711
      %v3716 = vcombine.high %v3654, %v3654
      %v3718 = vunpack.c.l.s4 1966171168
      %v3719 = vunpack.c.0.s8 %v3718
      %v3720 = vlaneseq
      %v3721 = vshrl.u32 %v3720, 7
      %v3722 = vsub.s32 %v3719, %v3721
      %v3723 = vrot.slane %v3654, %v3722
      %v3725 = vunpack.c.l.s4 1966171168
      %v3726 = vunpack.c.0.s8 %v3725
      %v3727 = vlaneseq
      %v3728 = vshrl.u32 %v3727, 7
      %v3729 = vsub.s32 %v3726, %v3728
      %v3730 = vrot.slane %v3716, %v3729
      %v3731 = vcombine.high %v3723, %v3723
      %v3732 = vcombine.high %v3730, %v3730
      %v3734 = vunpack.c.l.s4 1966171168
      %v3735 = vunpack.c.0.s8 %v3734
      %v3736 = vlaneseq
      %v3737 = vshrl.u32 %v3736, 7
      %v3738 = vsub.s32 %v3735, %v3737
      %v3739 = vrot.slane %v3723, %v3738
      %v3741 = vunpack.c.l.s4 1966171168
      %v3742 = vunpack.c.0.s8 %v3741
      %v3743 = vlaneseq
      %v3744 = vshrl.u32 %v3743, 7
      %v3745 = vsub.s32 %v3742, %v3744
      %v3746 = vrot.slane %v3730, %v3745
      %v3748 = vunpack.c.l.s4 1966171168
      %v3749 = vunpack.c.0.s8 %v3748
      %v3750 = vlaneseq
      %v3751 = vshrl.u32 %v3750, 7
      %v3752 = vsub.s32 %v3749, %v3751
      %v3753 = vrot.slane %v3731, %v3752
      %v3755 = vunpack.c.l.s4 1966171168
      %v3756 = vunpack.c.0.s8 %v3755
      %v3757 = vlaneseq
      %v3758 = vshrl.u32 %v3757, 7
      %v3759 = vsub.s32 %v3756, %v3758
      %v3760 = vrot.slane %v3732, %v3759
      %v3761 = vcombine.high %v3739, %v3739
      %v3762 = vcombine.high %v3746, %v3746
      %v3763 = vcombine.high %v3753, %v3753
      %v3764 = vcombine.high %v3760, %v3760
      %v3766 = vunpack.c.l.s4 1966171168
      %v3767 = vunpack.c.0.s8 %v3766
      %v3768 = vlaneseq
      %v3769 = vshrl.u32 %v3768, 7
      %v3770 = vsub.s32 %v3767, %v3769
      %v3771 = vrot.slane %v3659, %v3770
      %v3772 = vcombine.high %v3771, %v3771
      %v3774 = vunpack.c.l.s4 1966171168
      %v3775 = vunpack.c.0.s8 %v3774
      %v3776 = vlaneseq
      %v3777 = vshrl.u32 %v3776, 7
      %v3778 = vsub.s32 %v3775, %v3777
      %v3779 = vrot.slane %v3771, %v3778
      %v3781 = vunpack.c.l.s4 1966171168
      %v3782 = vunpack.c.0.s8 %v3781
      %v3783 = vlaneseq
      %v3784 = vshrl.u32 %v3783, 7
      %v3785 = vsub.s32 %v3782, %v3784
      %v3786 = vrot.slane %v3772, %v3785
      %v3805 = vadd.f32 %v709, %v3690
      %v3806 = vadd.f32 %v710, %v3704
      %v3807 = vadd.f32 %v711, %v3712
      %v3808 = vadd.f32 %v712, %v3714
      %v3809 = vadd.f32 %v713, %v3697
      %v3810 = vadd.f32 %v714, %v3711
      %v3811 = vadd.f32 %v715, %v3713
      %v3812 = vadd.f32 %v716, %v3715
      %v3813 = vadd.f32 %v717, %v3739
      %v3814 = vadd.f32 %v718, %v3753
      %v3815 = vadd.f32 %v719, %v3761
      %v3816 = vadd.f32 %v720, %v3763
      %v3817 = vadd.f32 %v721, %v3746
      %v3818 = vadd.f32 %v722, %v3760
      %v3819 = vadd.f32 %v723, %v3762
      %v3820 = vadd.f32 %v724, %v3764
      %v3821 = vadd.f32 %v725, %v3779
      %v3822 = vadd.f32 %v726, %v3786
      %s3823 = scalar_lea.vmem [#allocation8], %s704
      %v3824 = vld [vmem:[%s3823] sm:$0x1]
      %s3825 = scalar_lea.vmem [#allocation10], %s704
      %v3826 = vld [vmem:[%s3825] sm:$0x1]
      %v3845 = vcombine.low %v3805, %v3806
      %v3846 = vcombine.low %v3807, %v3808
      %v3847 = vcombine.low %v3809, %v3810
      %v3848 = vcombine.low %v3811, %v3812
      %v3850 = vunpack.c.l.s4 1966171168
      %v3851 = vunpack.c.0.s8 %v3850
      %v3852 = vlaneseq
      %v3853 = vshrl.u32 %v3852, 7
      %v3854 = vsub.s32 %v3851, %v3853
      %v3855 = vrot.slane %v3845, %v3854
      %v3857 = vunpack.c.l.s4 1966171168
      %v3858 = vunpack.c.0.s8 %v3857
      %v3859 = vlaneseq
      %v3860 = vshrl.u32 %v3859, 7
      %v3861 = vsub.s32 %v3858, %v3860
      %v3862 = vrot.slane %v3846, %v3861
      %v3864 = vunpack.c.l.s4 1966171168
      %v3865 = vunpack.c.0.s8 %v3864
      %v3866 = vlaneseq
      %v3867 = vshrl.u32 %v3866, 7
      %v3868 = vsub.s32 %v3865, %v3867
      %v3869 = vrot.slane %v3847, %v3868
      %v3871 = vunpack.c.l.s4 1966171168
      %v3872 = vunpack.c.0.s8 %v3871
      %v3873 = vlaneseq
      %v3874 = vshrl.u32 %v3873, 7
      %v3875 = vsub.s32 %v3872, %v3874
      %v3876 = vrot.slane %v3848, %v3875
      %v3877 = vcombine.low %v3855, %v3862
      %v3878 = vcombine.low %v3869, %v3876
      %v3880 = vunpack.c.l.s4 1966171168
      %v3881 = vunpack.c.0.s8 %v3880
      %v3882 = vlaneseq
      %v3883 = vshrl.u32 %v3882, 7
      %v3884 = vsub.s32 %v3881, %v3883
      %v3885 = vrot.slane %v3877, %v3884
      %v3887 = vunpack.c.l.s4 1966171168
      %v3888 = vunpack.c.0.s8 %v3887
      %v3889 = vlaneseq
      %v3890 = vshrl.u32 %v3889, 7
      %v3891 = vsub.s32 %v3888, %v3890
      %v3892 = vrot.slane %v3878, %v3891
      %v3893 = vcombine.low %v3885, %v3892
      %v3894 = vcombine.low %v3813, %v3814
      %v3895 = vcombine.low %v3815, %v3816
      %v3896 = vcombine.low %v3817, %v3818
      %v3897 = vcombine.low %v3819, %v3820
      %v3899 = vunpack.c.l.s4 1966171168
      %v3900 = vunpack.c.0.s8 %v3899
      %v3901 = vlaneseq
      %v3902 = vshrl.u32 %v3901, 7
      %v3903 = vsub.s32 %v3900, %v3902
      %v3904 = vrot.slane %v3894, %v3903
      %v3906 = vunpack.c.l.s4 1966171168
      %v3907 = vunpack.c.0.s8 %v3906
      %v3908 = vlaneseq
      %v3909 = vshrl.u32 %v3908, 7
      %v3910 = vsub.s32 %v3907, %v3909
      %v3911 = vrot.slane %v3895, %v3910
      %v3913 = vunpack.c.l.s4 1966171168
      %v3914 = vunpack.c.0.s8 %v3913
      %v3915 = vlaneseq
      %v3916 = vshrl.u32 %v3915, 7
      %v3917 = vsub.s32 %v3914, %v3916
      %v3918 = vrot.slane %v3896, %v3917
      %v3920 = vunpack.c.l.s4 1966171168
      %v3921 = vunpack.c.0.s8 %v3920
      %v3922 = vlaneseq
      %v3923 = vshrl.u32 %v3922, 7
      %v3924 = vsub.s32 %v3921, %v3923
      %v3925 = vrot.slane %v3897, %v3924
      %v3926 = vcombine.low %v3904, %v3911
      %v3927 = vcombine.low %v3918, %v3925
      %v3929 = vunpack.c.l.s4 1966171168
      %v3930 = vunpack.c.0.s8 %v3929
      %v3931 = vlaneseq
      %v3932 = vshrl.u32 %v3931, 7
      %v3933 = vsub.s32 %v3930, %v3932
      %v3934 = vrot.slane %v3926, %v3933
      %v3936 = vunpack.c.l.s4 1966171168
      %v3937 = vunpack.c.0.s8 %v3936
      %v3938 = vlaneseq
      %v3939 = vshrl.u32 %v3938, 7
      %v3940 = vsub.s32 %v3937, %v3939
      %v3941 = vrot.slane %v3927, %v3940
      %v3942 = vcombine.low %v3934, %v3941
      %v3943 = vcombine.low %v3821, %v3822
      %v3945 = vunpack.c.l.s4 1966171168
      %v3946 = vunpack.c.0.s8 %v3945
      %v3947 = vlaneseq
      %v3948 = vshrl.u32 %v3947, 7
      %v3949 = vsub.s32 %v3946, %v3948
      %v3950 = vrot.slane %v3943, %v3949
      %v3952 = vunpack.c.l.s4 1966171168
      %v3953 = vunpack.c.0.s8 %v3952
      %v3954 = vlaneseq
      %v3955 = vshrl.u32 %v3954, 7
      %v3956 = vsub.s32 %v3953, %v3955
      %v3957 = vrot.slane %v3950, %v3956
      %v3961 = vsel %vm317, %v3893, 0.0
      %3962 = vadd.xlane.f32.xlu0 %v3961
      %v3963 = vpop.xlane.xlu0 %3962
      %v3964 = vsel %vm317, %v3942, 0.0
      %3965 = vadd.xlane.f32.xlu0 %v3964
      %v3966 = vpop.xlane.xlu0 %3965
      %vm3967 = vcmask 254976
      %v3968 = vsel %vm3967, %v3957, 0.0
      %3969 = vadd.xlane.f32.xlu0 %v3968
      %v3970 = vpop.xlane.xlu0 %3969
      %v3971 = vrcp.pop 32.0
      %v3972 = vmul.f32 %v3963, %v3971
      %v3973 = vmul.f32 %v3966, %v3971
      %v3974 = vmul.f32 %v3970, %v3971
      %v3978 = vlaneseq
      %v3979 = vshrl.u32 %v3978, 7
      %v3980 = vsub.s32 0, %v3979
      %v3981 = vrot.slane %v3972, %v3980
      %v3982 = vlaneseq
      %v3983 = vshrl.u32 %v3982, 7
      %v3984 = vsub.s32 1, %v3983
      %v3985 = vrot.slane %v3972, %v3984
      %v3986 = vlaneseq
      %v3987 = vshrl.u32 %v3986, 7
      %v3988 = vsub.s32 2, %v3987
      %v3989 = vrot.slane %v3972, %v3988
      %v3990 = vlaneseq
      %v3991 = vshrl.u32 %v3990, 7
      %v3992 = vsub.s32 3, %v3991
      %v3993 = vrot.slane %v3972, %v3992
      %v3994 = vlaneseq
      %v3995 = vshrl.u32 %v3994, 7
      %v3996 = vsub.s32 4, %v3995
      %v3997 = vrot.slane %v3972, %v3996
      %v3998 = vlaneseq
      %v3999 = vshrl.u32 %v3998, 7
      %v4000 = vsub.s32 5, %v3999
      %v4001 = vrot.slane %v3972, %v4000
      %v4002 = vlaneseq
      %v4003 = vshrl.u32 %v4002, 7
      %v4004 = vsub.s32 6, %v4003
      %v4005 = vrot.slane %v3972, %v4004
      %v4006 = vlaneseq
      %v4007 = vshrl.u32 %v4006, 7
      %v4008 = vsub.s32 7, %v4007
      %v4009 = vrot.slane %v3972, %v4008
      %v4010 = vlaneseq
      %v4011 = vshrl.u32 %v4010, 7
      %v4012 = vsub.s32 0, %v4011
      %v4013 = vrot.slane %v3973, %v4012
      %v4014 = vlaneseq
      %v4015 = vshrl.u32 %v4014, 7
      %v4016 = vsub.s32 1, %v4015
      %v4017 = vrot.slane %v3973, %v4016
      %v4018 = vlaneseq
      %v4019 = vshrl.u32 %v4018, 7
      %v4020 = vsub.s32 2, %v4019
      %v4021 = vrot.slane %v3973, %v4020
      %v4022 = vlaneseq
      %v4023 = vshrl.u32 %v4022, 7
      %v4024 = vsub.s32 3, %v4023
      %v4025 = vrot.slane %v3973, %v4024
      %v4026 = vlaneseq
      %v4027 = vshrl.u32 %v4026, 7
      %v4028 = vsub.s32 4, %v4027
      %v4029 = vrot.slane %v3973, %v4028
      %v4030 = vlaneseq
      %v4031 = vshrl.u32 %v4030, 7
      %v4032 = vsub.s32 5, %v4031
      %v4033 = vrot.slane %v3973, %v4032
      %v4034 = vlaneseq
      %v4035 = vshrl.u32 %v4034, 7
      %v4036 = vsub.s32 6, %v4035
      %v4037 = vrot.slane %v3973, %v4036
      %v4038 = vlaneseq
      %v4039 = vshrl.u32 %v4038, 7
      %v4040 = vsub.s32 7, %v4039
      %v4041 = vrot.slane %v3973, %v4040
      %v4042 = vlaneseq
      %v4043 = vshrl.u32 %v4042, 7
      %v4044 = vsub.s32 0, %v4043
      %v4045 = vrot.slane %v3974, %v4044
      %v4046 = vlaneseq
      %v4047 = vshrl.u32 %v4046, 7
      %v4048 = vsub.s32 1, %v4047
      %v4049 = vrot.slane %v3974, %v4048
      %v4068 = vsub.f32 %v3805, %v3981
      %v4069 = vsub.f32 %v3806, %v3985
      %v4070 = vsub.f32 %v3807, %v3989
      %v4071 = vsub.f32 %v3808, %v3993
      %v4072 = vsub.f32 %v3809, %v3997
      %v4073 = vsub.f32 %v3810, %v4001
      %v4074 = vsub.f32 %v3811, %v4005
      %v4075 = vsub.f32 %v3812, %v4009
      %v4076 = vsub.f32 %v3813, %v4013
      %v4077 = vsub.f32 %v3814, %v4017
      %v4078 = vsub.f32 %v3815, %v4021
      %v4079 = vsub.f32 %v3816, %v4025
      %v4080 = vsub.f32 %v3817, %v4029
      %v4081 = vsub.f32 %v3818, %v4033
      %v4082 = vsub.f32 %v3819, %v4037
      %v4083 = vsub.f32 %v3820, %v4041
      %v4084 = vsub.f32 %v3821, %v4045
      %v4085 = vsub.f32 %v3822, %v4049
      %v4086 = vmul.f32 %v4068, %v4068
      %v4087 = vmul.f32 %v4069, %v4069
      %v4088 = vmul.f32 %v4070, %v4070
      %v4089 = vmul.f32 %v4071, %v4071
      %v4090 = vmul.f32 %v4072, %v4072
      %v4091 = vmul.f32 %v4073, %v4073
      %v4092 = vmul.f32 %v4074, %v4074
      %v4093 = vmul.f32 %v4075, %v4075
      %v4094 = vmul.f32 %v4076, %v4076
      %v4095 = vmul.f32 %v4077, %v4077
      %v4096 = vmul.f32 %v4078, %v4078
      %v4097 = vmul.f32 %v4079, %v4079
      %v4098 = vmul.f32 %v4080, %v4080
      %v4099 = vmul.f32 %v4081, %v4081
      %v4100 = vmul.f32 %v4082, %v4082
      %v4101 = vmul.f32 %v4083, %v4083
      %v4102 = vmul.f32 %v4084, %v4084
      %v4103 = vmul.f32 %v4085, %v4085
      %v4122 = vcombine.low %v4086, %v4087
      %v4123 = vcombine.low %v4088, %v4089
      %v4124 = vcombine.low %v4090, %v4091
      %v4125 = vcombine.low %v4092, %v4093
      %v4127 = vunpack.c.l.s4 1966171168
      %v4128 = vunpack.c.0.s8 %v4127
      %v4129 = vlaneseq
      %v4130 = vshrl.u32 %v4129, 7
      %v4131 = vsub.s32 %v4128, %v4130
      %v4132 = vrot.slane %v4122, %v4131
      %v4134 = vunpack.c.l.s4 1966171168
      %v4135 = vunpack.c.0.s8 %v4134
      %v4136 = vlaneseq
      %v4137 = vshrl.u32 %v4136, 7
      %v4138 = vsub.s32 %v4135, %v4137
      %v4139 = vrot.slane %v4123, %v4138
      %v4141 = vunpack.c.l.s4 1966171168
      %v4142 = vunpack.c.0.s8 %v4141
      %v4143 = vlaneseq
      %v4144 = vshrl.u32 %v4143, 7
      %v4145 = vsub.s32 %v4142, %v4144
      %v4146 = vrot.slane %v4124, %v4145
      %v4148 = vunpack.c.l.s4 1966171168
      %v4149 = vunpack.c.0.s8 %v4148
      %v4150 = vlaneseq
      %v4151 = vshrl.u32 %v4150, 7
      %v4152 = vsub.s32 %v4149, %v4151
      %v4153 = vrot.slane %v4125, %v4152
      %v4154 = vcombine.low %v4132, %v4139
      %v4155 = vcombine.low %v4146, %v4153
      %v4157 = vunpack.c.l.s4 1966171168
      %v4158 = vunpack.c.0.s8 %v4157
      %v4159 = vlaneseq
      %v4160 = vshrl.u32 %v4159, 7
      %v4161 = vsub.s32 %v4158, %v4160
      %v4162 = vrot.slane %v4154, %v4161
      %v4164 = vunpack.c.l.s4 1966171168
      %v4165 = vunpack.c.0.s8 %v4164
      %v4166 = vlaneseq
      %v4167 = vshrl.u32 %v4166, 7
      %v4168 = vsub.s32 %v4165, %v4167
      %v4169 = vrot.slane %v4155, %v4168
      %v4170 = vcombine.low %v4162, %v4169
      %v4171 = vcombine.low %v4094, %v4095
      %v4172 = vcombine.low %v4096, %v4097
      %v4173 = vcombine.low %v4098, %v4099
      %v4174 = vcombine.low %v4100, %v4101
      %v4176 = vunpack.c.l.s4 1966171168
      %v4177 = vunpack.c.0.s8 %v4176
      %v4178 = vlaneseq
      %v4179 = vshrl.u32 %v4178, 7
      %v4180 = vsub.s32 %v4177, %v4179
      %v4181 = vrot.slane %v4171, %v4180
      %v4183 = vunpack.c.l.s4 1966171168
      %v4184 = vunpack.c.0.s8 %v4183
      %v4185 = vlaneseq
      %v4186 = vshrl.u32 %v4185, 7
      %v4187 = vsub.s32 %v4184, %v4186
      %v4188 = vrot.slane %v4172, %v4187
      %v4190 = vunpack.c.l.s4 1966171168
      %v4191 = vunpack.c.0.s8 %v4190
      %v4192 = vlaneseq
      %v4193 = vshrl.u32 %v4192, 7
      %v4194 = vsub.s32 %v4191, %v4193
      %v4195 = vrot.slane %v4173, %v4194
      %v4197 = vunpack.c.l.s4 1966171168
      %v4198 = vunpack.c.0.s8 %v4197
      %v4199 = vlaneseq
      %v4200 = vshrl.u32 %v4199, 7
      %v4201 = vsub.s32 %v4198, %v4200
      %v4202 = vrot.slane %v4174, %v4201
      %v4203 = vcombine.low %v4181, %v4188
      %v4204 = vcombine.low %v4195, %v4202
      %v4206 = vunpack.c.l.s4 1966171168
      %v4207 = vunpack.c.0.s8 %v4206
      %v4208 = vlaneseq
      %v4209 = vshrl.u32 %v4208, 7
      %v4210 = vsub.s32 %v4207, %v4209
      %v4211 = vrot.slane %v4203, %v4210
      %v4213 = vunpack.c.l.s4 1966171168
      %v4214 = vunpack.c.0.s8 %v4213
      %v4215 = vlaneseq
      %v4216 = vshrl.u32 %v4215, 7
      %v4217 = vsub.s32 %v4214, %v4216
      %v4218 = vrot.slane %v4204, %v4217
      %v4219 = vcombine.low %v4211, %v4218
      %v4220 = vcombine.low %v4102, %v4103
      %v4222 = vunpack.c.l.s4 1966171168
      %v4223 = vunpack.c.0.s8 %v4222
      %v4224 = vlaneseq
      %v4225 = vshrl.u32 %v4224, 7
      %v4226 = vsub.s32 %v4223, %v4225
      %v4227 = vrot.slane %v4220, %v4226
      %v4229 = vunpack.c.l.s4 1966171168
      %v4230 = vunpack.c.0.s8 %v4229
      %v4231 = vlaneseq
      %v4232 = vshrl.u32 %v4231, 7
      %v4233 = vsub.s32 %v4230, %v4232
      %v4234 = vrot.slane %v4227, %v4233
      %v4238 = vsel %vm317, %v4170, 0.0
      %4239 = vadd.xlane.f32.xlu0 %v4238
      %v4240 = vpop.xlane.xlu0 %4239
      %v4241 = vsel %vm317, %v4219, 0.0
      %4242 = vadd.xlane.f32.xlu0 %v4241
      %v4243 = vpop.xlane.xlu0 %4242
      %v4244 = vsel %vm3967, %v4234, 0.0
      %4245 = vadd.xlane.f32.xlu0 %v4244
      %v4246 = vpop.xlane.xlu0 %4245
      %v4247 = vmul.f32 %v4240, %v3971
      %v4248 = vmul.f32 %v4243, %v3971
      %v4249 = vmul.f32 %v4246, %v3971
      %v4250 = vadd.f32 %v4247, 1e-05
      %v4251 = vadd.f32 %v4248, 1e-05
      %v4252 = vadd.f32 %v4249, 1e-05
      %v4253 = vrsqrt.pop %v4250
      %v4254 = vrsqrt.pop %v4251
      %v4255 = vrsqrt.pop %v4252
      %v4259 = vlaneseq
      %v4260 = vshrl.u32 %v4259, 7
      %v4261 = vsub.s32 0, %v4260
      %v4262 = vrot.slane %v4253, %v4261
      %v4263 = vlaneseq
      %v4264 = vshrl.u32 %v4263, 7
      %v4265 = vsub.s32 1, %v4264
      %v4266 = vrot.slane %v4253, %v4265
      %v4267 = vlaneseq
      %v4268 = vshrl.u32 %v4267, 7
      %v4269 = vsub.s32 2, %v4268
      %v4270 = vrot.slane %v4253, %v4269
      %v4271 = vlaneseq
      %v4272 = vshrl.u32 %v4271, 7
      %v4273 = vsub.s32 3, %v4272
      %v4274 = vrot.slane %v4253, %v4273
      %v4275 = vlaneseq
      %v4276 = vshrl.u32 %v4275, 7
      %v4277 = vsub.s32 4, %v4276
      %v4278 = vrot.slane %v4253, %v4277
      %v4279 = vlaneseq
      %v4280 = vshrl.u32 %v4279, 7
      %v4281 = vsub.s32 5, %v4280
      %v4282 = vrot.slane %v4253, %v4281
      %v4283 = vlaneseq
      %v4284 = vshrl.u32 %v4283, 7
      %v4285 = vsub.s32 6, %v4284
      %v4286 = vrot.slane %v4253, %v4285
      %v4287 = vlaneseq
      %v4288 = vshrl.u32 %v4287, 7
      %v4289 = vsub.s32 7, %v4288
      %v4290 = vrot.slane %v4253, %v4289
      %v4291 = vlaneseq
      %v4292 = vshrl.u32 %v4291, 7
      %v4293 = vsub.s32 0, %v4292
      %v4294 = vrot.slane %v4254, %v4293
      %v4295 = vlaneseq
      %v4296 = vshrl.u32 %v4295, 7
      %v4297 = vsub.s32 1, %v4296
      %v4298 = vrot.slane %v4254, %v4297
      %v4299 = vlaneseq
      %v4300 = vshrl.u32 %v4299, 7
      %v4301 = vsub.s32 2, %v4300
      %v4302 = vrot.slane %v4254, %v4301
      %v4303 = vlaneseq
      %v4304 = vshrl.u32 %v4303, 7
      %v4305 = vsub.s32 3, %v4304
      %v4306 = vrot.slane %v4254, %v4305
      %v4307 = vlaneseq
      %v4308 = vshrl.u32 %v4307, 7
      %v4309 = vsub.s32 4, %v4308
      %v4310 = vrot.slane %v4254, %v4309
      %v4311 = vlaneseq
      %v4312 = vshrl.u32 %v4311, 7
      %v4313 = vsub.s32 5, %v4312
      %v4314 = vrot.slane %v4254, %v4313
      %v4315 = vlaneseq
      %v4316 = vshrl.u32 %v4315, 7
      %v4317 = vsub.s32 6, %v4316
      %v4318 = vrot.slane %v4254, %v4317
      %v4319 = vlaneseq
      %v4320 = vshrl.u32 %v4319, 7
      %v4321 = vsub.s32 7, %v4320
      %v4322 = vrot.slane %v4254, %v4321
      %v4323 = vlaneseq
      %v4324 = vshrl.u32 %v4323, 7
      %v4325 = vsub.s32 0, %v4324
      %v4326 = vrot.slane %v4255, %v4325
      %v4327 = vlaneseq
      %v4328 = vshrl.u32 %v4327, 7
      %v4329 = vsub.s32 1, %v4328
      %v4330 = vrot.slane %v4255, %v4329
      %v4349 = vmul.f32 %v4068, %v4262
      %v4350 = vmul.f32 %v4069, %v4266
      %v4351 = vmul.f32 %v4070, %v4270
      %v4352 = vmul.f32 %v4071, %v4274
      %v4353 = vmul.f32 %v4072, %v4278
      %v4354 = vmul.f32 %v4073, %v4282
      %v4355 = vmul.f32 %v4074, %v4286
      %v4356 = vmul.f32 %v4075, %v4290
      %v4357 = vmul.f32 %v4076, %v4294
      %v4358 = vmul.f32 %v4077, %v4298
      %v4359 = vmul.f32 %v4078, %v4302
      %v4360 = vmul.f32 %v4079, %v4306
      %v4361 = vmul.f32 %v4080, %v4310
      %v4362 = vmul.f32 %v4081, %v4314
      %v4363 = vmul.f32 %v4082, %v4318
      %v4364 = vmul.f32 %v4083, %v4322
      %v4365 = vmul.f32 %v4084, %v4326
      %v4366 = vmul.f32 %v4085, %v4330
      %v4368 = vlaneseq
      %v4369 = vshrl.u32 %v4368, 7
      %v4370 = vsub.s32 0, %v4369
      %v4371 = vrot.slane %v3824, %v4370
      %v4372 = vcombine.high %v4371, %v4371
      %v4374 = vunpack.c.l.s4 1966171168
      %v4375 = vunpack.c.0.s8 %v4374
      %v4376 = vlaneseq
      %v4377 = vshrl.u32 %v4376, 7
      %v4378 = vsub.s32 %v4375, %v4377
      %v4379 = vrot.slane %v4371, %v4378
      %v4381 = vunpack.c.l.s4 1966171168
      %v4382 = vunpack.c.0.s8 %v4381
      %v4383 = vlaneseq
      %v4384 = vshrl.u32 %v4383, 7
      %v4385 = vsub.s32 %v4382, %v4384
      %v4386 = vrot.slane %v4372, %v4385
      %v4387 = vcombine.high %v4379, %v4379
      %v4388 = vcombine.high %v4386, %v4386
      %v4390 = vunpack.c.l.s4 1966171168
      %v4391 = vunpack.c.0.s8 %v4390
      %v4392 = vlaneseq
      %v4393 = vshrl.u32 %v4392, 7
      %v4394 = vsub.s32 %v4391, %v4393
      %v4395 = vrot.slane %v4379, %v4394
      %v4397 = vunpack.c.l.s4 1966171168
      %v4398 = vunpack.c.0.s8 %v4397
      %v4399 = vlaneseq
      %v4400 = vshrl.u32 %v4399, 7
      %v4401 = vsub.s32 %v4398, %v4400
      %v4402 = vrot.slane %v4386, %v4401
      %v4404 = vunpack.c.l.s4 1966171168
      %v4405 = vunpack.c.0.s8 %v4404
      %v4406 = vlaneseq
      %v4407 = vshrl.u32 %v4406, 7
      %v4408 = vsub.s32 %v4405, %v4407
      %v4409 = vrot.slane %v4387, %v4408
      %v4411 = vunpack.c.l.s4 1966171168
      %v4412 = vunpack.c.0.s8 %v4411
      %v4413 = vlaneseq
      %v4414 = vshrl.u32 %v4413, 7
      %v4415 = vsub.s32 %v4412, %v4414
      %v4416 = vrot.slane %v4388, %v4415
      %v4417 = vcombine.high %v4395, %v4395
      %v4418 = vcombine.high %v4402, %v4402
      %v4419 = vcombine.high %v4409, %v4409
      %v4420 = vcombine.high %v4416, %v4416
      %v4429 = vmul.f32 %v4349, %v4395
      %v4430 = vmul.f32 %v4350, %v4409
      %v4431 = vmul.f32 %v4351, %v4417
      %v4432 = vmul.f32 %v4352, %v4419
      %v4433 = vmul.f32 %v4353, %v4402
      %v4434 = vmul.f32 %v4354, %v4416
      %v4435 = vmul.f32 %v4355, %v4418
      %v4436 = vmul.f32 %v4356, %v4420
      %v4437 = vmul.f32 %v4357, %v4395
      %v4438 = vmul.f32 %v4358, %v4409
      %v4439 = vmul.f32 %v4359, %v4417
      %v4440 = vmul.f32 %v4360, %v4419
      %v4441 = vmul.f32 %v4361, %v4402
      %v4442 = vmul.f32 %v4362, %v4416
      %v4443 = vmul.f32 %v4363, %v4418
      %v4444 = vmul.f32 %v4364, %v4420
      %v4445 = vmul.f32 %v4365, %v4395
      %v4446 = vmul.f32 %v4366, %v4409
      %v4448 = vlaneseq
      %v4449 = vshrl.u32 %v4448, 7
      %v4450 = vsub.s32 0, %v4449
      %v4451 = vrot.slane %v3826, %v4450
      %v4452 = vcombine.high %v4451, %v4451
      %v4454 = vunpack.c.l.s4 1966171168
      %v4455 = vunpack.c.0.s8 %v4454
      %v4456 = vlaneseq
      %v4457 = vshrl.u32 %v4456, 7
      %v4458 = vsub.s32 %v4455, %v4457
      %v4459 = vrot.slane %v4451, %v4458
      %v4461 = vunpack.c.l.s4 1966171168
      %v4462 = vunpack.c.0.s8 %v4461
      %v4463 = vlaneseq
      %v4464 = vshrl.u32 %v4463, 7
      %v4465 = vsub.s32 %v4462, %v4464
      %v4466 = vrot.slane %v4452, %v4465
      %v4467 = vcombine.high %v4459, %v4459
      %v4468 = vcombine.high %v4466, %v4466
      %v4470 = vunpack.c.l.s4 1966171168
      %v4471 = vunpack.c.0.s8 %v4470
      %v4472 = vlaneseq
      %v4473 = vshrl.u32 %v4472, 7
      %v4474 = vsub.s32 %v4471, %v4473
      %v4475 = vrot.slane %v4459, %v4474
      %v4477 = vunpack.c.l.s4 1966171168
      %v4478 = vunpack.c.0.s8 %v4477
      %v4479 = vlaneseq
      %v4480 = vshrl.u32 %v4479, 7
      %v4481 = vsub.s32 %v4478, %v4480
      %v4482 = vrot.slane %v4466, %v4481
      %v4484 = vunpack.c.l.s4 1966171168
      %v4485 = vunpack.c.0.s8 %v4484
      %v4486 = vlaneseq
      %v4487 = vshrl.u32 %v4486, 7
      %v4488 = vsub.s32 %v4485, %v4487
      %v4489 = vrot.slane %v4467, %v4488
      %v4491 = vunpack.c.l.s4 1966171168
      %v4492 = vunpack.c.0.s8 %v4491
      %v4493 = vlaneseq
      %v4494 = vshrl.u32 %v4493, 7
      %v4495 = vsub.s32 %v4492, %v4494
      %v4496 = vrot.slane %v4468, %v4495
      %v4497 = vcombine.high %v4475, %v4475
      %v4498 = vcombine.high %v4482, %v4482
      %v4499 = vcombine.high %v4489, %v4489
      %v4500 = vcombine.high %v4496, %v4496
      %v4509 = vadd.f32 %v4429, %v4475
      %v4510 = vadd.f32 %v4430, %v4489
      %v4511 = vadd.f32 %v4431, %v4497
      %v4512 = vadd.f32 %v4432, %v4499
      %v4513 = vadd.f32 %v4433, %v4482
      %v4514 = vadd.f32 %v4434, %v4496
      %v4515 = vadd.f32 %v4435, %v4498
      %v4516 = vadd.f32 %v4436, %v4500
      %v4517 = vadd.f32 %v4437, %v4475
      %v4518 = vadd.f32 %v4438, %v4489
      %v4519 = vadd.f32 %v4439, %v4497
      %v4520 = vadd.f32 %v4440, %v4499
      %v4521 = vadd.f32 %v4441, %v4482
      %v4522 = vadd.f32 %v4442, %v4496
      %v4523 = vadd.f32 %v4443, %v4498
      %v4524 = vadd.f32 %v4444, %v4500
      %v4525 = vadd.f32 %v4445, %v4475
      %v4526 = vadd.f32 %v4446, %v4489
      %s4527 = smul.addr %s863, 4
      %s4528 = scalar_lea.vmem %s51, %s4527
      %v4529 = vld [vmem:[%s4528] sm:$0xf]
      %v4530 = vld [vmem:[%s4528 + $0x4] sm:$0xf]
      %v4531 = vld [vmem:[%s4528 + $0x8] sm:$0xf]
      %v4532 = vld [vmem:[%s4528 + $0xc] sm:$0xf]
      %v4551 = vcombine.low %v4509, %v4510
      %v4552 = vcombine.low %v4511, %v4512
      %v4553 = vcombine.low %v4513, %v4514
      %v4554 = vcombine.low %v4515, %v4516
      %v4556 = vunpack.c.l.s4 1966171168
      %v4557 = vunpack.c.0.s8 %v4556
      %v4558 = vlaneseq
      %v4559 = vshrl.u32 %v4558, 7
      %v4560 = vsub.s32 %v4557, %v4559
      %v4561 = vrot.slane %v4551, %v4560
      %v4563 = vunpack.c.l.s4 1966171168
      %v4564 = vunpack.c.0.s8 %v4563
      %v4565 = vlaneseq
      %v4566 = vshrl.u32 %v4565, 7
      %v4567 = vsub.s32 %v4564, %v4566
      %v4568 = vrot.slane %v4552, %v4567
      %v4570 = vunpack.c.l.s4 1966171168
      %v4571 = vunpack.c.0.s8 %v4570
      %v4572 = vlaneseq
      %v4573 = vshrl.u32 %v4572, 7
      %v4574 = vsub.s32 %v4571, %v4573
      %v4575 = vrot.slane %v4553, %v4574
      %v4577 = vunpack.c.l.s4 1966171168
      %v4578 = vunpack.c.0.s8 %v4577
      %v4579 = vlaneseq
      %v4580 = vshrl.u32 %v4579, 7
      %v4581 = vsub.s32 %v4578, %v4580
      %v4582 = vrot.slane %v4554, %v4581
      %v4583 = vcombine.low %v4561, %v4568
      %v4584 = vcombine.low %v4575, %v4582
      %v4586 = vunpack.c.l.s4 1966171168
      %v4587 = vunpack.c.0.s8 %v4586
      %v4588 = vlaneseq
      %v4589 = vshrl.u32 %v4588, 7
      %v4590 = vsub.s32 %v4587, %v4589
      %v4591 = vrot.slane %v4583, %v4590
      %v4593 = vunpack.c.l.s4 1966171168
      %v4594 = vunpack.c.0.s8 %v4593
      %v4595 = vlaneseq
      %v4596 = vshrl.u32 %v4595, 7
      %v4597 = vsub.s32 %v4594, %v4596
      %v4598 = vrot.slane %v4584, %v4597
      %v4599 = vcombine.low %v4591, %v4598
      %v4600 = vcombine.low %v4517, %v4518
      %v4601 = vcombine.low %v4519, %v4520
      %v4602 = vcombine.low %v4521, %v4522
      %v4603 = vcombine.low %v4523, %v4524
      %v4605 = vunpack.c.l.s4 1966171168
      %v4606 = vunpack.c.0.s8 %v4605
      %v4607 = vlaneseq
      %v4608 = vshrl.u32 %v4607, 7
      %v4609 = vsub.s32 %v4606, %v4608
      %v4610 = vrot.slane %v4600, %v4609
      %v4612 = vunpack.c.l.s4 1966171168
      %v4613 = vunpack.c.0.s8 %v4612
      %v4614 = vlaneseq
      %v4615 = vshrl.u32 %v4614, 7
      %v4616 = vsub.s32 %v4613, %v4615
      %v4617 = vrot.slane %v4601, %v4616
      %v4619 = vunpack.c.l.s4 1966171168
      %v4620 = vunpack.c.0.s8 %v4619
      %v4621 = vlaneseq
      %v4622 = vshrl.u32 %v4621, 7
      %v4623 = vsub.s32 %v4620, %v4622
      %v4624 = vrot.slane %v4602, %v4623
      %v4626 = vunpack.c.l.s4 1966171168
      %v4627 = vunpack.c.0.s8 %v4626
      %v4628 = vlaneseq
      %v4629 = vshrl.u32 %v4628, 7
      %v4630 = vsub.s32 %v4627, %v4629
      %v4631 = vrot.slane %v4603, %v4630
      %v4632 = vcombine.low %v4610, %v4617
      %v4633 = vcombine.low %v4624, %v4631
      %v4635 = vunpack.c.l.s4 1966171168
      %v4636 = vunpack.c.0.s8 %v4635
      %v4637 = vlaneseq
      %v4638 = vshrl.u32 %v4637, 7
      %v4639 = vsub.s32 %v4636, %v4638
      %v4640 = vrot.slane %v4632, %v4639
      %v4642 = vunpack.c.l.s4 1966171168
      %v4643 = vunpack.c.0.s8 %v4642
      %v4644 = vlaneseq
      %v4645 = vshrl.u32 %v4644, 7
      %v4646 = vsub.s32 %v4643, %v4645
      %v4647 = vrot.slane %v4633, %v4646
      %v4648 = vcombine.low %v4640, %v4647
      %v4649 = vcombine.low %v4525, %v4526
      %v4651 = vunpack.c.l.s4 1966171168
      %v4652 = vunpack.c.0.s8 %v4651
      %v4653 = vlaneseq
      %v4654 = vshrl.u32 %v4653, 7
      %v4655 = vsub.s32 %v4652, %v4654
      %v4656 = vrot.slane %v4649, %v4655
      %v4658 = vunpack.c.l.s4 1966171168
      %v4659 = vunpack.c.0.s8 %v4658
      %v4660 = vlaneseq
      %v4661 = vshrl.u32 %v4660, 7
      %v4662 = vsub.s32 %v4659, %v4661
      %v4663 = vrot.slane %v4656, %v4662
      %v4667 = vpack.c.bf16 %v4648, %v4599
      %v4668 = vpack.c.bf16 %v4663, %v4663
      %s4669 = scalar_lea.vmem [#allocation11], %s704
      %v4670 = vld [vmem:[%s4669] sm:$0x1]
      %v4672 = vlaneseq
      %v4673 = vshrl.u32 %v4672, 7
      %v4674 = vsub.s32 0, %v4673
      %v4675 = vrot.slane %v4670, %v4674
      %v4681 = vunpack.c.l.b16 %v4529
      %v4682 = vunpack.c.l.b16 %v4530
      %v4683 = vunpack.c.l.b16 %v4531
      %v4684 = vunpack.c.l.b16 %v4532
      %v4685 = vpack.c.b16 %v4682, %v4681
      %v4686 = vpack.c.b16 %v4684, %v4683
      %v4690 = vsel %vm317, %v4667, 0
      %v4693 = vsel %vm317, %v4668, 0
      %4695 = vmatprep.subr.bf16.mxu0 0
      %4696 = vmatpush1.bf16.msra.mxu0 %v4685
      %4697 = vmatprep.subr.bf16.mxu0 0
      %4698 = vmatpush1.bf16.msra.mxu0 %v4686
      %4699 = vmatprep.subr.bf16.mxu0 0
      %4700 = vmatpush1.bf16.msra.mxu0 0
      %4701 = vmatprep.subr.bf16.mxu0 0
      %4702 = vmatpush1.bf16.msra.mxu0 0
      %4703 = vmatprep.subr.bf16.mxu0 0
      %4704 = vmatpush1.bf16.msra.mxu0 0
      %4705 = vmatprep.subr.bf16.mxu0 0
      %4706 = vmatpush1.bf16.msra.mxu0 0
      %4707 = vmatprep.subr.bf16.mxu0 0
      %4708 = vmatpush1.bf16.msra.mxu0 0
      %4709 = vmatprep.subr.bf16.mxu0 0
      %4710 = vmatpush1.bf16.msra.mxu0 0
      %4711 = vmatprep.subr.bf16.mxu0 0
      %4712 = vmatpush1.bf16.msra.mxu0 0
      %4713 = vmatprep.subr.bf16.mxu0 0
      %4714 = vmatpush1.bf16.msra.mxu0 0
      %4715 = vmatprep.subr.bf16.mxu0 0
      %4716 = vmatpush1.bf16.msra.mxu0 0
      %4717 = vmatprep.subr.bf16.mxu0 0
      %4718 = vmatpush1.bf16.msra.mxu0 0
      %4719 = vmatprep.subr.bf16.mxu0 0
      %4720 = vmatpush1.bf16.msra.mxu0 0
      %4721 = vmatprep.subr.bf16.mxu0 0
      %4722 = vmatpush1.bf16.msra.mxu0 0
      %4723 = vmatprep.subr.bf16.mxu0 0
      %4724 = vmatpush1.bf16.msra.mxu0 0
      %4725 = vmatprep.subr.bf16.mxu0 0
      %4726 = vmatpush1.bf16.msra.mxu0 0
      %4727 = vmatprep.mubr.bf16.mxu0 0
      %4728 = vmatmul.mubr.bf16.gmra.mrb[0].mxu0 %v4690
      %v4729 = vpop.f32.mrb[0].mxu0
      %v4730 = vadd.f32 %v4675, %v4729
      %v4731 = vpop.f32.mrb[0].mxu0
      %v4732 = vpop.f32.mrb[0].mxu0
      %v4733 = vadd.f32 %v4675, %v4732
      %v4734 = vpop.f32.mrb[0].mxu0
      %4735 = vmatprep.mubr.bf16.mxu0 0
      %4736 = vmatmul.mubr.bf16.gmra.mrb[0].mxu0 %v4693
      %v4737 = vpop.f32.mrb[0].mxu0
      %v4738 = vadd.f32 %v4675, %v4737
      %v4739 = vpop.f32.mrb[0].mxu0
      %v4740 = vpop.f32.mrb[0].mxu0
      %v4741 = vpop.f32.mrb[0].mxu0
      %4742 = vdwg.mxu0
      %v4743 = vmul.f32 %v4730, 0.5
      %v4744 = vmul.f32 %v4733, 0.5
      %v4745 = vmul.f32 %v4738, 0.5
      %v4746 = vmul.f32 %v4730, 0.044715
      %v4747 = vmul.f32 %v4733, 0.044715
      %v4748 = vmul.f32 %v4738, 0.044715
      %v4749 = vmul.f32 %v4746, %v4730
      %v4750 = vmul.f32 %v4747, %v4733
      %v4751 = vmul.f32 %v4748, %v4738
      %v4752 = vmul.f32 %v4749, %v4730
      %v4753 = vmul.f32 %v4750, %v4733
      %v4754 = vmul.f32 %v4751, %v4738
      %v4755 = vadd.f32 %v4730, %v4752
      %v4756 = vadd.f32 %v4733, %v4753
      %v4757 = vadd.f32 %v4738, %v4754
      %v4758 = vmul.f32 %v4755, 0.7978846
      %v4759 = vmul.f32 %v4756, 0.7978846
      %v4760 = vmul.f32 %v4757, 0.7978846
      %v4761 = vtanh.pop %v4758
      %v4762 = vtanh.pop %v4759
      %v4763 = vtanh.pop %v4760
      %v4764 = vadd.f32 %v4761, 1.0
      %v4765 = vadd.f32 %v4762, 1.0
      %v4766 = vadd.f32 %v4763, 1.0
      %v4767 = vmul.f32 %v4743, %v4764
      %v4768 = vmul.f32 %v4744, %v4765
      %v4769 = vmul.f32 %v4745, %v4766
      %s4770 = smul.u32 %s704, 8
      %s4771 = smul.addr %s4770, 4
      %s4772 = scalar_lea.vmem %s55, %s4771
      %v4773 = vld [vmem:[%s4772] sm:$0xf]
      %v4774 = vld [vmem:[%s4772 + $0x4] sm:$0xf]
      %v4775 = vld [vmem:[%s4772 + $0x8] sm:$0xf]
      %v4776 = vld [vmem:[%s4772 + $0xc] sm:$0xf]
      %v4777 = vld [vmem:[%s4772 + $0x10] sm:$0xf]
      %v4778 = vld [vmem:[%s4772 + $0x14] sm:$0xf]
      %v4779 = vld [vmem:[%s4772 + $0x18] sm:$0xf]
      %v4780 = vld [vmem:[%s4772 + $0x1c] sm:$0xf]
      %v4781 = vpack.c.bf16 %v4768, %v4767
      %v4782 = vpack.c.bf16 %v4769, %v4769
      %s4783 = scalar_lea.vmem [#allocation13], %s704
      %v4784 = vld [vmem:[%s4783] sm:$0x1]
      %v4786 = vlaneseq
      %v4787 = vshrl.u32 %v4786, 7
      %v4788 = vsub.s32 0, %v4787
      %v4789 = vrot.slane %v4784, %v4788
      %v4799 = vunpack.c.l.b16 %v4773
      %v4800 = vunpack.c.l.b16 %v4774
      %v4801 = vunpack.c.l.b16 %v4775
      %v4802 = vunpack.c.l.b16 %v4776
      %v4803 = vunpack.c.l.b16 %v4777
      %v4804 = vunpack.c.l.b16 %v4778
      %v4805 = vunpack.c.l.b16 %v4779
      %v4806 = vunpack.c.l.b16 %v4780
      %v4807 = vpack.c.b16 %v4800, %v4799
      %v4808 = vpack.c.b16 %v4802, %v4801
      %v4809 = vpack.c.b16 %v4804, %v4803
      %v4810 = vpack.c.b16 %v4806, %v4805
      %vm4815 = vcmask 523264
      %v4817 = vsel %vm4815, %v4781, 0
      %v4820 = vsel %vm4815, %v4782, 0
      %4822 = vmatprep.subr.bf16.mxu0 0
      %4823 = vmatpush1.bf16.msra.mxu0 %v4807
      %4824 = vmatprep.subr.bf16.mxu0 0
      %4825 = vmatpush1.bf16.msra.mxu0 %v4808
      %4826 = vmatprep.subr.bf16.mxu0 0
      %4827 = vmatpush1.bf16.msra.mxu0 %v4809
      %4828 = vmatprep.subr.bf16.mxu0 0
      %4829 = vmatpush1.bf16.msra.mxu0 %v4810
      %4830 = vmatprep.subr.bf16.mxu0 0
      %4831 = vmatpush1.bf16.msra.mxu0 0
      %4832 = vmatprep.subr.bf16.mxu0 0
      %4833 = vmatpush1.bf16.msra.mxu0 0
      %4834 = vmatprep.subr.bf16.mxu0 0
      %4835 = vmatpush1.bf16.msra.mxu0 0
      %4836 = vmatprep.subr.bf16.mxu0 0
      %4837 = vmatpush1.bf16.msra.mxu0 0
      %4838 = vmatprep.subr.bf16.mxu0 0
      %4839 = vmatpush1.bf16.msra.mxu0 0
      %4840 = vmatprep.subr.bf16.mxu0 0
      %4841 = vmatpush1.bf16.msra.mxu0 0
      %4842 = vmatprep.subr.bf16.mxu0 0
      %4843 = vmatpush1.bf16.msra.mxu0 0
      %4844 = vmatprep.subr.bf16.mxu0 0
      %4845 = vmatpush1.bf16.msra.mxu0 0
      %4846 = vmatprep.subr.bf16.mxu0 0
      %4847 = vmatpush1.bf16.msra.mxu0 0
      %4848 = vmatprep.subr.bf16.mxu0 0
      %4849 = vmatpush1.bf16.msra.mxu0 0
      %4850 = vmatprep.subr.bf16.mxu0 0
      %4851 = vmatpush1.bf16.msra.mxu0 0
      %4852 = vmatprep.subr.bf16.mxu0 0
      %4853 = vmatpush1.bf16.msra.mxu0 0
      %4854 = vmatprep.mubr.bf16.mxu0 0
      %4855 = vmatmul.mubr.bf16.gmra.mrb[0].mxu0 %v4817
      %v4856 = vpop.f32.mrb[0].mxu0
      %v4857 = vadd.f32 %v4789, %v4856
      %v4858 = vpop.f32.mrb[0].mxu0
      %v4859 = vpop.f32.mrb[0].mxu0
      %v4860 = vadd.f32 %v4789, %v4859
      %v4861 = vpop.f32.mrb[0].mxu0
      %4862 = vmatprep.mubr.bf16.mxu0 0
      %4863 = vmatmul.mubr.bf16.gmra.mrb[0].mxu0 %v4820
      %v4864 = vpop.f32.mrb[0].mxu0
      %v4865 = vadd.f32 %v4789, %v4864
      %v4866 = vpop.f32.mrb[0].mxu0
      %v4867 = vpop.f32.mrb[0].mxu0
      %v4868 = vpop.f32.mrb[0].mxu0
      %4869 = vdwg.mxu0
      %v4873 = vcombine.high %v4857, %v4857
      %v4875 = vunpack.c.l.s4 1966171168
      %v4876 = vunpack.c.0.s8 %v4875
      %v4877 = vlaneseq
      %v4878 = vshrl.u32 %v4877, 7
      %v4879 = vsub.s32 %v4876, %v4878
      %v4880 = vrot.slane %v4857, %v4879
      %v4882 = vunpack.c.l.s4 1966171168
      %v4883 = vunpack.c.0.s8 %v4882
      %v4884 = vlaneseq
      %v4885 = vshrl.u32 %v4884, 7
      %v4886 = vsub.s32 %v4883, %v4885
      %v4887 = vrot.slane %v4873, %v4886
      %v4888 = vcombine.high %v4880, %v4880
      %v4889 = vcombine.high %v4887, %v4887
      %v4891 = vunpack.c.l.s4 1966171168
      %v4892 = vunpack.c.0.s8 %v4891
      %v4893 = vlaneseq
      %v4894 = vshrl.u32 %v4893, 7
      %v4895 = vsub.s32 %v4892, %v4894
      %v4896 = vrot.slane %v4880, %v4895
      %v4898 = vunpack.c.l.s4 1966171168
      %v4899 = vunpack.c.0.s8 %v4898
      %v4900 = vlaneseq
      %v4901 = vshrl.u32 %v4900, 7
      %v4902 = vsub.s32 %v4899, %v4901
      %v4903 = vrot.slane %v4887, %v4902
      %v4905 = vunpack.c.l.s4 1966171168
      %v4906 = vunpack.c.0.s8 %v4905
      %v4907 = vlaneseq
      %v4908 = vshrl.u32 %v4907, 7
      %v4909 = vsub.s32 %v4906, %v4908
      %v4910 = vrot.slane %v4888, %v4909
      %v4912 = vunpack.c.l.s4 1966171168
      %v4913 = vunpack.c.0.s8 %v4912
      %v4914 = vlaneseq
      %v4915 = vshrl.u32 %v4914, 7
      %v4916 = vsub.s32 %v4913, %v4915
      %v4917 = vrot.slane %v4889, %v4916
      %v4918 = vcombine.high %v4896, %v4896
      %v4919 = vcombine.high %v4903, %v4903
      %v4920 = vcombine.high %v4910, %v4910
      %v4921 = vcombine.high %v4917, %v4917
      %v4922 = vcombine.high %v4860, %v4860
      %v4924 = vunpack.c.l.s4 1966171168
      %v4925 = vunpack.c.0.s8 %v4924
      %v4926 = vlaneseq
      %v4927 = vshrl.u32 %v4926, 7
      %v4928 = vsub.s32 %v4925, %v4927
      %v4929 = vrot.slane %v4860, %v4928
      %v4931 = vunpack.c.l.s4 1966171168
      %v4932 = vunpack.c.0.s8 %v4931
      %v4933 = vlaneseq
      %v4934 = vshrl.u32 %v4933, 7
      %v4935 = vsub.s32 %v4932, %v4934
      %v4936 = vrot.slane %v4922, %v4935
      %v4937 = vcombine.high %v4929, %v4929
      %v4938 = vcombine.high %v4936, %v4936
      %v4940 = vunpack.c.l.s4 1966171168
      %v4941 = vunpack.c.0.s8 %v4940
      %v4942 = vlaneseq
      %v4943 = vshrl.u32 %v4942, 7
      %v4944 = vsub.s32 %v4941, %v4943
      %v4945 = vrot.slane %v4929, %v4944
      %v4947 = vunpack.c.l.s4 1966171168
      %v4948 = vunpack.c.0.s8 %v4947
      %v4949 = vlaneseq
      %v4950 = vshrl.u32 %v4949, 7
      %v4951 = vsub.s32 %v4948, %v4950
      %v4952 = vrot.slane %v4936, %v4951
      %v4954 = vunpack.c.l.s4 1966171168
      %v4955 = vunpack.c.0.s8 %v4954
      %v4956 = vlaneseq
      %v4957 = vshrl.u32 %v4956, 7
      %v4958 = vsub.s32 %v4955, %v4957
      %v4959 = vrot.slane %v4937, %v4958
      %v4961 = vunpack.c.l.s4 1966171168
      %v4962 = vunpack.c.0.s8 %v4961
      %v4963 = vlaneseq
      %v4964 = vshrl.u32 %v4963, 7
      %v4965 = vsub.s32 %v4962, %v4964
      %v4966 = vrot.slane %v4938, %v4965
      %v4967 = vcombine.high %v4945, %v4945
      %v4968 = vcombine.high %v4952, %v4952
      %v4969 = vcombine.high %v4959, %v4959
      %v4970 = vcombine.high %v4966, %v4966
      %v4972 = vunpack.c.l.s4 1966171168
      %v4973 = vunpack.c.0.s8 %v4972
      %v4974 = vlaneseq
      %v4975 = vshrl.u32 %v4974, 7
      %v4976 = vsub.s32 %v4973, %v4975
      %v4977 = vrot.slane %v4865, %v4976
      %v4978 = vcombine.high %v4977, %v4977
      %v4980 = vunpack.c.l.s4 1966171168
      %v4981 = vunpack.c.0.s8 %v4980
      %v4982 = vlaneseq
      %v4983 = vshrl.u32 %v4982, 7
      %v4984 = vsub.s32 %v4981, %v4983
      %v4985 = vrot.slane %v4977, %v4984
      %v4987 = vunpack.c.l.s4 1966171168
      %v4988 = vunpack.c.0.s8 %v4987
      %v4989 = vlaneseq
      %v4990 = vshrl.u32 %v4989, 7
      %v4991 = vsub.s32 %v4988, %v4990
      %v4992 = vrot.slane %v4978, %v4991
      %v5011 = vadd.f32 %v4509, %v4896
      %v5012 = vadd.f32 %v4510, %v4910
      %v5013 = vadd.f32 %v4511, %v4918
      %v5014 = vadd.f32 %v4512, %v4920
      %v5015 = vadd.f32 %v4513, %v4903
      %v5016 = vadd.f32 %v4514, %v4917
      %v5017 = vadd.f32 %v4515, %v4919
      %v5018 = vadd.f32 %v4516, %v4921
      %v5019 = vadd.f32 %v4517, %v4945
      %v5020 = vadd.f32 %v4518, %v4959
      %v5021 = vadd.f32 %v4519, %v4967
      %v5022 = vadd.f32 %v4520, %v4969
      %v5023 = vadd.f32 %v4521, %v4952
      %v5024 = vadd.f32 %v4522, %v4966
      %v5025 = vadd.f32 %v4523, %v4968
      %v5026 = vadd.f32 %v4524, %v4970
      %v5027 = vadd.f32 %v4525, %v4985
      %v5028 = vadd.f32 %v4526, %v4992
      %s5029 = scalar_lea.vmem %s59, %s704
      %v5030 = vld [vmem:[%s5029] sm:$0x1]
      %s5031 = scalar_lea.vmem %s61, %s704
      %v5032 = vld [vmem:[%s5031] sm:$0x1]
      %v5051 = vcombine.low %v5011, %v5012
      %v5052 = vcombine.low %v5013, %v5014
      %v5053 = vcombine.low %v5015, %v5016
      %v5054 = vcombine.low %v5017, %v5018
      %v5056 = vunpack.c.l.s4 1966171168
      %v5057 = vunpack.c.0.s8 %v5056
      %v5058 = vlaneseq
      %v5059 = vshrl.u32 %v5058, 7
      %v5060 = vsub.s32 %v5057, %v5059
      %v5061 = vrot.slane %v5051, %v5060
      %v5063 = vunpack.c.l.s4 1966171168
      %v5064 = vunpack.c.0.s8 %v5063
      %v5065 = vlaneseq
      %v5066 = vshrl.u32 %v5065, 7
      %v5067 = vsub.s32 %v5064, %v5066
      %v5068 = vrot.slane %v5052, %v5067
      %v5070 = vunpack.c.l.s4 1966171168
      %v5071 = vunpack.c.0.s8 %v5070
      %v5072 = vlaneseq
      %v5073 = vshrl.u32 %v5072, 7
      %v5074 = vsub.s32 %v5071, %v5073
      %v5075 = vrot.slane %v5053, %v5074
      %v5077 = vunpack.c.l.s4 1966171168
      %v5078 = vunpack.c.0.s8 %v5077
      %v5079 = vlaneseq
      %v5080 = vshrl.u32 %v5079, 7
      %v5081 = vsub.s32 %v5078, %v5080
      %v5082 = vrot.slane %v5054, %v5081
      %v5083 = vcombine.low %v5061, %v5068
      %v5084 = vcombine.low %v5075, %v5082
      %v5086 = vunpack.c.l.s4 1966171168
      %v5087 = vunpack.c.0.s8 %v5086
      %v5088 = vlaneseq
      %v5089 = vshrl.u32 %v5088, 7
      %v5090 = vsub.s32 %v5087, %v5089
      %v5091 = vrot.slane %v5083, %v5090
      %v5093 = vunpack.c.l.s4 1966171168
      %v5094 = vunpack.c.0.s8 %v5093
      %v5095 = vlaneseq
      %v5096 = vshrl.u32 %v5095, 7
      %v5097 = vsub.s32 %v5094, %v5096
      %v5098 = vrot.slane %v5084, %v5097
      %v5099 = vcombine.low %v5091, %v5098
      %v5100 = vcombine.low %v5019, %v5020
      %v5101 = vcombine.low %v5021, %v5022
      %v5102 = vcombine.low %v5023, %v5024
      %v5103 = vcombine.low %v5025, %v5026
      %v5105 = vunpack.c.l.s4 1966171168
      %v5106 = vunpack.c.0.s8 %v5105
      %v5107 = vlaneseq
      %v5108 = vshrl.u32 %v5107, 7
      %v5109 = vsub.s32 %v5106, %v5108
      %v5110 = vrot.slane %v5100, %v5109
      %v5112 = vunpack.c.l.s4 1966171168
      %v5113 = vunpack.c.0.s8 %v5112
      %v5114 = vlaneseq
      %v5115 = vshrl.u32 %v5114, 7
      %v5116 = vsub.s32 %v5113, %v5115
      %v5117 = vrot.slane %v5101, %v5116
      %v5119 = vunpack.c.l.s4 1966171168
      %v5120 = vunpack.c.0.s8 %v5119
      %v5121 = vlaneseq
      %v5122 = vshrl.u32 %v5121, 7
      %v5123 = vsub.s32 %v5120, %v5122
      %v5124 = vrot.slane %v5102, %v5123
      %v5126 = vunpack.c.l.s4 1966171168
      %v5127 = vunpack.c.0.s8 %v5126
      %v5128 = vlaneseq
      %v5129 = vshrl.u32 %v5128, 7
      %v5130 = vsub.s32 %v5127, %v5129
      %v5131 = vrot.slane %v5103, %v5130
      %v5132 = vcombine.low %v5110, %v5117
      %v5133 = vcombine.low %v5124, %v5131
      %v5135 = vunpack.c.l.s4 1966171168
      %v5136 = vunpack.c.0.s8 %v5135
      %v5137 = vlaneseq
      %v5138 = vshrl.u32 %v5137, 7
      %v5139 = vsub.s32 %v5136, %v5138
      %v5140 = vrot.slane %v5132, %v5139
      %v5142 = vunpack.c.l.s4 1966171168
      %v5143 = vunpack.c.0.s8 %v5142
      %v5144 = vlaneseq
      %v5145 = vshrl.u32 %v5144, 7
      %v5146 = vsub.s32 %v5143, %v5145
      %v5147 = vrot.slane %v5133, %v5146
      %v5148 = vcombine.low %v5140, %v5147
      %v5149 = vcombine.low %v5027, %v5028
      %v5151 = vunpack.c.l.s4 1966171168
      %v5152 = vunpack.c.0.s8 %v5151
      %v5153 = vlaneseq
      %v5154 = vshrl.u32 %v5153, 7
      %v5155 = vsub.s32 %v5152, %v5154
      %v5156 = vrot.slane %v5149, %v5155
      %v5158 = vunpack.c.l.s4 1966171168
      %v5159 = vunpack.c.0.s8 %v5158
      %v5160 = vlaneseq
      %v5161 = vshrl.u32 %v5160, 7
      %v5162 = vsub.s32 %v5159, %v5161
      %v5163 = vrot.slane %v5156, %v5162
      %v5167 = vsel %vm317, %v5099, 0.0
      %5168 = vadd.xlane.f32.xlu0 %v5167
      %v5169 = vpop.xlane.xlu0 %5168
      %v5170 = vsel %vm317, %v5148, 0.0
      %5171 = vadd.xlane.f32.xlu0 %v5170
      %v5172 = vpop.xlane.xlu0 %5171
      %v5173 = vsel %vm3967, %v5163, 0.0
      %5174 = vadd.xlane.f32.xlu0 %v5173
      %v5175 = vpop.xlane.xlu0 %5174
      %v5176 = vmul.f32 %v5169, %v3971
      %v5177 = vmul.f32 %v5172, %v3971
      %v5178 = vmul.f32 %v5175, %v3971
      %v5182 = vlaneseq
      %v5183 = vshrl.u32 %v5182, 7
      %v5184 = vsub.s32 0, %v5183
      %v5185 = vrot.slane %v5176, %v5184
      %v5186 = vlaneseq
      %v5187 = vshrl.u32 %v5186, 7
      %v5188 = vsub.s32 1, %v5187
      %v5189 = vrot.slane %v5176, %v5188
      %v5190 = vlaneseq
      %v5191 = vshrl.u32 %v5190, 7
      %v5192 = vsub.s32 2, %v5191
      %v5193 = vrot.slane %v5176, %v5192
      %v5194 = vlaneseq
      %v5195 = vshrl.u32 %v5194, 7
      %v5196 = vsub.s32 3, %v5195
      %v5197 = vrot.slane %v5176, %v5196
      %v5198 = vlaneseq
      %v5199 = vshrl.u32 %v5198, 7
      %v5200 = vsub.s32 4, %v5199
      %v5201 = vrot.slane %v5176, %v5200
      %v5202 = vlaneseq
      %v5203 = vshrl.u32 %v5202, 7
      %v5204 = vsub.s32 5, %v5203
      %v5205 = vrot.slane %v5176, %v5204
      %v5206 = vlaneseq
      %v5207 = vshrl.u32 %v5206, 7
      %v5208 = vsub.s32 6, %v5207
      %v5209 = vrot.slane %v5176, %v5208
      %v5210 = vlaneseq
      %v5211 = vshrl.u32 %v5210, 7
      %v5212 = vsub.s32 7, %v5211
      %v5213 = vrot.slane %v5176, %v5212
      %v5214 = vlaneseq
      %v5215 = vshrl.u32 %v5214, 7
      %v5216 = vsub.s32 0, %v5215
      %v5217 = vrot.slane %v5177, %v5216
      %v5218 = vlaneseq
      %v5219 = vshrl.u32 %v5218, 7
      %v5220 = vsub.s32 1, %v5219
      %v5221 = vrot.slane %v5177, %v5220
      %v5222 = vlaneseq
      %v5223 = vshrl.u32 %v5222, 7
      %v5224 = vsub.s32 2, %v5223
      %v5225 = vrot.slane %v5177, %v5224
      %v5226 = vlaneseq
      %v5227 = vshrl.u32 %v5226, 7
      %v5228 = vsub.s32 3, %v5227
      %v5229 = vrot.slane %v5177, %v5228
      %v5230 = vlaneseq
      %v5231 = vshrl.u32 %v5230, 7
      %v5232 = vsub.s32 4, %v5231
      %v5233 = vrot.slane %v5177, %v5232
      %v5234 = vlaneseq
      %v5235 = vshrl.u32 %v5234, 7
      %v5236 = vsub.s32 5, %v5235
      %v5237 = vrot.slane %v5177, %v5236
      %v5238 = vlaneseq
      %v5239 = vshrl.u32 %v5238, 7
      %v5240 = vsub.s32 6, %v5239
      %v5241 = vrot.slane %v5177, %v5240
      %v5242 = vlaneseq
      %v5243 = vshrl.u32 %v5242, 7
      %v5244 = vsub.s32 7, %v5243
      %v5245 = vrot.slane %v5177, %v5244
      %v5246 = vlaneseq
      %v5247 = vshrl.u32 %v5246, 7
      %v5248 = vsub.s32 0, %v5247
      %v5249 = vrot.slane %v5178, %v5248
      %v5250 = vlaneseq
      %v5251 = vshrl.u32 %v5250, 7
      %v5252 = vsub.s32 1, %v5251
      %v5253 = vrot.slane %v5178, %v5252
      %v5272 = vsub.f32 %v5011, %v5185
      %v5273 = vsub.f32 %v5012, %v5189
      %v5274 = vsub.f32 %v5013, %v5193
      %v5275 = vsub.f32 %v5014, %v5197
      %v5276 = vsub.f32 %v5015, %v5201
      %v5277 = vsub.f32 %v5016, %v5205
      %v5278 = vsub.f32 %v5017, %v5209
      %v5279 = vsub.f32 %v5018, %v5213
      %v5280 = vsub.f32 %v5019, %v5217
      %v5281 = vsub.f32 %v5020, %v5221
      %v5282 = vsub.f32 %v5021, %v5225
      %v5283 = vsub.f32 %v5022, %v5229
      %v5284 = vsub.f32 %v5023, %v5233
      %v5285 = vsub.f32 %v5024, %v5237
      %v5286 = vsub.f32 %v5025, %v5241
      %v5287 = vsub.f32 %v5026, %v5245
      %v5288 = vsub.f32 %v5027, %v5249
      %v5289 = vsub.f32 %v5028, %v5253
      %v5290 = vmul.f32 %v5272, %v5272
      %v5291 = vmul.f32 %v5273, %v5273
      %v5292 = vmul.f32 %v5274, %v5274
      %v5293 = vmul.f32 %v5275, %v5275
      %v5294 = vmul.f32 %v5276, %v5276
      %v5295 = vmul.f32 %v5277, %v5277
      %v5296 = vmul.f32 %v5278, %v5278
      %v5297 = vmul.f32 %v5279, %v5279
      %v5298 = vmul.f32 %v5280, %v5280
      %v5299 = vmul.f32 %v5281, %v5281
      %v5300 = vmul.f32 %v5282, %v5282
      %v5301 = vmul.f32 %v5283, %v5283
      %v5302 = vmul.f32 %v5284, %v5284
      %v5303 = vmul.f32 %v5285, %v5285
      %v5304 = vmul.f32 %v5286, %v5286
      %v5305 = vmul.f32 %v5287, %v5287
      %v5306 = vmul.f32 %v5288, %v5288
      %v5307 = vmul.f32 %v5289, %v5289
      %v5326 = vcombine.low %v5290, %v5291
      %v5327 = vcombine.low %v5292, %v5293
      %v5328 = vcombine.low %v5294, %v5295
      %v5329 = vcombine.low %v5296, %v5297
      %v5331 = vunpack.c.l.s4 1966171168
      %v5332 = vunpack.c.0.s8 %v5331
      %v5333 = vlaneseq
      %v5334 = vshrl.u32 %v5333, 7
      %v5335 = vsub.s32 %v5332, %v5334
      %v5336 = vrot.slane %v5326, %v5335
      %v5338 = vunpack.c.l.s4 1966171168
      %v5339 = vunpack.c.0.s8 %v5338
      %v5340 = vlaneseq
      %v5341 = vshrl.u32 %v5340, 7
      %v5342 = vsub.s32 %v5339, %v5341
      %v5343 = vrot.slane %v5327, %v5342
      %v5345 = vunpack.c.l.s4 1966171168
      %v5346 = vunpack.c.0.s8 %v5345
      %v5347 = vlaneseq
      %v5348 = vshrl.u32 %v5347, 7
      %v5349 = vsub.s32 %v5346, %v5348
      %v5350 = vrot.slane %v5328, %v5349
      %v5352 = vunpack.c.l.s4 1966171168
      %v5353 = vunpack.c.0.s8 %v5352
      %v5354 = vlaneseq
      %v5355 = vshrl.u32 %v5354, 7
      %v5356 = vsub.s32 %v5353, %v5355
      %v5357 = vrot.slane %v5329, %v5356
      %v5358 = vcombine.low %v5336, %v5343
      %v5359 = vcombine.low %v5350, %v5357
      %v5361 = vunpack.c.l.s4 1966171168
      %v5362 = vunpack.c.0.s8 %v5361
      %v5363 = vlaneseq
      %v5364 = vshrl.u32 %v5363, 7
      %v5365 = vsub.s32 %v5362, %v5364
      %v5366 = vrot.slane %v5358, %v5365
      %v5368 = vunpack.c.l.s4 1966171168
      %v5369 = vunpack.c.0.s8 %v5368
      %v5370 = vlaneseq
      %v5371 = vshrl.u32 %v5370, 7
      %v5372 = vsub.s32 %v5369, %v5371
      %v5373 = vrot.slane %v5359, %v5372
      %v5374 = vcombine.low %v5366, %v5373
      %v5375 = vcombine.low %v5298, %v5299
      %v5376 = vcombine.low %v5300, %v5301
      %v5377 = vcombine.low %v5302, %v5303
      %v5378 = vcombine.low %v5304, %v5305
      %v5380 = vunpack.c.l.s4 1966171168
      %v5381 = vunpack.c.0.s8 %v5380
      %v5382 = vlaneseq
      %v5383 = vshrl.u32 %v5382, 7
      %v5384 = vsub.s32 %v5381, %v5383
      %v5385 = vrot.slane %v5375, %v5384
      %v5387 = vunpack.c.l.s4 1966171168
      %v5388 = vunpack.c.0.s8 %v5387
      %v5389 = vlaneseq
      %v5390 = vshrl.u32 %v5389, 7
      %v5391 = vsub.s32 %v5388, %v5390
      %v5392 = vrot.slane %v5376, %v5391
      %v5394 = vunpack.c.l.s4 1966171168
      %v5395 = vunpack.c.0.s8 %v5394
      %v5396 = vlaneseq
      %v5397 = vshrl.u32 %v5396, 7
      %v5398 = vsub.s32 %v5395, %v5397
      %v5399 = vrot.slane %v5377, %v5398
      %v5401 = vunpack.c.l.s4 1966171168
      %v5402 = vunpack.c.0.s8 %v5401
      %v5403 = vlaneseq
      %v5404 = vshrl.u32 %v5403, 7
      %v5405 = vsub.s32 %v5402, %v5404
      %v5406 = vrot.slane %v5378, %v5405
      %v5407 = vcombine.low %v5385, %v5392
      %v5408 = vcombine.low %v5399, %v5406
      %v5410 = vunpack.c.l.s4 1966171168
      %v5411 = vunpack.c.0.s8 %v5410
      %v5412 = vlaneseq
      %v5413 = vshrl.u32 %v5412, 7
      %v5414 = vsub.s32 %v5411, %v5413
      %v5415 = vrot.slane %v5407, %v5414
      %v5417 = vunpack.c.l.s4 1966171168
      %v5418 = vunpack.c.0.s8 %v5417
      %v5419 = vlaneseq
      %v5420 = vshrl.u32 %v5419, 7
      %v5421 = vsub.s32 %v5418, %v5420
      %v5422 = vrot.slane %v5408, %v5421
      %v5423 = vcombine.low %v5415, %v5422
      %v5424 = vcombine.low %v5306, %v5307
      %v5426 = vunpack.c.l.s4 1966171168
      %v5427 = vunpack.c.0.s8 %v5426
      %v5428 = vlaneseq
      %v5429 = vshrl.u32 %v5428, 7
      %v5430 = vsub.s32 %v5427, %v5429
      %v5431 = vrot.slane %v5424, %v5430
      %v5433 = vunpack.c.l.s4 1966171168
      %v5434 = vunpack.c.0.s8 %v5433
      %v5435 = vlaneseq
      %v5436 = vshrl.u32 %v5435, 7
      %v5437 = vsub.s32 %v5434, %v5436
      %v5438 = vrot.slane %v5431, %v5437
      %v5442 = vsel %vm317, %v5374, 0.0
      %5443 = vadd.xlane.f32.xlu0 %v5442
      %v5444 = vpop.xlane.xlu0 %5443
      %v5445 = vsel %vm317, %v5423, 0.0
      %5446 = vadd.xlane.f32.xlu0 %v5445
      %v5447 = vpop.xlane.xlu0 %5446
      %v5448 = vsel %vm3967, %v5438, 0.0
      %5449 = vadd.xlane.f32.xlu0 %v5448
      %v5450 = vpop.xlane.xlu0 %5449
      %v5451 = vmul.f32 %v5444, %v3971
      %v5452 = vmul.f32 %v5447, %v3971
      %v5453 = vmul.f32 %v5450, %v3971
      %v5454 = vadd.f32 %v5451, 1e-05
      %v5455 = vadd.f32 %v5452, 1e-05
      %v5456 = vadd.f32 %v5453, 1e-05
      %v5457 = vrsqrt.pop %v5454
      %v5458 = vrsqrt.pop %v5455
      %v5459 = vrsqrt.pop %v5456
      %v5463 = vlaneseq
      %v5464 = vshrl.u32 %v5463, 7
      %v5465 = vsub.s32 0, %v5464
      %v5466 = vrot.slane %v5457, %v5465
      %v5467 = vlaneseq
      %v5468 = vshrl.u32 %v5467, 7
      %v5469 = vsub.s32 1, %v5468
      %v5470 = vrot.slane %v5457, %v5469
      %v5471 = vlaneseq
      %v5472 = vshrl.u32 %v5471, 7
      %v5473 = vsub.s32 2, %v5472
      %v5474 = vrot.slane %v5457, %v5473
      %v5475 = vlaneseq
      %v5476 = vshrl.u32 %v5475, 7
      %v5477 = vsub.s32 3, %v5476
      %v5478 = vrot.slane %v5457, %v5477
      %v5479 = vlaneseq
      %v5480 = vshrl.u32 %v5479, 7
      %v5481 = vsub.s32 4, %v5480
      %v5482 = vrot.slane %v5457, %v5481
      %v5483 = vlaneseq
      %v5484 = vshrl.u32 %v5483, 7
      %v5485 = vsub.s32 5, %v5484
      %v5486 = vrot.slane %v5457, %v5485
      %v5487 = vlaneseq
      %v5488 = vshrl.u32 %v5487, 7
      %v5489 = vsub.s32 6, %v5488
      %v5490 = vrot.slane %v5457, %v5489
      %v5491 = vlaneseq
      %v5492 = vshrl.u32 %v5491, 7
      %v5493 = vsub.s32 7, %v5492
      %v5494 = vrot.slane %v5457, %v5493
      %v5495 = vlaneseq
      %v5496 = vshrl.u32 %v5495, 7
      %v5497 = vsub.s32 0, %v5496
      %v5498 = vrot.slane %v5458, %v5497
      %v5499 = vlaneseq
      %v5500 = vshrl.u32 %v5499, 7
      %v5501 = vsub.s32 1, %v5500
      %v5502 = vrot.slane %v5458, %v5501
      %v5503 = vlaneseq
      %v5504 = vshrl.u32 %v5503, 7
      %v5505 = vsub.s32 2, %v5504
      %v5506 = vrot.slane %v5458, %v5505
      %v5507 = vlaneseq
      %v5508 = vshrl.u32 %v5507, 7
      %v5509 = vsub.s32 3, %v5508
      %v5510 = vrot.slane %v5458, %v5509
      %v5511 = vlaneseq
      %v5512 = vshrl.u32 %v5511, 7
      %v5513 = vsub.s32 4, %v5512
      %v5514 = vrot.slane %v5458, %v5513
      %v5515 = vlaneseq
      %v5516 = vshrl.u32 %v5515, 7
      %v5517 = vsub.s32 5, %v5516
      %v5518 = vrot.slane %v5458, %v5517
      %v5519 = vlaneseq
      %v5520 = vshrl.u32 %v5519, 7
      %v5521 = vsub.s32 6, %v5520
      %v5522 = vrot.slane %v5458, %v5521
      %v5523 = vlaneseq
      %v5524 = vshrl.u32 %v5523, 7
      %v5525 = vsub.s32 7, %v5524
      %v5526 = vrot.slane %v5458, %v5525
      %v5527 = vlaneseq
      %v5528 = vshrl.u32 %v5527, 7
      %v5529 = vsub.s32 0, %v5528
      %v5530 = vrot.slane %v5459, %v5529
      %v5531 = vlaneseq
      %v5532 = vshrl.u32 %v5531, 7
      %v5533 = vsub.s32 1, %v5532
      %v5534 = vrot.slane %v5459, %v5533
      %v5553 = vmul.f32 %v5272, %v5466
      %v5554 = vmul.f32 %v5273, %v5470
      %v5555 = vmul.f32 %v5274, %v5474
      %v5556 = vmul.f32 %v5275, %v5478
      %v5557 = vmul.f32 %v5276, %v5482
      %v5558 = vmul.f32 %v5277, %v5486
      %v5559 = vmul.f32 %v5278, %v5490
      %v5560 = vmul.f32 %v5279, %v5494
      %v5561 = vmul.f32 %v5280, %v5498
      %v5562 = vmul.f32 %v5281, %v5502
      %v5563 = vmul.f32 %v5282, %v5506
      %v5564 = vmul.f32 %v5283, %v5510
      %v5565 = vmul.f32 %v5284, %v5514
      %v5566 = vmul.f32 %v5285, %v5518
      %v5567 = vmul.f32 %v5286, %v5522
      %v5568 = vmul.f32 %v5287, %v5526
      %v5569 = vmul.f32 %v5288, %v5530
      %v5570 = vmul.f32 %v5289, %v5534
      %v5572 = vlaneseq
      %v5573 = vshrl.u32 %v5572, 7
      %v5574 = vsub.s32 0, %v5573
      %v5575 = vrot.slane %v5030, %v5574
      %v5576 = vcombine.high %v5575, %v5575
      %v5578 = vunpack.c.l.s4 1966171168
      %v5579 = vunpack.c.0.s8 %v5578
      %v5580 = vlaneseq
      %v5581 = vshrl.u32 %v5580, 7
      %v5582 = vsub.s32 %v5579, %v5581
      %v5583 = vrot.slane %v5575, %v5582
      %v5585 = vunpack.c.l.s4 1966171168
      %v5586 = vunpack.c.0.s8 %v5585
      %v5587 = vlaneseq
      %v5588 = vshrl.u32 %v5587, 7
      %v5589 = vsub.s32 %v5586, %v5588
      %v5590 = vrot.slane %v5576, %v5589
      %v5591 = vcombine.high %v5583, %v5583
      %v5592 = vcombine.high %v5590, %v5590
      %v5594 = vunpack.c.l.s4 1966171168
      %v5595 = vunpack.c.0.s8 %v5594
      %v5596 = vlaneseq
      %v5597 = vshrl.u32 %v5596, 7
      %v5598 = vsub.s32 %v5595, %v5597
      %v5599 = vrot.slane %v5583, %v5598
      %v5601 = vunpack.c.l.s4 1966171168
      %v5602 = vunpack.c.0.s8 %v5601
      %v5603 = vlaneseq
      %v5604 = vshrl.u32 %v5603, 7
      %v5605 = vsub.s32 %v5602, %v5604
      %v5606 = vrot.slane %v5590, %v5605
      %v5608 = vunpack.c.l.s4 1966171168
      %v5609 = vunpack.c.0.s8 %v5608
      %v5610 = vlaneseq
      %v5611 = vshrl.u32 %v5610, 7
      %v5612 = vsub.s32 %v5609, %v5611
      %v5613 = vrot.slane %v5591, %v5612
      %v5615 = vunpack.c.l.s4 1966171168
      %v5616 = vunpack.c.0.s8 %v5615
      %v5617 = vlaneseq
      %v5618 = vshrl.u32 %v5617, 7
      %v5619 = vsub.s32 %v5616, %v5618
      %v5620 = vrot.slane %v5592, %v5619
      %v5621 = vcombine.high %v5599, %v5599
      %v5622 = vcombine.high %v5606, %v5606
      %v5623 = vcombine.high %v5613, %v5613
      %v5624 = vcombine.high %v5620, %v5620
      %v5633 = vmul.f32 %v5553, %v5599
      %v5634 = vmul.f32 %v5554, %v5613
      %v5635 = vmul.f32 %v5555, %v5621
      %v5636 = vmul.f32 %v5556, %v5623
      %v5637 = vmul.f32 %v5557, %v5606
      %v5638 = vmul.f32 %v5558, %v5620
      %v5639 = vmul.f32 %v5559, %v5622
      %v5640 = vmul.f32 %v5560, %v5624
      %v5641 = vmul.f32 %v5561, %v5599
      %v5642 = vmul.f32 %v5562, %v5613
      %v5643 = vmul.f32 %v5563, %v5621
      %v5644 = vmul.f32 %v5564, %v5623
      %v5645 = vmul.f32 %v5565, %v5606
      %v5646 = vmul.f32 %v5566, %v5620
      %v5647 = vmul.f32 %v5567, %v5622
      %v5648 = vmul.f32 %v5568, %v5624
      %v5649 = vmul.f32 %v5569, %v5599
      %v5650 = vmul.f32 %v5570, %v5613
      %v5652 = vlaneseq
      %v5653 = vshrl.u32 %v5652, 7
      %v5654 = vsub.s32 0, %v5653
      %v5655 = vrot.slane %v5032, %v5654
      %v5656 = vcombine.high %v5655, %v5655
      %v5658 = vunpack.c.l.s4 1966171168
      %v5659 = vunpack.c.0.s8 %v5658
      %v5660 = vlaneseq
      %v5661 = vshrl.u32 %v5660, 7
      %v5662 = vsub.s32 %v5659, %v5661
      %v5663 = vrot.slane %v5655, %v5662
      %v5665 = vunpack.c.l.s4 1966171168
      %v5666 = vunpack.c.0.s8 %v5665
      %v5667 = vlaneseq
      %v5668 = vshrl.u32 %v5667, 7
      %v5669 = vsub.s32 %v5666, %v5668
      %v5670 = vrot.slane %v5656, %v5669
      %v5671 = vcombine.high %v5663, %v5663
      %v5672 = vcombine.high %v5670, %v5670
      %v5674 = vunpack.c.l.s4 1966171168
      %v5675 = vunpack.c.0.s8 %v5674
      %v5676 = vlaneseq
      %v5677 = vshrl.u32 %v5676, 7
      %v5678 = vsub.s32 %v5675, %v5677
      %v5679 = vrot.slane %v5663, %v5678
      %v5681 = vunpack.c.l.s4 1966171168
      %v5682 = vunpack.c.0.s8 %v5681
      %v5683 = vlaneseq
      %v5684 = vshrl.u32 %v5683, 7
      %v5685 = vsub.s32 %v5682, %v5684
      %v5686 = vrot.slane %v5670, %v5685
      %v5688 = vunpack.c.l.s4 1966171168
      %v5689 = vunpack.c.0.s8 %v5688
      %v5690 = vlaneseq
      %v5691 = vshrl.u32 %v5690, 7
      %v5692 = vsub.s32 %v5689, %v5691
      %v5693 = vrot.slane %v5671, %v5692
      %v5695 = vunpack.c.l.s4 1966171168
      %v5696 = vunpack.c.0.s8 %v5695
      %v5697 = vlaneseq
      %v5698 = vshrl.u32 %v5697, 7
      %v5699 = vsub.s32 %v5696, %v5698
      %v5700 = vrot.slane %v5672, %v5699
      %v5701 = vcombine.high %v5679, %v5679
      %v5702 = vcombine.high %v5686, %v5686
      %v5703 = vcombine.high %v5693, %v5693
      %v5704 = vcombine.high %v5700, %v5700
      %v5713 = vadd.f32 %v5633, %v5679
      %v5714 = vadd.f32 %v5634, %v5693
      %v5715 = vadd.f32 %v5635, %v5701
      %v5716 = vadd.f32 %v5636, %v5703
      %v5717 = vadd.f32 %v5637, %v5686
      %v5718 = vadd.f32 %v5638, %v5700
      %v5719 = vadd.f32 %v5639, %v5702
      %v5720 = vadd.f32 %v5640, %v5704
      %v5721 = vadd.f32 %v5641, %v5679
      %v5722 = vadd.f32 %v5642, %v5693
      %v5723 = vadd.f32 %v5643, %v5701
      %v5724 = vadd.f32 %v5644, %v5703
      %v5725 = vadd.f32 %v5645, %v5686
      %v5726 = vadd.f32 %v5646, %v5700
      %v5727 = vadd.f32 %v5647, %v5702
      %v5728 = vadd.f32 %v5648, %v5704
      %v5729 = vadd.f32 %v5649, %v5679
      %v5730 = vadd.f32 %v5650, %v5693
    $region158: #{mdm_forward.1} parent=1 // loop_footer
      %s708 = sadd.s32 1, %s704
    $region159: #{mdm_forward.1} parent=1 // loop_footer_branch
      %703 = sbr.rel target = $region155
    $region160: #{mdm_forward.1} parent=1 // loop_exit
      _
    %v5731 = vld [vmem:[%s27] sm:$0xf]
    %v5732 = vld [vmem:[%s27 + $0x4] sm:$0xf]
    %v5733 = vld [vmem:[%s27 + $0x8] sm:$0xf]
    %v5734 = vld [vmem:[%s27 + $0xc] sm:$0xf]
    %v5751 = vcombine.low %v709, %v710
    %v5752 = vcombine.low %v711, %v712
    %v5753 = vcombine.low %v713, %v714
    %v5754 = vcombine.low %v715, %v716
    %v5756 = vunpack.c.l.s4 1966171168
    %v5757 = vunpack.c.0.s8 %v5756
    %v5758 = vlaneseq
    %v5759 = vshrl.u32 %v5758, 7
    %v5760 = vsub.s32 %v5757, %v5759
    %v5761 = vrot.slane %v5751, %v5760
    %v5763 = vunpack.c.l.s4 1966171168
    %v5764 = vunpack.c.0.s8 %v5763
    %v5765 = vlaneseq
    %v5766 = vshrl.u32 %v5765, 7
    %v5767 = vsub.s32 %v5764, %v5766
    %v5768 = vrot.slane %v5752, %v5767
    %v5770 = vunpack.c.l.s4 1966171168
    %v5771 = vunpack.c.0.s8 %v5770
    %v5772 = vlaneseq
    %v5773 = vshrl.u32 %v5772, 7
    %v5774 = vsub.s32 %v5771, %v5773
    %v5775 = vrot.slane %v5753, %v5774
    %v5777 = vunpack.c.l.s4 1966171168
    %v5778 = vunpack.c.0.s8 %v5777
    %v5779 = vlaneseq
    %v5780 = vshrl.u32 %v5779, 7
    %v5781 = vsub.s32 %v5778, %v5780
    %v5782 = vrot.slane %v5754, %v5781
    %v5783 = vcombine.low %v5761, %v5768
    %v5784 = vcombine.low %v5775, %v5782
    %v5786 = vunpack.c.l.s4 1966171168
    %v5787 = vunpack.c.0.s8 %v5786
    %v5788 = vlaneseq
    %v5789 = vshrl.u32 %v5788, 7
    %v5790 = vsub.s32 %v5787, %v5789
    %v5791 = vrot.slane %v5783, %v5790
    %v5793 = vunpack.c.l.s4 1966171168
    %v5794 = vunpack.c.0.s8 %v5793
    %v5795 = vlaneseq
    %v5796 = vshrl.u32 %v5795, 7
    %v5797 = vsub.s32 %v5794, %v5796
    %v5798 = vrot.slane %v5784, %v5797
    %v5799 = vcombine.low %v5791, %v5798
    %v5800 = vcombine.low %v718, %v719
    %v5801 = vcombine.low %v720, %v721
    %v5802 = vcombine.low %v722, %v723
    %v5803 = vcombine.low %v724, %v725
    %v5805 = vunpack.c.l.s4 1966171168
    %v5806 = vunpack.c.0.s8 %v5805
    %v5807 = vlaneseq
    %v5808 = vshrl.u32 %v5807, 7
    %v5809 = vsub.s32 %v5806, %v5808
    %v5810 = vrot.slane %v5800, %v5809
    %v5812 = vunpack.c.l.s4 1966171168
    %v5813 = vunpack.c.0.s8 %v5812
    %v5814 = vlaneseq
    %v5815 = vshrl.u32 %v5814, 7
    %v5816 = vsub.s32 %v5813, %v5815
    %v5817 = vrot.slane %v5801, %v5816
    %v5819 = vunpack.c.l.s4 1966171168
    %v5820 = vunpack.c.0.s8 %v5819
    %v5821 = vlaneseq
    %v5822 = vshrl.u32 %v5821, 7
    %v5823 = vsub.s32 %v5820, %v5822
    %v5824 = vrot.slane %v5802, %v5823
    %v5826 = vunpack.c.l.s4 1966171168
    %v5827 = vunpack.c.0.s8 %v5826
    %v5828 = vlaneseq
    %v5829 = vshrl.u32 %v5828, 7
    %v5830 = vsub.s32 %v5827, %v5829
    %v5831 = vrot.slane %v5803, %v5830
    %v5832 = vcombine.low %v5810, %v5817
    %v5833 = vcombine.low %v5824, %v5831
    %v5835 = vunpack.c.l.s4 1966171168
    %v5836 = vunpack.c.0.s8 %v5835
    %v5837 = vlaneseq
    %v5838 = vshrl.u32 %v5837, 7
    %v5839 = vsub.s32 %v5836, %v5838
    %v5840 = vrot.slane %v5832, %v5839
    %v5842 = vunpack.c.l.s4 1966171168
    %v5843 = vunpack.c.0.s8 %v5842
    %v5844 = vlaneseq
    %v5845 = vshrl.u32 %v5844, 7
    %v5846 = vsub.s32 %v5843, %v5845
    %v5847 = vrot.slane %v5833, %v5846
    %v5848 = vcombine.low %v5840, %v5847
    %v5851 = vpack.c.bf16 %v5848, %v5799
    %v5852 = vld [vmem:[%s29] sm:$0x1]
    %v5854 = vlaneseq
    %v5855 = vshrl.u32 %v5854, 7
    %v5856 = vsub.s32 0, %v5855
    %v5857 = vrot.slane %v5852, %v5856
    %v5863 = vunpack.c.l.b16 %v5731
    %v5864 = vunpack.c.l.b16 %v5732
    %v5865 = vunpack.c.l.b16 %v5733
    %v5866 = vunpack.c.l.b16 %v5734
    %v5867 = vpack.c.b16 %v5864, %v5863
    %v5868 = vpack.c.b16 %v5866, %v5865
    %v5872 = vsel %vm317, %v5851, 0
    %5874 = vmatprep.subr.bf16.mxu0 0
    %5875 = vmatpush1.bf16.msra.mxu0 %v5867
    %5876 = vmatprep.subr.bf16.mxu0 0
    %5877 = vmatpush1.bf16.msra.mxu0 %v5868
    %5878 = vmatprep.subr.bf16.mxu0 0
    %5879 = vmatpush1.bf16.msra.mxu0 0
    %5880 = vmatprep.subr.bf16.mxu0 0
    %5881 = vmatpush1.bf16.msra.mxu0 0
    %5882 = vmatprep.subr.bf16.mxu0 0
    %5883 = vmatpush1.bf16.msra.mxu0 0
    %5884 = vmatprep.subr.bf16.mxu0 0
    %5885 = vmatpush1.bf16.msra.mxu0 0
    %5886 = vmatprep.subr.bf16.mxu0 0
    %5887 = vmatpush1.bf16.msra.mxu0 0
    %5888 = vmatprep.subr.bf16.mxu0 0
    %5889 = vmatpush1.bf16.msra.mxu0 0
    %5890 = vmatprep.subr.bf16.mxu0 0
    %5891 = vmatpush1.bf16.msra.mxu0 0
    %5892 = vmatprep.subr.bf16.mxu0 0
    %5893 = vmatpush1.bf16.msra.mxu0 0
    %5894 = vmatprep.subr.bf16.mxu0 0
    %5895 = vmatpush1.bf16.msra.mxu0 0
    %5896 = vmatprep.subr.bf16.mxu0 0
    %5897 = vmatpush1.bf16.msra.mxu0 0
    %5898 = vmatprep.subr.bf16.mxu0 0
    %5899 = vmatpush1.bf16.msra.mxu0 0
    %5900 = vmatprep.subr.bf16.mxu0 0
    %5901 = vmatpush1.bf16.msra.mxu0 0
    %5902 = vmatprep.subr.bf16.mxu0 0
    %5903 = vmatpush1.bf16.msra.mxu0 0
    %5904 = vmatprep.subr.bf16.mxu0 0
    %5905 = vmatpush1.bf16.msra.mxu0 0
    %5906 = vmatprep.mubr.bf16.mxu0 0
    %5907 = vmatmul.mubr.bf16.gmra.mrb[0].mxu0 %v5872
    %v5908 = vpop.f32.mrb[0].mxu0
    %v5909 = vadd.f32 %v5857, %v5908
    %v5910 = vpop.f32.mrb[0].mxu0
    %v5911 = vpop.f32.mrb[0].mxu0
    %v5912 = vadd.f32 %v5857, %v5911
    %v5913 = vpop.f32.mrb[0].mxu0
    %5914 = vdwg.mxu0
    %5915 = vst [vmem:[%s63] sm:$0xff] %v5909
    %5916 = vst [vmem:[%s63 + $0x8] sm:$0xff] %v5912
    // Predicated region
    $region161: #{mdm_forward.1} parent=1 // pred_check
      _
    $region162: #{mdm_forward.1} parent=1 // pred_check_branch
      %5918 = sbr.rel (0) target = $region164
    $region163: #{mdm_forward.1} parent=1 // pred_region
      _
    $region164: #{mdm_forward.1} parent=1 // pred_fallthru
      _
    // Predicated region
    $region165: #{mdm_forward.1} parent=1 // pred_check
      _
    $region166: #{mdm_forward.1} parent=1 // pred_check_branch
      %5920 = sbr.rel (0) target = $region168
    $region167: #{mdm_forward.1} parent=1 // pred_region
      _
    $region168: #{mdm_forward.1} parent=1 // pred_fallthru
      _
    %5921 = vsyncpa [#allocation4], 1
    %5922 = vsyncpa [#allocation6], 1
    %5923 = vsyncpa [#allocation9], 1
    %5924 = vsyncpa [#allocation12], 1

</llo_original>
